<compile_context>
chip_gen: v7x
topology: tpu7x:2x2x1
jax: 0.10.0
libtpu: 0.0.40
codegen_flags: <defaults>
</compile_context>

<pallas_src>
import numpy as np
import jax
import jax.numpy as jnp
from jax.experimental import pallas as pl
from jax.experimental.pallas import tpu as pltpu


def _round_up(n, m):
    return ((n + m - 1) // m) * m


# ----------------------------- Pallas kernel --------------------------------

def _make_fused_kernel(num_levels, NPAD, K, H):
    """Fused level-loop kernel. Gate order along the 4H lane axis: i|f|o|u."""
    H4 = 4 * H
    S = num_levels * NPAD

    def kernel(x_ref, selsum_ref, sel_ref, w4_ref, u4_ref, uf_ref, b4_ref,
               h_state_ref, c_state_ref):
        l = pl.program_id(1)          # level index (grid axis 1, "arbitrary")

        # Zero this chunk's resident node-state once; it persists across levels.
        @pl.when(l == 0)
        def _init():
            h_state_ref[...] = jnp.zeros_like(h_state_ref)
            c_state_ref[...] = jnp.zeros_like(c_state_ref)

        x = x_ref[...]                 # (NPAD, D)     bf16, this level's inputs
        sel_sum = selsum_ref[...]      # (NPAD, S)     bf16 0/1, summed children
        sel = sel_ref[...]             # (K*NPAD, S)   bf16 0/1, per-child select
        b4 = b4_ref[...]               # (1, 4H)       f32, added once

        # Resident per-chunk node state (f32). Flatten: layout no-op fold.
        h_state = h_state_ref[...].reshape(S, H)       # (S, H)
        c_state = c_state_ref[...].reshape(S, H)
        h_b = h_state.astype(jnp.bfloat16)             # bf16 MXU inputs only;
        c_b = c_state.astype(jnp.bfloat16)             # elementwise math stays f32

        # --- gather against the H-wide state FIRST (cheap), project after ---
        # Padded / absent child slots have all-zero selector rows -> exact 0s.
        hsum = jnp.dot(sel_sum, h_b, preferred_element_type=jnp.float32)  # (NPAD, H)
        hc = jnp.dot(sel, h_b, preferred_element_type=jnp.float32)        # (K*NPAD, H)
        cc = jnp.dot(sel, c_b, preferred_element_type=jnp.float32)        # (K*NPAD, H)

        # One fused lane-dense input matmul + one recurrent matmul per level.
        xz = jnp.dot(x, w4_ref[...], preferred_element_type=jnp.float32) + b4   # (NPAD, 4H)
        gsum = jnp.dot(hsum.astype(jnp.bfloat16), u4_ref[...],
                       preferred_element_type=jnp.float32)                       # (NPAD, 4H)
        z = xz + gsum

        # NOTE: H=32 gate slices are 32-lane subsets of a 128-lane vreg (masked
        # VPU work); pick H as a multiple of 128 when scaling up.
        i = jax.nn.sigmoid(z[:, 0:H])
        o = jax.nn.sigmoid(z[:, 2 * H:3 * H])
        u = jnp.tanh(z[:, 3 * H:4 * H])

        # Per-child forget path: only the f gate needs per-child projections,
        # and only through the (H, H) Uf block. Missing children: f_k * 0 == 0.
        xf = xz[:, H:2 * H]                                                # (NPAD, H)
        hcf = jnp.dot(hc.astype(jnp.bfloat16), uf_ref[...],
                      preferred_element_type=jnp.float32)                  # (K*NPAD, H)
        # Slabs are only (NPAD, H) wide now; for larger K switch this unroll to
        # a (K, NPAD, H) reshape + sum or lax.fori_loop(unroll=True).
        fc = jax.nn.sigmoid(xf + hcf[0:NPAD]) * cc[0:NPAD]
        for k in range(1, K):
            fk = jax.nn.sigmoid(xf + hcf[k * NPAD:(k + 1) * NPAD])
            fc = fc + fk * cc[k * NPAD:(k + 1) * NPAD]

        c = i * u + fc
        h = o * jnp.tanh(c)

        # Scatter this level's states into the resident per-chunk state
        # (dynamic leading-axis store of one aligned NPAD-row slab).
        h_state_ref[l] = h
        c_state_ref[l] = c

    return kernel


# ------------------------------- wrapper -------------------------------------

def tree_lstm_forward_pallas(node_vectors, params, levels, children_map,
                             num_core_chunks=2):
    """Full tree traversal for a batch of identically-shaped trees.

    node_vectors: (B, n_nodes, D); levels: leaves first, root last;
    children_map: node id -> list of child ids.
    Returns (root_h, root_c): (B, H) each (mean over roots, as in the module).
    """
    node_vectors = np.asarray(node_vectors, np.float32)
    B, n_nodes, D = node_vectors.shape
    H = params["Ui"].shape[0]
    num_levels = len(levels)
    K = max((len(v) for v in children_map.values()), default=1)
    max_w = max(len(lv) for lv in levels)

    # Batch-chunk axis (mapped to v7x's 2nd TensorCore via "parallel").
    NC = num_core_chunks if (B % num_core_chunks == 0 and B >= num_core_chunks) else 1
    Bc = B // NC
    NPAD = _round_up(max(Bc * max_w, 8), 8)     # sublane-aligned per-level rows
    S = num_levels * NPAD
    H4 = 4 * H

    # ---- static host-side tables derived from the (static) tree topology ----
    # The topology is identical for every tree, so selectors are chunk-invariant.
    x_levels = np.zeros((NC, num_levels, NPAD, D), np.float32)
    sel = np.zeros((num_levels, K * NPAD, S), np.float32)      # per-child 0/1
    sel_sum = np.zeros((num_levels, NPAD, S), np.float32)      # child-sum 0/1
    row_of = {}        # node id -> (level, base slot); state row = level*NPAD + base + b
    for l, lv in enumerate(levels):
        for j, n in enumerate(lv):
            row_of[n] = (l, j * Bc)
    for l, lv in enumerate(levels):
        for j, n in enumerate(lv):
            for b in range(Bc):
                slot = j * Bc + b
                for p in range(NC):
                    x_levels[p, l, slot] = node_vectors[p * Bc + b, n]
                for k, child in enumerate(children_map.get(n, [])):
                    cl, cbase = row_of[child]
                    col = cl * NPAD + cbase + b
                    sel[l, k * NPAD + slot, col] = 1.0
                    sel_sum[l, slot, col] = 1.0
    # Invariant: selectors never reference padded rows (padded rows hold
    # bias-only garbage state and must never be selected).

    # ---- fused gate parameters along the lane axis: [ i | f | o | u ] ----
    W4 = jnp.concatenate([params["Wi"], params["Wf"], params["Wo"], params["Wu"]],
                         axis=1).astype(jnp.bfloat16)
    U4 = jnp.concatenate([params["Ui"], params["Uf"], params["Uo"], params["Uu"]],
                         axis=1).astype(jnp.bfloat16)
    Uf = jnp.asarray(params["Uf"], jnp.bfloat16)
    b4 = jnp.concatenate([params["bi"], params["bf"], params["bo"], params["bu"]],
                         axis=1).astype(jnp.float32)

    kernel = _make_fused_kernel(num_levels, NPAD, K, H)

    cost = pl.CostEstimate(
        flops=int(2 * NC * num_levels *
                  (NPAD * S * H            # sel_sum @ h
                   + 2 * K * NPAD * S * H  # sel @ h, sel @ c
                   + NPAD * D * H4         # x @ W4
                   + NPAD * H * H4         # hsum @ U4
                   + K * NPAD * H * H)),   # hc @ Uf
        transcendentals=int(NC * num_levels * NPAD * H * (4 + K)),
        bytes_accessed=int(2 * (x_levels.size + NC * sel.size + NC * sel_sum.size
                                + W4.size + U4.size + Uf.size)
                           + 4 * b4.size + 4 * 2 * NC * num_levels * NPAD * H),
    )

    grid_spec = pltpu.PrefetchScalarGridSpec(
        num_scalar_prefetch=0,
        grid=(NC, num_levels),                                     # (parallel, arbitrary)
        in_specs=[
            pl.BlockSpec((None, None, NPAD, D), lambda p, l: (p, l, 0, 0)),   # x
            pl.BlockSpec((None, NPAD, S), lambda p, l: (l, 0, 0)),            # sel_sum
            pl.BlockSpec((None, K * NPAD, S), lambda p, l: (l, 0, 0)),        # sel
            pl.BlockSpec((D, H4), lambda p, l: (0, 0)),                       # W4
            pl.BlockSpec((H, H4), lambda p, l: (0, 0)),                       # U4
            pl.BlockSpec((H, H), lambda p, l: (0, 0)),                        # Uf
            pl.BlockSpec((1, H4), lambda p, l: (0, 0)),                       # b4
        ],
        out_specs=(
            pl.BlockSpec((None, num_levels, NPAD, H), lambda p, l: (p, 0, 0, 0)),  # h state
            pl.BlockSpec((None, num_levels, NPAD, H), lambda p, l: (p, 0, 0, 0)),  # c state
        ),
    )

    h_state, c_state = pl.pallas_call(
        kernel,
        grid_spec=grid_spec,
        out_shape=(jax.ShapeDtypeStruct((NC, num_levels, NPAD, H), jnp.float32),
                   jax.ShapeDtypeStruct((NC, num_levels, NPAD, H), jnp.float32)),
        compiler_params=pltpu.CompilerParams(
            dimension_semantics=("parallel", "arbitrary"),
            vmem_limit_bytes=32 * 1024 * 1024),   # explicit budget; fits all gens
        cost_estimate=cost,
    )(jnp.asarray(x_levels, jnp.bfloat16),
      jnp.asarray(sel_sum, jnp.bfloat16),
      jnp.asarray(sel, jnp.bfloat16),
      W4, U4, Uf, b4)

    # roots = nodes with no parent; the module returns the mean over roots.
    # Single gather of the root rows (no per-element Python slicing).
    all_children = set(c for cs in children_map.values() for c in cs)
    roots = [n for n in range(n_nodes) if n not in all_children]
    idx = np.zeros((B, len(roots)), np.int32)
    for b in range(B):
        p, bl = b // Bc, b % Bc
        for r_i, r in enumerate(roots):
            rl, rbase = row_of[r]
            idx[b, r_i] = (p * num_levels + rl) * NPAD + rbase + bl
    idx = jnp.asarray(idx)
    h_flat = h_state.reshape(NC * num_levels * NPAD, H)
    c_flat = c_state.reshape(NC * num_levels * NPAD, H)
    root_h = jnp.mean(jnp.take(h_flat, idx, axis=0), axis=1)
    root_c = jnp.mean(jnp.take(c_flat, idx, axis=0), axis=1)
    return root_h, root_c


# --------------------------- pure-JAX reference ------------------------------

def tree_lstm_forward_ref(node_vectors, params, levels, children_map):
    """Straightforward per-node child-sum TreeLSTM (mirrors _cell_forward)."""
    B, n_nodes, _ = node_vectors.shape
    H = params["Ui"].shape[0]
    h_all = jnp.zeros((B, n_nodes, H), jnp.float32)
    c_all = jnp.zeros((B, n_nodes, H), jnp.float32)
    for level in levels:
        for n in level:
            x = node_vectors[:, n, :]
            cs = children_map.get(n, [])
            h_sum = jnp.zeros((B, H), jnp.float32)
            for ch in cs:
                h_sum = h_sum + h_all[:, ch, :]
            i = jax.nn.sigmoid(x @ params["Wi"] + h_sum @ params["Ui"] + params["bi"])
            o = jax.nn.sigmoid(x @ params["Wo"] + h_sum @ params["Uo"] + params["bo"])
            u = jnp.tanh(x @ params["Wu"] + h_sum @ params["Uu"] + params["bu"])
            xf = x @ params["Wf"] + params["bf"]
            fc = jnp.zeros((B, H), jnp.float32)
            for ch in cs:
                f = jax.nn.sigmoid(xf + h_all[:, ch, :] @ params["Uf"])
                fc = fc + f * c_all[:, ch, :]
            c = i * u + fc
            h = o * jnp.tanh(c)
            h_all = h_all.at[:, n, :].set(h)
            c_all = c_all.at[:, n, :].set(c)
    all_children = set(c for v in children_map.values() for c in v)
    roots = [n for n in range(n_nodes) if n not in all_children]
    root_h = jnp.mean(jnp.stack([h_all[:, r, :] for r in roots], axis=1), axis=1)
    root_c = jnp.mean(jnp.stack([c_all[:, r, :] for r in roots], axis=1), axis=1)
    return root_h, root_c


# ------------------------------ params --------------------------------------

def init_params(key, input_dim, hidden_dim):
    rand_factor = 1.0 / np.sqrt(hidden_dim)

    def uni(k, shape):
        return jax.random.uniform(k, shape, jnp.float32,
                                  minval=-rand_factor, maxval=rand_factor)

    ks = jax.random.split(key, 12)
    # pre-transposed vs PyTorch's (H, D): x @ W here == W @ x there.
    return {
        "Wi": uni(ks[0], (hidden_dim, input_dim)).T,
        "Wf": uni(ks[1], (hidden_dim, input_dim)).T,
        "Wo": uni(ks[2], (hidden_dim, input_dim)).T,
        "Wu": uni(ks[3], (hidden_dim, input_dim)).T,
        "Ui": uni(ks[4], (hidden_dim, hidden_dim)).T,
        "Uf": uni(ks[5], (hidden_dim, hidden_dim)).T,
        "Uo": uni(ks[6], (hidden_dim, hidden_dim)).T,
        "Uu": uni(ks[7], (hidden_dim, hidden_dim)).T,
        "bi": uni(ks[8], (1, hidden_dim)),
        "bf": uni(ks[9], (1, hidden_dim)),
        "bo": uni(ks[10], (1, hidden_dim)),
        "bu": uni(ks[11], (1, hidden_dim)),
    }


# ------------------------------- main ----------------------------------------

if __name__ == "__main__":
    INPUT_DIM = 16
    HIDDEN_DIM = 32
    BATCH_TREES = 64     # per perf review: fill MXU rows (NPAD=128 per chunk)
    N_NODES = 7          # balanced binary tree: root 0; internal 1,2; leaves 3..6

    children_map = {0: [1, 2], 1: [3, 4], 2: [5, 6]}
    levels = [[3, 4, 5, 6], [1, 2], [0]]   # leaves first, root last

    key = jax.random.PRNGKey(0)
    k_params, k_data = jax.random.split(key)
    params = init_params(k_params, INPUT_DIM, HIDDEN_DIM)
    node_vectors = jax.random.normal(k_data, (BATCH_TREES, N_NODES, INPUT_DIM), jnp.float32)

    # Fused Pallas kernel path (single pallas_call for the whole tree batch).
    root_h, root_c = tree_lstm_forward_pallas(node_vectors, params, levels, children_map)
    root_h = jax.block_until_ready(root_h)
    root_c = jax.block_until_ready(root_c)

    # Independent pure-JAX reference of identical semantics.
    ref_h, ref_c = tree_lstm_forward_ref(node_vectors, params, levels, children_map)

    assert root_h.shape == (BATCH_TREES, HIDDEN_DIM)
    assert root_c.shape == (BATCH_TREES, HIDDEN_DIM)
    assert bool(jnp.all(jnp.isfinite(root_h))) and bool(jnp.all(jnp.isfinite(root_c)))
    # Tolerance note: the kernel feeds bf16 operands to the MXU (f32 accumulate)
    # and contracts in a different (mathematically equivalent) order than the
    # reference; bf16 rounding of weights/state shifts root h/c by up to ~1e-2.
    # Genuine wiring bugs produce O(0.1-1) differences, so this check still
    # catches them.
    np.testing.assert_allclose(np.asarray(root_h), np.asarray(ref_h), rtol=2e-2, atol=2e-2)
    np.testing.assert_allclose(np.asarray(root_c), np.asarray(ref_c), rtol=2e-2, atol=2e-2)

    print("KERNEL_OK")
</pallas_src>

<mosaic_0001>
module attributes {stable_mosaic.version = 11 : i64} {
  func.func @kernel(%arg0: i32, %arg1: i32, %arg2: memref<1x1x128x16xbf16, #tpu.memory_space<vmem>>, %arg3: memref<1x128x384xbf16, #tpu.memory_space<vmem>>, %arg4: memref<1x256x384xbf16, #tpu.memory_space<vmem>>, %arg5: memref<16x128xbf16, #tpu.memory_space<vmem>>, %arg6: memref<32x128xbf16, #tpu.memory_space<vmem>>, %arg7: memref<32x32xbf16, #tpu.memory_space<vmem>>, %arg8: memref<1x128xf32, #tpu.memory_space<vmem>>, %arg9: memref<1x3x128x32xf32, #tpu.memory_space<vmem>>, %arg10: memref<1x3x128x32xf32, #tpu.memory_space<vmem>>) attributes {dimension_semantics = [#tpu.dimension_semantics<parallel>, #tpu.dimension_semantics<arbitrary>], iteration_bounds = array<i64: 2, 3>, scalar_prefetch = 0 : i64, scratch_operands = 0 : i64, tpu.core_type = #tpu.core_type<tc>, window_params = [{transform_indices = @transform_0, window_bounds = array<i64: 1, 1, 128, 16>}, {transform_indices = @transform_1, window_bounds = array<i64: 1, 128, 384>}, {transform_indices = @transform_2, window_bounds = array<i64: 1, 256, 384>}, {pipeline_mode = #tpu.pipeline_mode<synchronous>, transform_indices = @transform_3, window_bounds = array<i64: 16, 128>}, {pipeline_mode = #tpu.pipeline_mode<synchronous>, transform_indices = @transform_4, window_bounds = array<i64: 32, 128>}, {pipeline_mode = #tpu.pipeline_mode<synchronous>, transform_indices = @transform_5, window_bounds = array<i64: 32, 32>}, {pipeline_mode = #tpu.pipeline_mode<synchronous>, transform_indices = @transform_6, window_bounds = array<i64: 1, 128>}, {transform_indices = @transform_7, window_bounds = array<i64: 1, 3, 128, 32>}, {transform_indices = @transform_8, window_bounds = array<i64: 1, 3, 128, 32>}]} {
    %c0_i32 = arith.constant 0 : i32
    %0 = arith.cmpi eq, %arg1, %c0_i32 : i32
    %1 = arith.extui %0 : i1 to i32
    %c0_i32_0 = arith.constant 0 : i32
    %2 = arith.cmpi ne, %1, %c0_i32_0 : i32
    scf.if %2 {
      %cst_41 = arith.constant 0.000000e+00 : f32
      %78 = vector.broadcast %cst_41 : f32 to vector<3x128x32xf32>
      %c0_42 = arith.constant 0 : index
      %c0_43 = arith.constant 0 : index
      %c0_44 = arith.constant 0 : index
      %c0_45 = arith.constant 0 : index
      %79 = vector.load %arg9[%c0_42, %c0_43, %c0_44, %c0_45] : memref<1x3x128x32xf32, #tpu.memory_space<vmem>>, vector<1x3x128x32xf32>
      %80 = vector.shape_cast %79 : vector<1x3x128x32xf32> to vector<3x128x32xf32>
      %81 = vector.shape_cast %78 : vector<3x128x32xf32> to vector<1x3x128x32xf32>
      tpu.vector_store %arg9[%c0_42, %c0_43, %c0_44, %c0_45], %81 {strides = array<i32>} : memref<1x3x128x32xf32, #tpu.memory_space<vmem>>, vector<1x3x128x32xf32>,
      %cst_46 = arith.constant 0.000000e+00 : f32
      %82 = vector.broadcast %cst_46 : f32 to vector<3x128x32xf32>
      %c0_47 = arith.constant 0 : index
      %c0_48 = arith.constant 0 : index
      %c0_49 = arith.constant 0 : index
      %c0_50 = arith.constant 0 : index
      %83 = vector.load %arg10[%c0_47, %c0_48, %c0_49, %c0_50] : memref<1x3x128x32xf32, #tpu.memory_space<vmem>>, vector<1x3x128x32xf32>
      %84 = vector.shape_cast %83 : vector<1x3x128x32xf32> to vector<3x128x32xf32>
      %85 = vector.shape_cast %82 : vector<3x128x32xf32> to vector<1x3x128x32xf32>
      tpu.vector_store %arg10[%c0_47, %c0_48, %c0_49, %c0_50], %85 {strides = array<i32>} : memref<1x3x128x32xf32, #tpu.memory_space<vmem>>, vector<1x3x128x32xf32>,
    } else {
    }
    %c0 = arith.constant 0 : index
    %c0_1 = arith.constant 0 : index
    %c0_2 = arith.constant 0 : index
    %c0_3 = arith.constant 0 : index
    %3 = vector.load %arg2[%c0, %c0_1, %c0_2, %c0_3] : memref<1x1x128x16xbf16, #tpu.memory_space<vmem>>, vector<1x1x128x16xbf16>
    %4 = vector.shape_cast %3 : vector<1x1x128x16xbf16> to vector<128x16xbf16>
    %c0_4 = arith.constant 0 : index
    %c0_5 = arith.constant 0 : index
    %c0_6 = arith.constant 0 : index
    %5 = vector.load %arg3[%c0_4, %c0_5, %c0_6] : memref<1x128x384xbf16, #tpu.memory_space<vmem>>, vector<1x128x384xbf16>
    %6 = vector.shape_cast %5 : vector<1x128x384xbf16> to vector<128x384xbf16>
    %c0_7 = arith.constant 0 : index
    %c0_8 = arith.constant 0 : index
    %c0_9 = arith.constant 0 : index
    %7 = vector.load %arg4[%c0_7, %c0_8, %c0_9] : memref<1x256x384xbf16, #tpu.memory_space<vmem>>, vector<1x256x384xbf16>
    %8 = vector.shape_cast %7 : vector<1x256x384xbf16> to vector<256x384xbf16>
    %c0_10 = arith.constant 0 : index
    %c0_11 = arith.constant 0 : index
    %9 = vector.load %arg8[%c0_10, %c0_11] : memref<1x128xf32, #tpu.memory_space<vmem>>, vector<1x128xf32>
    %c0_12 = arith.constant 0 : index
    %c0_13 = arith.constant 0 : index
    %c0_14 = arith.constant 0 : index
    %c0_15 = arith.constant 0 : index
    %10 = vector.load %arg9[%c0_12, %c0_13, %c0_14, %c0_15] : memref<1x3x128x32xf32, #tpu.memory_space<vmem>>, vector<1x3x128x32xf32>
    %11 = vector.shape_cast %10 : vector<1x3x128x32xf32> to vector<3x128x32xf32>
    %12 = vector.shape_cast %11 : vector<3x128x32xf32> to vector<384x32xf32>
    %c0_16 = arith.constant 0 : index
    %c0_17 = arith.constant 0 : index
    %c0_18 = arith.constant 0 : index
    %c0_19 = arith.constant 0 : index
    %13 = vector.load %arg10[%c0_16, %c0_17, %c0_18, %c0_19] : memref<1x3x128x32xf32, #tpu.memory_space<vmem>>, vector<1x3x128x32xf32>
    %14 = vector.shape_cast %13 : vector<1x3x128x32xf32> to vector<3x128x32xf32>
    %15 = vector.shape_cast %14 : vector<3x128x32xf32> to vector<384x32xf32>
    %16 = arith.truncf %12 : vector<384x32xf32> to vector<384x32xbf16>
    %17 = arith.truncf %15 : vector<384x32xf32> to vector<384x32xbf16>
    %cst = arith.constant dense<0.000000e+00> : vector<128x32xf32>
    %18 = tpu.matmul %6, %16, %cst {dimension_numbers = #tpu.dot_dimension_numbers<[1], [0], [0], [1], [0, 0, 1, 1], [], []>} : vector<128x384xbf16>, vector<384x32xbf16>, vector<128x32xf32> -> vector<128x32xf32>
    %cst_20 = arith.constant dense<0.000000e+00> : vector<256x32xf32>
    %19 = tpu.matmul %8, %16, %cst_20 {dimension_numbers = #tpu.dot_dimension_numbers<[1], [0], [0], [1], [0, 0, 1, 1], [], []>} : vector<256x384xbf16>, vector<384x32xbf16>, vector<256x32xf32> -> vector<256x32xf32>
    %cst_21 = arith.constant dense<0.000000e+00> : vector<256x32xf32>
    %20 = tpu.matmul %8, %17, %cst_21 {dimension_numbers = #tpu.dot_dimension_numbers<[1], [0], [0], [1], [0, 0, 1, 1], [], []>} : vector<256x384xbf16>, vector<384x32xbf16>, vector<256x32xf32> -> vector<256x32xf32>
    %c0_22 = arith.constant 0 : index
    %c0_23 = arith.constant 0 : index
    %21 = vector.load %arg5[%c0_22, %c0_23] : memref<16x128xbf16, #tpu.memory_space<vmem>>, vector<16x128xbf16>
    %cst_24 = arith.constant dense<0.000000e+00> : vector<128x128xf32>
    %22 = tpu.matmul %4, %21, %cst_24 {dimension_numbers = #tpu.dot_dimension_numbers<[1], [0], [0], [1], [0, 0, 1, 1], [], []>} : vector<128x16xbf16>, vector<16x128xbf16>, vector<128x128xf32> -> vector<128x128xf32>
    %23 = vector.broadcast %9 : vector<1x128xf32> to vector<128x128xf32>
    %24 = arith.addf %22, %23 : vector<128x128xf32>
    %25 = arith.truncf %18 : vector<128x32xf32> to vector<128x32xbf16>
    %c0_25 = arith.constant 0 : index
    %c0_26 = arith.constant 0 : index
    %26 = vector.load %arg6[%c0_25, %c0_26] : memref<32x128xbf16, #tpu.memory_space<vmem>>, vector<32x128xbf16>
    %cst_27 = arith.constant dense<0.000000e+00> : vector<128x128xf32>
    %27 = tpu.matmul %25, %26, %cst_27 {dimension_numbers = #tpu.dot_dimension_numbers<[1], [0], [0], [1], [0, 0, 1, 1], [], []>} : vector<128x32xbf16>, vector<32x128xbf16>, vector<128x128xf32> -> vector<128x128xf32>
    %28 = arith.addf %24, %27 : vector<128x128xf32>
    %29 = vector.extract_strided_slice %28 {offsets = [0, 0], sizes = [128, 32], strides = [1, 1]} : vector<128x128xf32> to vector<128x32xf32>
    %30 = arith.negf %29 : vector<128x32xf32>
    %31 = math.exp %30 : vector<128x32xf32>
    %cst_28 = arith.constant 1.000000e+00 : f32
    %32 = vector.broadcast %cst_28 : f32 to vector<128x32xf32>
    %33 = arith.addf %32, %31 : vector<128x32xf32>
    %34 = arith.divf %32, %33 : vector<128x32xf32>
    %35 = vector.extract_strided_slice %28 {offsets = [0, 64], sizes = [128, 32], strides = [1, 1]} : vector<128x128xf32> to vector<128x32xf32>
    %36 = arith.negf %35 : vector<128x32xf32>
    %37 = math.exp %36 : vector<128x32xf32>
    %cst_29 = arith.constant 1.000000e+00 : f32
    %38 = vector.broadcast %cst_29 : f32 to vector<128x32xf32>
    %39 = arith.addf %38, %37 : vector<128x32xf32>
    %40 = arith.divf %38, %39 : vector<128x32xf32>
    %41 = vector.extract_strided_slice %28 {offsets = [0, 96], sizes = [128, 32], strides = [1, 1]} : vector<128x128xf32> to vector<128x32xf32>
    %42 = math.tanh %41 : vector<128x32xf32>
    %43 = vector.extract_strided_slice %24 {offsets = [0, 32], sizes = [128, 32], strides = [1, 1]} : vector<128x128xf32> to vector<128x32xf32>
    %44 = arith.truncf %19 : vector<256x32xf32> to vector<256x32xbf16>
    %c0_30 = arith.constant 0 : index
    %c0_31 = arith.constant 0 : index
    %45 = vector.load %arg7[%c0_30, %c0_31] : memref<32x32xbf16, #tpu.memory_space<vmem>>, vector<32x32xbf16>
    %cst_32 = arith.constant dense<0.000000e+00> : vector<256x32xf32>
    %46 = tpu.matmul %44, %45, %cst_32 {dimension_numbers = #tpu.dot_dimension_numbers<[1], [0], [0], [1], [0, 0, 1, 1], [], []>} : vector<256x32xbf16>, vector<32x32xbf16>, vector<256x32xf32> -> vector<256x32xf32>
    %47 = vector.extract_strided_slice %46 {offsets = [0, 0], sizes = [128, 32], strides = [1, 1]} : vector<256x32xf32> to vector<128x32xf32>
    %48 = arith.addf %43, %47 : vector<128x32xf32>
    %49 = arith.negf %48 : vector<128x32xf32>
    %50 = math.exp %49 : vector<128x32xf32>
    %cst_33 = arith.constant 1.000000e+00 : f32
    %51 = vector.broadcast %cst_33 : f32 to vector<128x32xf32>
    %52 = arith.addf %51, %50 : vector<128x32xf32>
    %53 = arith.divf %51, %52 : vector<128x32xf32>
    %54 = vector.extract_strided_slice %20 {offsets = [0, 0], sizes = [128, 32], strides = [1, 1]} : vector<256x32xf32> to vector<128x32xf32>
    %55 = arith.mulf %53, %54 : vector<128x32xf32>
    %56 = vector.extract_strided_slice %46 {offsets = [128, 0], sizes = [128, 32], strides = [1, 1]} : vector<256x32xf32> to vector<128x32xf32>
    %57 = arith.addf %43, %56 : vector<128x32xf32>
    %58 = arith.negf %57 : vector<128x32xf32>
    %59 = math.exp %58 : vector<128x32xf32>
    %cst_34 = arith.constant 1.000000e+00 : f32
    %60 = vector.broadcast %cst_34 : f32 to vector<128x32xf32>
    %61 = arith.addf %60, %59 : vector<128x32xf32>
    %62 = arith.divf %60, %61 : vector<128x32xf32>
    %63 = vector.extract_strided_slice %20 {offsets = [128, 0], sizes = [128, 32], strides = [1, 1]} : vector<256x32xf32> to vector<128x32xf32>
    %64 = arith.mulf %62, %63 : vector<128x32xf32>
    %65 = arith.addf %55, %64 : vector<128x32xf32>
    %66 = arith.mulf %34, %42 : vector<128x32xf32>
    %67 = arith.addf %66, %65 : vector<128x32xf32>
    %68 = math.tanh %67 : vector<128x32xf32>
    %69 = arith.mulf %40, %68 : vector<128x32xf32>
    %c0_35 = arith.constant 0 : index
    %70 = arith.index_cast %arg1 : i32 to index
    %c0_36 = arith.constant 0 : index
    %c0_37 = arith.constant 0 : index
    %71 = vector.load %arg9[%c0_35, %70, %c0_36, %c0_37] : memref<1x3x128x32xf32, #tpu.memory_space<vmem>>, vector<1x1x128x32xf32>
    %72 = vector.shape_cast %71 : vector<1x1x128x32xf32> to vector<128x32xf32>
    %73 = vector.shape_cast %69 : vector<128x32xf32> to vector<1x1x128x32xf32>
    tpu.vector_store %arg9[%c0_35, %70, %c0_36, %c0_37], %73 {strides = array<i32>} : memref<1x3x128x32xf32, #tpu.memory_space<vmem>>, vector<1x1x128x32xf32>,
    %c0_38 = arith.constant 0 : index
    %74 = arith.index_cast %arg1 : i32 to index
    %c0_39 = arith.constant 0 : index
    %c0_40 = arith.constant 0 : index
    %75 = vector.load %arg10[%c0_38, %74, %c0_39, %c0_40] : memref<1x3x128x32xf32, #tpu.memory_space<vmem>>, vector<1x1x128x32xf32>
    %76 = vector.shape_cast %75 : vector<1x1x128x32xf32> to vector<128x32xf32>
    %77 = vector.shape_cast %67 : vector<128x32xf32> to vector<1x1x128x32xf32>
    tpu.vector_store %arg10[%c0_38, %74, %c0_39, %c0_40], %77 {strides = array<i32>} : memref<1x3x128x32xf32, #tpu.memory_space<vmem>>, vector<1x1x128x32xf32>,
    return
  }
  func.func @transform_0(%arg0: i32, %arg1: i32) -> (i32, i32, i32, i32) {
    %c0_i32 = arith.constant 0 : i32
    %c0_i32_0 = arith.constant 0 : i32
    %c0_i32_1 = arith.constant 0 : i32
    return %arg0, %arg1, %c0_i32, %c0_i32_0 : i32, i32, i32, i32
  }
  func.func @transform_1(%arg0: i32, %arg1: i32) -> (i32, i32, i32) {
    %c0_i32 = arith.constant 0 : i32
    %c0_i32_0 = arith.constant 0 : i32
    %c0_i32_1 = arith.constant 0 : i32
    return %arg1, %c0_i32, %c0_i32_0 : i32, i32, i32
  }
  func.func @transform_2(%arg0: i32, %arg1: i32) -> (i32, i32, i32) {
    %c0_i32 = arith.constant 0 : i32
    %c0_i32_0 = arith.constant 0 : i32
    %c0_i32_1 = arith.constant 0 : i32
    return %arg1, %c0_i32, %c0_i32_0 : i32, i32, i32
  }
  func.func @transform_3(%arg0: i32, %arg1: i32) -> (i32, i32) {
    %c0_i32 = arith.constant 0 : i32
    %c0_i32_0 = arith.constant 0 : i32
    %c0_i32_1 = arith.constant 0 : i32
    return %c0_i32, %c0_i32_0 : i32, i32
  }
  func.func @transform_4(%arg0: i32, %arg1: i32) -> (i32, i32) {
    %c0_i32 = arith.constant 0 : i32
    %c0_i32_0 = arith.constant 0 : i32
    %c0_i32_1 = arith.constant 0 : i32
    return %c0_i32, %c0_i32_0 : i32, i32
  }
  func.func @transform_5(%arg0: i32, %arg1: i32) -> (i32, i32) {
    %c0_i32 = arith.constant 0 : i32
    %c0_i32_0 = arith.constant 0 : i32
    %c0_i32_1 = arith.constant 0 : i32
    return %c0_i32, %c0_i32_0 : i32, i32
  }
  func.func @transform_6(%arg0: i32, %arg1: i32) -> (i32, i32) {
    %c0_i32 = arith.constant 0 : i32
    %c0_i32_0 = arith.constant 0 : i32
    %c0_i32_1 = arith.constant 0 : i32
    return %c0_i32, %c0_i32_0 : i32, i32
  }
  func.func @transform_7(%arg0: i32, %arg1: i32) -> (i32, i32, i32, i32) {
    %c0_i32 = arith.constant 0 : i32
    %c0_i32_0 = arith.constant 0 : i32
    %c0_i32_1 = arith.constant 0 : i32
    %c0_i32_2 = arith.constant 0 : i32
    return %arg0, %c0_i32, %c0_i32_0, %c0_i32_1 : i32, i32, i32, i32
  }
  func.func @transform_8(%arg0: i32, %arg1: i32) -> (i32, i32, i32, i32) {
    %c0_i32 = arith.constant 0 : i32
    %c0_i32_0 = arith.constant 0 : i32
    %c0_i32_1 = arith.constant 0 : i32
    %c0_i32_2 = arith.constant 0 : i32
    return %arg0, %c0_i32, %c0_i32_0, %c0_i32_1 : i32, i32, i32, i32
  }
}

</mosaic_0001>

<llo_original>
// kernel: tpu_custom_call.1
$region0: #{tpu_custom_call.1}
  #allocation0 [shape = 'u32[]', space=smem, size = 0x4, offset = 0x4, fixed_abs, tag = 'smem constant byte address 0x4 - core index']
  #allocation1 [shape = 'u32[144,128]{1,0:T(1,128)}', space=vmem, size = 0x12000, scoped, tag = 'internal scratch']
  %s0 = inlined_call_operand.vmem [shape: bf16[2,3,128,16], index: 0, kind: input, shape index: {}]
  %s1 = inlined_call_operand.hbm [shape: bf16[3,128,384], index: 1, kind: input, shape index: {}]
  %s2 = inlined_call_operand.hbm [shape: bf16[3,256,384], index: 2, kind: input, shape index: {}]
  %s3 = inlined_call_operand.vmem [shape: bf16[16,128], index: 3, kind: input, shape index: {}]
  %s4 = inlined_call_operand.vmem [shape: bf16[32,128], index: 4, kind: input, shape index: {}]
  %s5 = inlined_call_operand.vmem [shape: bf16[32,32], index: 5, kind: input, shape index: {}]
  %s6 = inlined_call_operand.vmem [shape: f32[1,128], index: 6, kind: input, shape index: {}]
  %s7 = inlined_call_operand.vmem [shape: f32[2,3,128,32], index: 7, kind: output, shape index: {0}]
  %s8 = inlined_call_operand.vmem [shape: f32[2,3,128,32], index: 8, kind: output, shape index: {1}]
  %9 = xla_tuple %s7, %s8
  %s10 = sld [smem:[#allocation0]]
  $region81: #{tpu_custom_call.1} parent=0
    _
  %s12 = ssub.s32 1, %s10
  %s13 = scalar_select 0, %s12, %s10
  $region1: #{tpu_custom_call.1} parent=0
    #allocation2 [shape = 'u8[196608]{0}', space=vmem, size = 0x30000, scoped, tag = 'input window, operand 1']
    #allocation3 [shape = 's32[2]{0}', space=sflag, size = 0x8, scoped, tag = 'scoped memory for tpu_custom_call.1']
    #allocation4 [shape = 'u8[393216]{0}', space=vmem, size = 0x60000, scoped, tag = 'input window, operand 2']
    #allocation5 [shape = 's32[2]{0}', space=sflag, size = 0x8, scoped, tag = 'scoped memory for tpu_custom_call.1']
    %14 = vsyncpa [#allocation3], 0
    %s15 = scalar_lea.sflag [#allocation3], 1
    %16 = vsyncpa %s15, 0
    %17 = vsyncpa [#allocation5], 0
    %s18 = scalar_lea.sflag [#allocation5], 1
    %19 = vsyncpa %s18, 0
    loop: start=0, step=1, limit=8
    $region2: #{tpu_custom_call.1} parent=1 // loop_pre_header
      _
    $region3: #{tpu_custom_call.1} parent=1 // loop_header
      %s21 = sphi 0, %s25
      %p22 = scmp.ge.s32.totalorder %s21, 8
      %s28 = sphi 0, %s40
      %s29 = sphi 0, %s36
      %s30 = sphi 0, %s28
      %s31 = sphi 0, %s29
      %s32 = sphi 0, %s30
      %s33 = sphi 0, %s31
      %s45 = sphi 0, %s47
      %s48 = sphi 0, %s45
      %s49 = sphi 0, %s48
      %s65 = sphi 0, %s49
      %s71 = sphi 0, %s73
      %s74 = sphi 0, %s71
      %s75 = sphi 0, %s74
      %s91 = sphi 0, %s75
      %s97 = sphi 0, %s99
      %s100 = sphi 0, %s97
      %s101 = sphi 0, %s100
      %s117 = sphi 0, %s101
      %s121 = sphi 0, %s121
      %s123 = sphi 0, %s121
      %s124 = sphi 0, %s123
      %s138 = sphi 0, %s124
      %s142 = sphi 0, %s142
      %s144 = sphi 0, %s142
      %s145 = sphi 0, %s144
      %s159 = sphi 0, %s145
      %s163 = sphi 0, %s163
      %s165 = sphi 0, %s163
      %s166 = sphi 0, %s165
      %s180 = sphi 0, %s166
      %s184 = sphi 0, %s184
      %s186 = sphi 0, %s184
      %s187 = sphi 0, %s186
      %s201 = sphi 0, %s187
      %s207 = sphi 0, %s209
      %s210 = sphi 0, %s207
      %s211 = sphi 0, %s210
      %s227 = sphi 0, %s211
      %s233 = sphi 0, %s235
      %s236 = sphi 0, %s233
      %s237 = sphi 0, %s236
      %s253 = sphi 0, %s237
    $region4: #{tpu_custom_call.1} parent=1 // loop_header_branch
      %24 = sbr.rel (%p22) target = $region8
    $region5: #{tpu_custom_call.1} parent=1 // loop_body
      %s26 = ssub.s32 %s21, 1
      %s27 = ssub.s32 %s21, 2
      %s34 = sadd.s32 1, %s29
      %p35 = scmp.ge.s32.totalorder %s34, 3
      %s36 = scalar_select %p35, 0, %s34
      %s37 = sadd.s32 1, %s28
      %s38 = scalar_select %p35, %s37, %s28
      %p39 = scmp.ge.s32.totalorder %s38, 2
      %s40 = scalar_select %p39, 0, %s38
      %s41 = ssub.s32 %s28, %s40
      %s42 = ssub.s32 %s29, %s36
      %s43 = sor.u32 %s41, %s42
      %p44 = scmp.eq.s32.totalorder %s43, 0
      %s46 = sadd.s32 %s45, 1
      %s47 = scalar_select %p44, %s45, %s46
      %p50 = pneg %p44
      %p51 = scmp.eq.s32.totalorder %s21, 5
      %p52 = por %p50, %p51
      %p53 = scmp.ne.s32.totalorder %s45, %s48
      %p54 = scmp.eq.s32.totalorder %s21, 0
      %p55 = por %p53, %p54
      %p56 = scmp.ne.s32.totalorder %s45, %s48
      %p57 = scmp.eq.s32.totalorder %s26, 5
      %p58 = por %p56, %p57
      %p59 = scmp.ne.s32.totalorder %s48, %s49
      %p60 = scmp.eq.s32.totalorder %s26, 0
      %p61 = por %p59, %p60
      %p62 = scmp.ne.s32.totalorder %s48, %s49
      %p63 = scmp.eq.s32.totalorder %s27, 5
      %p64 = por %p62, %p63
      %p66 = scmp.ne.s32.totalorder %s49, %s65
      %p67 = scmp.eq.s32.totalorder %s27, 0
      %p68 = por %p66, %p67
      %s69 = ssub.s32 %s29, %s36
      %p70 = scmp.eq.s32.totalorder %s69, 0
      %s72 = sadd.s32 %s71, 1
      %s73 = scalar_select %p70, %s71, %s72
      %p76 = pneg %p70
      %p77 = scmp.eq.s32.totalorder %s21, 5
      %p78 = por %p76, %p77
      %p79 = scmp.ne.s32.totalorder %s71, %s74
      %p80 = scmp.eq.s32.totalorder %s21, 0
      %p81 = por %p79, %p80
      %p82 = scmp.ne.s32.totalorder %s71, %s74
      %p83 = scmp.eq.s32.totalorder %s26, 5
      %p84 = por %p82, %p83
      %p85 = scmp.ne.s32.totalorder %s74, %s75
      %p86 = scmp.eq.s32.totalorder %s26, 0
      %p87 = por %p85, %p86
      %p88 = scmp.ne.s32.totalorder %s74, %s75
      %p89 = scmp.eq.s32.totalorder %s27, 5
      %p90 = por %p88, %p89
      %p92 = scmp.ne.s32.totalorder %s75, %s91
      %p93 = scmp.eq.s32.totalorder %s27, 0
      %p94 = por %p92, %p93
      %s95 = ssub.s32 %s29, %s36
      %p96 = scmp.eq.s32.totalorder %s95, 0
      %s98 = sadd.s32 %s97, 1
      %s99 = scalar_select %p96, %s97, %s98
      %p102 = pneg %p96
      %p103 = scmp.eq.s32.totalorder %s21, 5
      %p104 = por %p102, %p103
      %p105 = scmp.ne.s32.totalorder %s97, %s100
      %p106 = scmp.eq.s32.totalorder %s21, 0
      %p107 = por %p105, %p106
      %p108 = scmp.ne.s32.totalorder %s97, %s100
      %p109 = scmp.eq.s32.totalorder %s26, 5
      %p110 = por %p108, %p109
      %p111 = scmp.ne.s32.totalorder %s100, %s101
      %p112 = scmp.eq.s32.totalorder %s26, 0
      %p113 = por %p111, %p112
      %p114 = scmp.ne.s32.totalorder %s100, %s101
      %p115 = scmp.eq.s32.totalorder %s27, 5
      %p116 = por %p114, %p115
      %p118 = scmp.ne.s32.totalorder %s101, %s117
      %p119 = scmp.eq.s32.totalorder %s27, 0
      %p120 = por %p118, %p119
      %s122 = sadd.s32 %s121, 1
      %p125 = scmp.eq.s32.totalorder %s21, 5
      %p126 = scmp.ne.s32.totalorder %s121, %s123
      %p127 = scmp.eq.s32.totalorder %s21, 0
      %p128 = por %p126, %p127
      %p129 = scmp.ne.s32.totalorder %s121, %s123
      %p130 = scmp.eq.s32.totalorder %s26, 5
      %p131 = por %p129, %p130
      %p132 = scmp.ne.s32.totalorder %s123, %s124
      %p133 = scmp.eq.s32.totalorder %s26, 0
      %p134 = por %p132, %p133
      %p135 = scmp.ne.s32.totalorder %s123, %s124
      %p136 = scmp.eq.s32.totalorder %s27, 5
      %p137 = por %p135, %p136
      %p139 = scmp.ne.s32.totalorder %s124, %s138
      %p140 = scmp.eq.s32.totalorder %s27, 0
      %p141 = por %p139, %p140
      %s143 = sadd.s32 %s142, 1
      %p146 = scmp.eq.s32.totalorder %s21, 5
      %p147 = scmp.ne.s32.totalorder %s142, %s144
      %p148 = scmp.eq.s32.totalorder %s21, 0
      %p149 = por %p147, %p148
      %p150 = scmp.ne.s32.totalorder %s142, %s144
      %p151 = scmp.eq.s32.totalorder %s26, 5
      %p152 = por %p150, %p151
      %p153 = scmp.ne.s32.totalorder %s144, %s145
      %p154 = scmp.eq.s32.totalorder %s26, 0
      %p155 = por %p153, %p154
      %p156 = scmp.ne.s32.totalorder %s144, %s145
      %p157 = scmp.eq.s32.totalorder %s27, 5
      %p158 = por %p156, %p157
      %p160 = scmp.ne.s32.totalorder %s145, %s159
      %p161 = scmp.eq.s32.totalorder %s27, 0
      %p162 = por %p160, %p161
      %s164 = sadd.s32 %s163, 1
      %p167 = scmp.eq.s32.totalorder %s21, 5
      %p168 = scmp.ne.s32.totalorder %s163, %s165
      %p169 = scmp.eq.s32.totalorder %s21, 0
      %p170 = por %p168, %p169
      %p171 = scmp.ne.s32.totalorder %s163, %s165
      %p172 = scmp.eq.s32.totalorder %s26, 5
      %p173 = por %p171, %p172
      %p174 = scmp.ne.s32.totalorder %s165, %s166
      %p175 = scmp.eq.s32.totalorder %s26, 0
      %p176 = por %p174, %p175
      %p177 = scmp.ne.s32.totalorder %s165, %s166
      %p178 = scmp.eq.s32.totalorder %s27, 5
      %p179 = por %p177, %p178
      %p181 = scmp.ne.s32.totalorder %s166, %s180
      %p182 = scmp.eq.s32.totalorder %s27, 0
      %p183 = por %p181, %p182
      %s185 = sadd.s32 %s184, 1
      %p188 = scmp.eq.s32.totalorder %s21, 5
      %p189 = scmp.ne.s32.totalorder %s184, %s186
      %p190 = scmp.eq.s32.totalorder %s21, 0
      %p191 = por %p189, %p190
      %p192 = scmp.ne.s32.totalorder %s184, %s186
      %p193 = scmp.eq.s32.totalorder %s26, 5
      %p194 = por %p192, %p193
      %p195 = scmp.ne.s32.totalorder %s186, %s187
      %p196 = scmp.eq.s32.totalorder %s26, 0
      %p197 = por %p195, %p196
      %p198 = scmp.ne.s32.totalorder %s186, %s187
      %p199 = scmp.eq.s32.totalorder %s27, 5
      %p200 = por %p198, %p199
      %p202 = scmp.ne.s32.totalorder %s187, %s201
      %p203 = scmp.eq.s32.totalorder %s27, 0
      %p204 = por %p202, %p203
      %s205 = ssub.s32 %s28, %s40
      %p206 = scmp.eq.s32.totalorder %s205, 0
      %s208 = sadd.s32 %s207, 1
      %s209 = scalar_select %p206, %s207, %s208
      %p212 = pneg %p206
      %p213 = scmp.eq.s32.totalorder %s21, 5
      %p214 = por %p212, %p213
      %p215 = scmp.ne.s32.totalorder %s207, %s210
      %p216 = scmp.eq.s32.totalorder %s21, 0
      %p217 = por %p215, %p216
      %p218 = scmp.ne.s32.totalorder %s207, %s210
      %p219 = scmp.eq.s32.totalorder %s26, 5
      %p220 = por %p218, %p219
      %p221 = scmp.ne.s32.totalorder %s210, %s211
      %p222 = scmp.eq.s32.totalorder %s26, 0
      %p223 = por %p221, %p222
      %p224 = scmp.ne.s32.totalorder %s210, %s211
      %p225 = scmp.eq.s32.totalorder %s27, 5
      %p226 = por %p224, %p225
      %p228 = scmp.ne.s32.totalorder %s211, %s227
      %p229 = scmp.eq.s32.totalorder %s27, 0
      %p230 = por %p228, %p229
      %s231 = ssub.s32 %s28, %s40
      %p232 = scmp.eq.s32.totalorder %s231, 0
      %s234 = sadd.s32 %s233, 1
      %s235 = scalar_select %p232, %s233, %s234
      %p238 = pneg %p232
      %p239 = scmp.eq.s32.totalorder %s21, 5
      %p240 = por %p238, %p239
      %p241 = scmp.ne.s32.totalorder %s233, %s236
      %p242 = scmp.eq.s32.totalorder %s21, 0
      %p243 = por %p241, %p242
      %p244 = scmp.ne.s32.totalorder %s233, %s236
      %p245 = scmp.eq.s32.totalorder %s26, 5
      %p246 = por %p244, %p245
      %p247 = scmp.ne.s32.totalorder %s236, %s237
      %p248 = scmp.eq.s32.totalorder %s26, 0
      %p249 = por %p247, %p248
      %p250 = scmp.ne.s32.totalorder %s236, %s237
      %p251 = scmp.eq.s32.totalorder %s27, 5
      %p252 = por %p250, %p251
      %p254 = scmp.ne.s32.totalorder %s237, %s253
      %p255 = scmp.eq.s32.totalorder %s27, 0
      %p256 = por %p254, %p255
      %p257 = scmp.le.s32.totalorder 1, %s21
      %p258 = scmp.lt.s32.totalorder %s21, 7
      %p259 = pnand %p257, %p258
      %p260 = pneg %p259
      // Predicated region
      $region9: #{tpu_custom_call.1} parent=5 // pred_check
        _
      $region10: #{tpu_custom_call.1} parent=5 // pred_check_branch
        %262 = sbr.rel (%p259) target = $region12
      $region11: #{tpu_custom_call.1} parent=5 // pred_region
        %s263 = ssub.s32 %s21, 1
        // Predicated region
        $region13: #{tpu_custom_call.1} parent=11 // pred_check
          %p264 = pneg %p134
        $region14: #{tpu_custom_call.1} parent=11 // pred_check_branch
          %266 = sbr.rel (%p264) target = $region16
        $region15: #{tpu_custom_call.1} parent=11 // pred_region
          _
        $region16: #{tpu_custom_call.1} parent=11 // pred_fallthru
          _
        // Predicated region
        $region17: #{tpu_custom_call.1} parent=11 // pred_check
          %p267 = pneg %p155
        $region18: #{tpu_custom_call.1} parent=11 // pred_check_branch
          %269 = sbr.rel (%p267) target = $region20
        $region19: #{tpu_custom_call.1} parent=11 // pred_region
          _
        $region20: #{tpu_custom_call.1} parent=11 // pred_fallthru
          _
        // Predicated region
        $region21: #{tpu_custom_call.1} parent=11 // pred_check
          %p270 = pneg %p176
        $region22: #{tpu_custom_call.1} parent=11 // pred_check_branch
          %272 = sbr.rel (%p270) target = $region24
        $region23: #{tpu_custom_call.1} parent=11 // pred_region
          _
        $region24: #{tpu_custom_call.1} parent=11 // pred_fallthru
          _
        // Predicated region
        $region25: #{tpu_custom_call.1} parent=11 // pred_check
          %p273 = pneg %p197
        $region26: #{tpu_custom_call.1} parent=11 // pred_check_branch
          %275 = sbr.rel (%p273) target = $region28
        $region27: #{tpu_custom_call.1} parent=11 // pred_region
          _
        $region28: #{tpu_custom_call.1} parent=11 // pred_fallthru
          _
      $region12: #{tpu_custom_call.1} parent=5 // pred_fallthru
        _
      %p276 = scmp.lt.s32.totalorder %s21, 6
      // Predicated region
      $region29: #{tpu_custom_call.1} parent=5 // pred_check
        %p277 = pneg %p276
      $region30: #{tpu_custom_call.1} parent=5 // pred_check_branch
        %279 = sbr.rel (%p277) target = $region32
      $region31: #{tpu_custom_call.1} parent=5 // pred_region
        // Predicated region
        $region33: #{tpu_custom_call.1} parent=31 // pred_check
          %p280 = pneg %p55
        $region34: #{tpu_custom_call.1} parent=31 // pred_check_branch
          %282 = sbr.rel (%p280) target = $region36
        $region35: #{tpu_custom_call.1} parent=31 // pred_region
          %p283 = scmp.lt.s32.totalorder %s28, 1
          %s284 = scalar_select %p283, %s28, 1
          %p285 = scmp.lt.s32.totalorder %s29, 2
          %s286 = scalar_select %p285, %s29, 2
          %s287 = smul.addr %s286, 16
          %s288 = smul.addr %s284, 48
          %s289 = sadd.s32 %s287, %s288
          %s290 = smul.addr %s289, 4
          %s291 = scalar_lea.vmem %s0, %s290
        $region36: #{tpu_custom_call.1} parent=31 // pred_fallthru
          _
        // Predicated region
        $region37: #{tpu_custom_call.1} parent=31 // pred_check
          %p292 = pneg %p81
        $region38: #{tpu_custom_call.1} parent=31 // pred_check_branch
          %294 = sbr.rel (%p292) target = $region40
        $region39: #{tpu_custom_call.1} parent=31 // pred_region
          %s295 = sand.u32 %s71, 1
          %s296 = scalar_lea.sflag [#allocation3], %s295
          %s297 = sand.u32 %s71, 1
          %s298 = smul.addr %s297, 192
          %s299 = scalar_lea.vmem [#allocation2], %s298
          %s301 = ssub.s32 3072, 3072
          %302 = vsyncadd %s296, %s301
          %s303 = smul.addr %s29, 48
          %s304 = smul.addr %s303, 64
          %s305 = scalar_lea.hbm %s1, %s304
          %s306 = sshll.u32 %s299, 4
          %s307 = int_to_ptr.vmem [resolvable:$true] %s306
          %312 = dma.hbm_to_vmem [thread:$0]  %s305, 3072, %s307, %s296, 192, 192, 12
        $region40: #{tpu_custom_call.1} parent=31 // pred_fallthru
          _
        // Predicated region
        $region41: #{tpu_custom_call.1} parent=31 // pred_check
          %p313 = pneg %p107
        $region42: #{tpu_custom_call.1} parent=31 // pred_check_branch
          %315 = sbr.rel (%p313) target = $region44
        $region43: #{tpu_custom_call.1} parent=31 // pred_region
          %s316 = sand.u32 %s97, 1
          %s317 = scalar_lea.sflag [#allocation5], %s316
          %s318 = sand.u32 %s97, 1
          %s319 = smul.addr %s318, 384
          %s320 = scalar_lea.vmem [#allocation4], %s319
          %s322 = ssub.s32 6144, 6144
          %323 = vsyncadd %s317, %s322
          %s324 = smul.addr %s29, 96
          %s325 = smul.addr %s324, 64
          %s326 = scalar_lea.hbm %s2, %s325
          %s327 = sshll.u32 %s320, 4
          %s328 = int_to_ptr.vmem [resolvable:$true] %s327
          %333 = dma.hbm_to_vmem [thread:$0]  %s326, 6144, %s328, %s317, 192, 192, 12
        $region44: #{tpu_custom_call.1} parent=31 // pred_fallthru
          _
      $region32: #{tpu_custom_call.1} parent=5 // pred_fallthru
        _
      %p334 = scmp.le.s32.totalorder 1, %s21
      %p335 = scmp.lt.s32.totalorder %s21, 7
      %p336 = pnand %p334, %p335
      %p337 = pneg %p336
      // Predicated region
      $region45: #{tpu_custom_call.1} parent=5 // pred_check
        _
      $region46: #{tpu_custom_call.1} parent=5 // pred_check_branch
        %339 = sbr.rel (%p336) target = $region48
      $region47: #{tpu_custom_call.1} parent=5 // pred_region
        %s340 = ssub.s32 %s21, 1
        %s341 = sand.u32 %s74, 1
        %s342 = scalar_lea.sflag [#allocation3], %s341
        %s343 = sand.u32 %s74, 1
        %s344 = smul.addr %s343, 192
        %s345 = scalar_lea.vmem [#allocation2], %s344
        // Predicated region
        $region49: #{tpu_custom_call.1} parent=47 // pred_check
          %p346 = pneg %p87
        $region50: #{tpu_custom_call.1} parent=47 // pred_check_branch
          %348 = sbr.rel (%p346) target = $region52
        $region51: #{tpu_custom_call.1} parent=47 // pred_region
          %349 = dma.done %s342, 3072
        $region52: #{tpu_custom_call.1} parent=47 // pred_fallthru
          _
        %s350 = sand.u32 %s100, 1
        %s351 = scalar_lea.sflag [#allocation5], %s350
        %s352 = sand.u32 %s100, 1
        %s353 = smul.addr %s352, 384
        %s354 = scalar_lea.vmem [#allocation4], %s353
        // Predicated region
        $region53: #{tpu_custom_call.1} parent=47 // pred_check
          %p355 = pneg %p113
        $region54: #{tpu_custom_call.1} parent=47 // pred_check_branch
          %357 = sbr.rel (%p355) target = $region56
        $region55: #{tpu_custom_call.1} parent=47 // pred_region
          %358 = dma.done %s351, 6144
        $region56: #{tpu_custom_call.1} parent=47 // pred_fallthru
          _
        %p359 = scmp.lt.s32.totalorder %s30, 1
        %s360 = scalar_select %p359, %s30, 1
        %p361 = scmp.lt.s32.totalorder %s31, 2
        %s362 = scalar_select %p361, %s31, 2
        %s363 = smul.addr %s362, 16
        %s364 = smul.addr %s360, 48
        %s365 = sadd.s32 %s363, %s364
        %s366 = smul.addr %s365, 4
        %s367 = scalar_lea.vmem %s0, %s366
        %p368 = pneg %p61
        %p369 = pneg %p58
        %s370 = sand.u32 %s74, 1
        %s371 = scalar_lea.sflag [#allocation3], %s370
        %s372 = sand.u32 %s74, 1
        %s373 = smul.addr %s372, 192
        %s374 = scalar_lea.vmem [#allocation2], %s373
        %p375 = pneg %p87
        %p376 = pneg %p84
        %s377 = sand.u32 %s100, 1
        %s378 = scalar_lea.sflag [#allocation5], %s377
        %s379 = sand.u32 %s100, 1
        %s380 = smul.addr %s379, 384
        %s381 = scalar_lea.vmem [#allocation4], %s380
        %p382 = pneg %p113
        %p383 = pneg %p110
        %p384 = pneg %p134
        %p385 = pneg %p131
        %p386 = pneg %p155
        %p387 = pneg %p152
        %p388 = pneg %p176
        %p389 = pneg %p173
        %p390 = pneg %p197
        %p391 = pneg %p194
        %p392 = pneg %p223
        %p393 = pneg %p220
        %p394 = scmp.lt.s32.totalorder %s30, 1
        %s395 = scalar_select %p394, %s30, 1
        %s396 = smul.addr %s395, 48
        %s397 = smul.addr %s396, 8
        %s398 = scalar_lea.vmem %s7, %s397
        %p399 = pneg %p249
        %p400 = pneg %p246
        %p401 = scmp.lt.s32.totalorder %s30, 1
        %s402 = scalar_select %p401, %s30, 1
        %s403 = smul.addr %s402, 48
        %s404 = smul.addr %s403, 8
        %s405 = scalar_lea.vmem %s8, %s404
        %p406 = scmp.lt.s32.totalorder %s30, 1
        %s407 = scalar_select %p406, %s30, 1
        %p408 = scmp.lt.s32.totalorder %s31, 2
        %s409 = scalar_select %p408, %s31, 2
        %s410 = smul.addr %s409, 16
        %s411 = smul.addr %s407, 48
        %s412 = sadd.s32 %s410, %s411
        %s413 = smul.addr %s412, 4
        %s414 = scalar_lea.vmem %s0, %s413
        %p415 = scmp.lt.s32.totalorder %s30, 1
        %s416 = scalar_select %p415, %s30, 1
        %s417 = smul.addr %s416, 48
        %s418 = smul.addr %s417, 8
        %s419 = scalar_lea.vmem %s7, %s418
        %p420 = scmp.lt.s32.totalorder %s30, 1
        %s421 = scalar_select %p420, %s30, 1
        %s422 = smul.addr %s421, 48
        %s423 = smul.addr %s422, 8
        %s424 = scalar_lea.vmem %s8, %s423
        %p426 = scmp.eq.s32.totalorder %s31, 0
        // Predicated region
        $region57: #{tpu_custom_call.1} parent=47 // pred_check
          %p427 = pneg %p426
        $region58: #{tpu_custom_call.1} parent=47 // pred_check_branch
          %429 = sbr.rel (%p427) target = $region60
        $region59: #{tpu_custom_call.1} parent=47 // pred_region
          %vm430 = vcmask 261120
          %431 = vst.msk [vmem:[%s419] sm:$0xff] %vm430, 0.0
          %432 = vst.msk [vmem:[%s419 + $0x8] sm:$0xff] %vm430, 0.0
          %433 = vst.msk [vmem:[%s419 + $0x10] sm:$0xff] %vm430, 0.0
          %434 = vst.msk [vmem:[%s419 + $0x18] sm:$0xff] %vm430, 0.0
          %435 = vst.msk [vmem:[%s419 + $0x20] sm:$0xff] %vm430, 0.0
          %436 = vst.msk [vmem:[%s419 + $0x28] sm:$0xff] %vm430, 0.0
          %437 = vst.msk [vmem:[%s419 + $0x30] sm:$0xff] %vm430, 0.0
          %438 = vst.msk [vmem:[%s419 + $0x38] sm:$0xff] %vm430, 0.0
          %439 = vst.msk [vmem:[%s419 + $0x40] sm:$0xff] %vm430, 0.0
          %440 = vst.msk [vmem:[%s419 + $0x48] sm:$0xff] %vm430, 0.0
          %441 = vst.msk [vmem:[%s419 + $0x50] sm:$0xff] %vm430, 0.0
          %442 = vst.msk [vmem:[%s419 + $0x58] sm:$0xff] %vm430, 0.0
          %443 = vst.msk [vmem:[%s419 + $0x60] sm:$0xff] %vm430, 0.0
          %444 = vst.msk [vmem:[%s419 + $0x68] sm:$0xff] %vm430, 0.0
          %445 = vst.msk [vmem:[%s419 + $0x70] sm:$0xff] %vm430, 0.0
          %446 = vst.msk [vmem:[%s419 + $0x78] sm:$0xff] %vm430, 0.0
          %447 = vst.msk [vmem:[%s419 + $0x80] sm:$0xff] %vm430, 0.0
          %448 = vst.msk [vmem:[%s419 + $0x88] sm:$0xff] %vm430, 0.0
          %449 = vst.msk [vmem:[%s419 + $0x90] sm:$0xff] %vm430, 0.0
          %450 = vst.msk [vmem:[%s419 + $0x98] sm:$0xff] %vm430, 0.0
          %451 = vst.msk [vmem:[%s419 + $0xa0] sm:$0xff] %vm430, 0.0
          %452 = vst.msk [vmem:[%s419 + $0xa8] sm:$0xff] %vm430, 0.0
          %453 = vst.msk [vmem:[%s419 + $0xb0] sm:$0xff] %vm430, 0.0
          %454 = vst.msk [vmem:[%s419 + $0xb8] sm:$0xff] %vm430, 0.0
          %455 = vst.msk [vmem:[%s419 + $0xc0] sm:$0xff] %vm430, 0.0
          %456 = vst.msk [vmem:[%s419 + $0xc8] sm:$0xff] %vm430, 0.0
          %457 = vst.msk [vmem:[%s419 + $0xd0] sm:$0xff] %vm430, 0.0
          %458 = vst.msk [vmem:[%s419 + $0xd8] sm:$0xff] %vm430, 0.0
          %459 = vst.msk [vmem:[%s419 + $0xe0] sm:$0xff] %vm430, 0.0
          %460 = vst.msk [vmem:[%s419 + $0xe8] sm:$0xff] %vm430, 0.0
          %461 = vst.msk [vmem:[%s419 + $0xf0] sm:$0xff] %vm430, 0.0
          %462 = vst.msk [vmem:[%s419 + $0xf8] sm:$0xff] %vm430, 0.0
          %463 = vst.msk [vmem:[%s419 + $0x100] sm:$0xff] %vm430, 0.0
          %464 = vst.msk [vmem:[%s419 + $0x108] sm:$0xff] %vm430, 0.0
          %465 = vst.msk [vmem:[%s419 + $0x110] sm:$0xff] %vm430, 0.0
          %466 = vst.msk [vmem:[%s419 + $0x118] sm:$0xff] %vm430, 0.0
          %467 = vst.msk [vmem:[%s419 + $0x120] sm:$0xff] %vm430, 0.0
          %468 = vst.msk [vmem:[%s419 + $0x128] sm:$0xff] %vm430, 0.0
          %469 = vst.msk [vmem:[%s419 + $0x130] sm:$0xff] %vm430, 0.0
          %470 = vst.msk [vmem:[%s419 + $0x138] sm:$0xff] %vm430, 0.0
          %471 = vst.msk [vmem:[%s419 + $0x140] sm:$0xff] %vm430, 0.0
          %472 = vst.msk [vmem:[%s419 + $0x148] sm:$0xff] %vm430, 0.0
          %473 = vst.msk [vmem:[%s419 + $0x150] sm:$0xff] %vm430, 0.0
          %474 = vst.msk [vmem:[%s419 + $0x158] sm:$0xff] %vm430, 0.0
          %475 = vst.msk [vmem:[%s419 + $0x160] sm:$0xff] %vm430, 0.0
          %476 = vst.msk [vmem:[%s419 + $0x168] sm:$0xff] %vm430, 0.0
          %477 = vst.msk [vmem:[%s419 + $0x170] sm:$0xff] %vm430, 0.0
          %478 = vst.msk [vmem:[%s419 + $0x178] sm:$0xff] %vm430, 0.0
          %479 = vst.msk [vmem:[%s424] sm:$0xff] %vm430, 0.0
          %480 = vst.msk [vmem:[%s424 + $0x8] sm:$0xff] %vm430, 0.0
          %481 = vst.msk [vmem:[%s424 + $0x10] sm:$0xff] %vm430, 0.0
          %482 = vst.msk [vmem:[%s424 + $0x18] sm:$0xff] %vm430, 0.0
          %483 = vst.msk [vmem:[%s424 + $0x20] sm:$0xff] %vm430, 0.0
          %484 = vst.msk [vmem:[%s424 + $0x28] sm:$0xff] %vm430, 0.0
          %485 = vst.msk [vmem:[%s424 + $0x30] sm:$0xff] %vm430, 0.0
          %486 = vst.msk [vmem:[%s424 + $0x38] sm:$0xff] %vm430, 0.0
          %487 = vst.msk [vmem:[%s424 + $0x40] sm:$0xff] %vm430, 0.0
          %488 = vst.msk [vmem:[%s424 + $0x48] sm:$0xff] %vm430, 0.0
          %489 = vst.msk [vmem:[%s424 + $0x50] sm:$0xff] %vm430, 0.0
          %490 = vst.msk [vmem:[%s424 + $0x58] sm:$0xff] %vm430, 0.0
          %491 = vst.msk [vmem:[%s424 + $0x60] sm:$0xff] %vm430, 0.0
          %492 = vst.msk [vmem:[%s424 + $0x68] sm:$0xff] %vm430, 0.0
          %493 = vst.msk [vmem:[%s424 + $0x70] sm:$0xff] %vm430, 0.0
          %494 = vst.msk [vmem:[%s424 + $0x78] sm:$0xff] %vm430, 0.0
          %495 = vst.msk [vmem:[%s424 + $0x80] sm:$0xff] %vm430, 0.0
          %496 = vst.msk [vmem:[%s424 + $0x88] sm:$0xff] %vm430, 0.0
          %497 = vst.msk [vmem:[%s424 + $0x90] sm:$0xff] %vm430, 0.0
          %498 = vst.msk [vmem:[%s424 + $0x98] sm:$0xff] %vm430, 0.0
          %499 = vst.msk [vmem:[%s424 + $0xa0] sm:$0xff] %vm430, 0.0
          %500 = vst.msk [vmem:[%s424 + $0xa8] sm:$0xff] %vm430, 0.0
          %501 = vst.msk [vmem:[%s424 + $0xb0] sm:$0xff] %vm430, 0.0
          %502 = vst.msk [vmem:[%s424 + $0xb8] sm:$0xff] %vm430, 0.0
          %503 = vst.msk [vmem:[%s424 + $0xc0] sm:$0xff] %vm430, 0.0
          %504 = vst.msk [vmem:[%s424 + $0xc8] sm:$0xff] %vm430, 0.0
          %505 = vst.msk [vmem:[%s424 + $0xd0] sm:$0xff] %vm430, 0.0
          %506 = vst.msk [vmem:[%s424 + $0xd8] sm:$0xff] %vm430, 0.0
          %507 = vst.msk [vmem:[%s424 + $0xe0] sm:$0xff] %vm430, 0.0
          %508 = vst.msk [vmem:[%s424 + $0xe8] sm:$0xff] %vm430, 0.0
          %509 = vst.msk [vmem:[%s424 + $0xf0] sm:$0xff] %vm430, 0.0
          %510 = vst.msk [vmem:[%s424 + $0xf8] sm:$0xff] %vm430, 0.0
          %511 = vst.msk [vmem:[%s424 + $0x100] sm:$0xff] %vm430, 0.0
          %512 = vst.msk [vmem:[%s424 + $0x108] sm:$0xff] %vm430, 0.0
          %513 = vst.msk [vmem:[%s424 + $0x110] sm:$0xff] %vm430, 0.0
          %514 = vst.msk [vmem:[%s424 + $0x118] sm:$0xff] %vm430, 0.0
          %515 = vst.msk [vmem:[%s424 + $0x120] sm:$0xff] %vm430, 0.0
          %516 = vst.msk [vmem:[%s424 + $0x128] sm:$0xff] %vm430, 0.0
          %517 = vst.msk [vmem:[%s424 + $0x130] sm:$0xff] %vm430, 0.0
          %518 = vst.msk [vmem:[%s424 + $0x138] sm:$0xff] %vm430, 0.0
          %519 = vst.msk [vmem:[%s424 + $0x140] sm:$0xff] %vm430, 0.0
          %520 = vst.msk [vmem:[%s424 + $0x148] sm:$0xff] %vm430, 0.0
          %521 = vst.msk [vmem:[%s424 + $0x150] sm:$0xff] %vm430, 0.0
          %522 = vst.msk [vmem:[%s424 + $0x158] sm:$0xff] %vm430, 0.0
          %523 = vst.msk [vmem:[%s424 + $0x160] sm:$0xff] %vm430, 0.0
          %524 = vst.msk [vmem:[%s424 + $0x168] sm:$0xff] %vm430, 0.0
          %525 = vst.msk [vmem:[%s424 + $0x170] sm:$0xff] %vm430, 0.0
          %526 = vst.msk [vmem:[%s424 + $0x178] sm:$0xff] %vm430, 0.0
        $region60: #{tpu_custom_call.1} parent=47 // pred_fallthru
          _
        %v527 = vld [vmem:[%s414] sm:$0xf]
        %v528 = vld [vmem:[%s414 + $0x4] sm:$0xf]
        %v529 = vld [vmem:[%s414 + $0x8] sm:$0xf]
        %v530 = vld [vmem:[%s414 + $0xc] sm:$0xf]
        %v531 = vld [vmem:[%s414 + $0x10] sm:$0xf]
        %v532 = vld [vmem:[%s414 + $0x14] sm:$0xf]
        %v533 = vld [vmem:[%s414 + $0x18] sm:$0xf]
        %v534 = vld [vmem:[%s414 + $0x1c] sm:$0xf]
        %v535 = vld [vmem:[%s414 + $0x20] sm:$0xf]
        %v536 = vld [vmem:[%s414 + $0x24] sm:$0xf]
        %v537 = vld [vmem:[%s414 + $0x28] sm:$0xf]
        %v538 = vld [vmem:[%s414 + $0x2c] sm:$0xf]
        %v539 = vld [vmem:[%s414 + $0x30] sm:$0xf]
        %v540 = vld [vmem:[%s414 + $0x34] sm:$0xf]
        %v541 = vld [vmem:[%s414 + $0x38] sm:$0xf]
        %v542 = vld [vmem:[%s414 + $0x3c] sm:$0xf]
        %v543 = vld [vmem:[%s345] sm:$0xff]
        %v544 = vld [vmem:[%s345 + $0x8] sm:$0xf]
        %v545 = vld [vmem:[%s345 + $0xc] sm:$0xff]
        %v546 = vld [vmem:[%s345 + $0x14] sm:$0xf]
        %v547 = vld [vmem:[%s345 + $0x18] sm:$0xff]
        %v548 = vld [vmem:[%s345 + $0x20] sm:$0xf]
        %v549 = vld [vmem:[%s345 + $0x24] sm:$0xff]
        %v550 = vld [vmem:[%s345 + $0x2c] sm:$0xf]
        %v551 = vld [vmem:[%s345 + $0x30] sm:$0xff]
        %v552 = vld [vmem:[%s345 + $0x38] sm:$0xf]
        %v553 = vld [vmem:[%s345 + $0x3c] sm:$0xff]
        %v554 = vld [vmem:[%s345 + $0x44] sm:$0xf]
        %v555 = vld [vmem:[%s345 + $0x48] sm:$0xff]
        %v556 = vld [vmem:[%s345 + $0x50] sm:$0xf]
        %v557 = vld [vmem:[%s345 + $0x54] sm:$0xff]
        %v558 = vld [vmem:[%s345 + $0x5c] sm:$0xf]
        %v559 = vld [vmem:[%s345 + $0x60] sm:$0xff]
        %v560 = vld [vmem:[%s345 + $0x68] sm:$0xf]
        %v561 = vld [vmem:[%s345 + $0x6c] sm:$0xff]
        %v562 = vld [vmem:[%s345 + $0x74] sm:$0xf]
        %v563 = vld [vmem:[%s345 + $0x78] sm:$0xff]
        %v564 = vld [vmem:[%s345 + $0x80] sm:$0xf]
        %v565 = vld [vmem:[%s345 + $0x84] sm:$0xff]
        %v566 = vld [vmem:[%s345 + $0x8c] sm:$0xf]
        %v567 = vld [vmem:[%s345 + $0x90] sm:$0xff]
        %v568 = vld [vmem:[%s345 + $0x98] sm:$0xf]
        %v569 = vld [vmem:[%s345 + $0x9c] sm:$0xff]
        %v570 = vld [vmem:[%s345 + $0xa4] sm:$0xf]
        %v571 = vld [vmem:[%s345 + $0xa8] sm:$0xff]
        %v572 = vld [vmem:[%s345 + $0xb0] sm:$0xf]
        %v573 = vld [vmem:[%s345 + $0xb4] sm:$0xff]
        %v574 = vld [vmem:[%s345 + $0xbc] sm:$0xf]
        %v575 = vld [vmem:[%s354] sm:$0xff]
        %v576 = vld [vmem:[%s354 + $0x8] sm:$0xf]
        %v577 = vld [vmem:[%s354 + $0xc] sm:$0xff]
        %v578 = vld [vmem:[%s354 + $0x14] sm:$0xf]
        %v579 = vld [vmem:[%s354 + $0x18] sm:$0xff]
        %v580 = vld [vmem:[%s354 + $0x20] sm:$0xf]
        %v581 = vld [vmem:[%s354 + $0x24] sm:$0xff]
        %v582 = vld [vmem:[%s354 + $0x2c] sm:$0xf]
        %v583 = vld [vmem:[%s354 + $0x30] sm:$0xff]
        %v584 = vld [vmem:[%s354 + $0x38] sm:$0xf]
        %v585 = vld [vmem:[%s354 + $0x3c] sm:$0xff]
        %v586 = vld [vmem:[%s354 + $0x44] sm:$0xf]
        %v587 = vld [vmem:[%s354 + $0x48] sm:$0xff]
        %v588 = vld [vmem:[%s354 + $0x50] sm:$0xf]
        %v589 = vld [vmem:[%s354 + $0x54] sm:$0xff]
        %v590 = vld [vmem:[%s354 + $0x5c] sm:$0xf]
        %v591 = vld [vmem:[%s354 + $0x60] sm:$0xff]
        %v592 = vld [vmem:[%s354 + $0x68] sm:$0xf]
        %v593 = vld [vmem:[%s354 + $0x6c] sm:$0xff]
        %v594 = vld [vmem:[%s354 + $0x74] sm:$0xf]
        %v595 = vld [vmem:[%s354 + $0x78] sm:$0xff]
        %v596 = vld [vmem:[%s354 + $0x80] sm:$0xf]
        %v597 = vld [vmem:[%s354 + $0x84] sm:$0xff]
        %v598 = vld [vmem:[%s354 + $0x8c] sm:$0xf]
        %v599 = vld [vmem:[%s354 + $0x90] sm:$0xff]
        %v600 = vld [vmem:[%s354 + $0x98] sm:$0xf]
        %v601 = vld [vmem:[%s354 + $0x9c] sm:$0xff]
        %v602 = vld [vmem:[%s354 + $0xa4] sm:$0xf]
        %v603 = vld [vmem:[%s354 + $0xa8] sm:$0xff]
        %v604 = vld [vmem:[%s354 + $0xb0] sm:$0xf]
        %v605 = vld [vmem:[%s354 + $0xb4] sm:$0xff]
        %v606 = vld [vmem:[%s354 + $0xbc] sm:$0xf]
        %v607 = vld [vmem:[%s354 + $0xc0] sm:$0xff]
        %v608 = vld [vmem:[%s354 + $0xc8] sm:$0xf]
        %v609 = vld [vmem:[%s354 + $0xcc] sm:$0xff]
        %v610 = vld [vmem:[%s354 + $0xd4] sm:$0xf]
        %v611 = vld [vmem:[%s354 + $0xd8] sm:$0xff]
        %v612 = vld [vmem:[%s354 + $0xe0] sm:$0xf]
        %v613 = vld [vmem:[%s354 + $0xe4] sm:$0xff]
        %v614 = vld [vmem:[%s354 + $0xec] sm:$0xf]
        %v615 = vld [vmem:[%s354 + $0xf0] sm:$0xff]
        %v616 = vld [vmem:[%s354 + $0xf8] sm:$0xf]
        %v617 = vld [vmem:[%s354 + $0xfc] sm:$0xff]
        %v618 = vld [vmem:[%s354 + $0x104] sm:$0xf]
        %v619 = vld [vmem:[%s354 + $0x108] sm:$0xff]
        %v620 = vld [vmem:[%s354 + $0x110] sm:$0xf]
        %v621 = vld [vmem:[%s354 + $0x114] sm:$0xff]
        %v622 = vld [vmem:[%s354 + $0x11c] sm:$0xf]
        %v623 = vld [vmem:[%s354 + $0x120] sm:$0xff]
        %v624 = vld [vmem:[%s354 + $0x128] sm:$0xf]
        %v625 = vld [vmem:[%s354 + $0x12c] sm:$0xff]
        %v626 = vld [vmem:[%s354 + $0x134] sm:$0xf]
        %v627 = vld [vmem:[%s354 + $0x138] sm:$0xff]
        %v628 = vld [vmem:[%s354 + $0x140] sm:$0xf]
        %v629 = vld [vmem:[%s354 + $0x144] sm:$0xff]
        %v630 = vld [vmem:[%s354 + $0x14c] sm:$0xf]
        %v631 = vld [vmem:[%s354 + $0x150] sm:$0xff]
        %v632 = vld [vmem:[%s354 + $0x158] sm:$0xf]
        %v633 = vld [vmem:[%s354 + $0x15c] sm:$0xff]
        %v634 = vld [vmem:[%s354 + $0x164] sm:$0xf]
        %v635 = vld [vmem:[%s354 + $0x168] sm:$0xff]
        %v636 = vld [vmem:[%s354 + $0x170] sm:$0xf]
        %v637 = vld [vmem:[%s354 + $0x174] sm:$0xff]
        %v638 = vld [vmem:[%s354 + $0x17c] sm:$0xf]
        %v639 = vld [vmem:[%s6] sm:$0x1]
        %v640 = vld [vmem:[%s419] sm:$0xff]
        %v641 = vld [vmem:[%s419 + $0x8] sm:$0xff]
        %v642 = vld [vmem:[%s419 + $0x10] sm:$0xff]
        %v643 = vld [vmem:[%s419 + $0x18] sm:$0xff]
        %v644 = vld [vmem:[%s419 + $0x20] sm:$0xff]
        %v645 = vld [vmem:[%s419 + $0x28] sm:$0xff]
        %v646 = vld [vmem:[%s419 + $0x30] sm:$0xff]
        %v647 = vld [vmem:[%s419 + $0x38] sm:$0xff]
        %v648 = vld [vmem:[%s419 + $0x40] sm:$0xff]
        %v649 = vld [vmem:[%s419 + $0x48] sm:$0xff]
        %v650 = vld [vmem:[%s419 + $0x50] sm:$0xff]
        %v651 = vld [vmem:[%s419 + $0x58] sm:$0xff]
        %v652 = vld [vmem:[%s419 + $0x60] sm:$0xff]
        %v653 = vld [vmem:[%s419 + $0x68] sm:$0xff]
        %v654 = vld [vmem:[%s419 + $0x70] sm:$0xff]
        %v655 = vld [vmem:[%s419 + $0x78] sm:$0xff]
        %v656 = vld [vmem:[%s419 + $0x80] sm:$0xff]
        %v657 = vld [vmem:[%s419 + $0x88] sm:$0xff]
        %v658 = vld [vmem:[%s419 + $0x90] sm:$0xff]
        %v659 = vld [vmem:[%s419 + $0x98] sm:$0xff]
        %v660 = vld [vmem:[%s419 + $0xa0] sm:$0xff]
        %v661 = vld [vmem:[%s419 + $0xa8] sm:$0xff]
        %v662 = vld [vmem:[%s419 + $0xb0] sm:$0xff]
        %v663 = vld [vmem:[%s419 + $0xb8] sm:$0xff]
        %v664 = vld [vmem:[%s419 + $0xc0] sm:$0xff]
        %v665 = vld [vmem:[%s419 + $0xc8] sm:$0xff]
        %v666 = vld [vmem:[%s419 + $0xd0] sm:$0xff]
        %v667 = vld [vmem:[%s419 + $0xd8] sm:$0xff]
        %v668 = vld [vmem:[%s419 + $0xe0] sm:$0xff]
        %v669 = vld [vmem:[%s419 + $0xe8] sm:$0xff]
        %v670 = vld [vmem:[%s419 + $0xf0] sm:$0xff]
        %v671 = vld [vmem:[%s419 + $0xf8] sm:$0xff]
        %v672 = vld [vmem:[%s419 + $0x100] sm:$0xff]
        %v673 = vld [vmem:[%s419 + $0x108] sm:$0xff]
        %v674 = vld [vmem:[%s419 + $0x110] sm:$0xff]
        %v675 = vld [vmem:[%s419 + $0x118] sm:$0xff]
        %v676 = vld [vmem:[%s419 + $0x120] sm:$0xff]
        %v677 = vld [vmem:[%s419 + $0x128] sm:$0xff]
        %v678 = vld [vmem:[%s419 + $0x130] sm:$0xff]
        %v679 = vld [vmem:[%s419 + $0x138] sm:$0xff]
        %v680 = vld [vmem:[%s419 + $0x140] sm:$0xff]
        %v681 = vld [vmem:[%s419 + $0x148] sm:$0xff]
        %v682 = vld [vmem:[%s419 + $0x150] sm:$0xff]
        %v683 = vld [vmem:[%s419 + $0x158] sm:$0xff]
        %v684 = vld [vmem:[%s419 + $0x160] sm:$0xff]
        %v685 = vld [vmem:[%s419 + $0x168] sm:$0xff]
        %v686 = vld [vmem:[%s419 + $0x170] sm:$0xff]
        %v687 = vld [vmem:[%s419 + $0x178] sm:$0xff]
        %v688 = vld [vmem:[%s424] sm:$0xff]
        %v689 = vld [vmem:[%s424 + $0x8] sm:$0xff]
        %v690 = vld [vmem:[%s424 + $0x10] sm:$0xff]
        %v691 = vld [vmem:[%s424 + $0x18] sm:$0xff]
        %v692 = vld [vmem:[%s424 + $0x20] sm:$0xff]
        %v693 = vld [vmem:[%s424 + $0x28] sm:$0xff]
        %v694 = vld [vmem:[%s424 + $0x30] sm:$0xff]
        %v695 = vld [vmem:[%s424 + $0x38] sm:$0xff]
        %v696 = vld [vmem:[%s424 + $0x40] sm:$0xff]
        %v697 = vld [vmem:[%s424 + $0x48] sm:$0xff]
        %v698 = vld [vmem:[%s424 + $0x50] sm:$0xff]
        %v699 = vld [vmem:[%s424 + $0x58] sm:$0xff]
        %v700 = vld [vmem:[%s424 + $0x60] sm:$0xff]
        %v701 = vld [vmem:[%s424 + $0x68] sm:$0xff]
        %v702 = vld [vmem:[%s424 + $0x70] sm:$0xff]
        %v703 = vld [vmem:[%s424 + $0x78] sm:$0xff]
        %v704 = vld [vmem:[%s424 + $0x80] sm:$0xff]
        %v705 = vld [vmem:[%s424 + $0x88] sm:$0xff]
        %v706 = vld [vmem:[%s424 + $0x90] sm:$0xff]
        %v707 = vld [vmem:[%s424 + $0x98] sm:$0xff]
        %v708 = vld [vmem:[%s424 + $0xa0] sm:$0xff]
        %v709 = vld [vmem:[%s424 + $0xa8] sm:$0xff]
        %v710 = vld [vmem:[%s424 + $0xb0] sm:$0xff]
        %v711 = vld [vmem:[%s424 + $0xb8] sm:$0xff]
        %v712 = vld [vmem:[%s424 + $0xc0] sm:$0xff]
        %v713 = vld [vmem:[%s424 + $0xc8] sm:$0xff]
        %v714 = vld [vmem:[%s424 + $0xd0] sm:$0xff]
        %v715 = vld [vmem:[%s424 + $0xd8] sm:$0xff]
        %v716 = vld [vmem:[%s424 + $0xe0] sm:$0xff]
        %v717 = vld [vmem:[%s424 + $0xe8] sm:$0xff]
        %v718 = vld [vmem:[%s424 + $0xf0] sm:$0xff]
        %v719 = vld [vmem:[%s424 + $0xf8] sm:$0xff]
        %v720 = vld [vmem:[%s424 + $0x100] sm:$0xff]
        %v721 = vld [vmem:[%s424 + $0x108] sm:$0xff]
        %v722 = vld [vmem:[%s424 + $0x110] sm:$0xff]
        %v723 = vld [vmem:[%s424 + $0x118] sm:$0xff]
        %v724 = vld [vmem:[%s424 + $0x120] sm:$0xff]
        %v725 = vld [vmem:[%s424 + $0x128] sm:$0xff]
        %v726 = vld [vmem:[%s424 + $0x130] sm:$0xff]
        %v727 = vld [vmem:[%s424 + $0x138] sm:$0xff]
        %v728 = vld [vmem:[%s424 + $0x140] sm:$0xff]
        %v729 = vld [vmem:[%s424 + $0x148] sm:$0xff]
        %v730 = vld [vmem:[%s424 + $0x150] sm:$0xff]
        %v731 = vld [vmem:[%s424 + $0x158] sm:$0xff]
        %v732 = vld [vmem:[%s424 + $0x160] sm:$0xff]
        %v733 = vld [vmem:[%s424 + $0x168] sm:$0xff]
        %v734 = vld [vmem:[%s424 + $0x170] sm:$0xff]
        %v735 = vld [vmem:[%s424 + $0x178] sm:$0xff]
        %v736 = vpack.c.bf16 %v641, %v640
        %v737 = vpack.c.bf16 %v643, %v642
        %v738 = vpack.c.bf16 %v645, %v644
        %v739 = vpack.c.bf16 %v647, %v646
        %v740 = vpack.c.bf16 %v649, %v648
        %v741 = vpack.c.bf16 %v651, %v650
        %v742 = vpack.c.bf16 %v653, %v652
        %v743 = vpack.c.bf16 %v655, %v654
        %v744 = vpack.c.bf16 %v657, %v656
        %v745 = vpack.c.bf16 %v659, %v658
        %v746 = vpack.c.bf16 %v661, %v660
        %v747 = vpack.c.bf16 %v663, %v662
        %v748 = vpack.c.bf16 %v665, %v664
        %v749 = vpack.c.bf16 %v667, %v666
        %v750 = vpack.c.bf16 %v669, %v668
        %v751 = vpack.c.bf16 %v671, %v670
        %v752 = vpack.c.bf16 %v673, %v672
        %v753 = vpack.c.bf16 %v675, %v674
        %v754 = vpack.c.bf16 %v677, %v676
        %v755 = vpack.c.bf16 %v679, %v678
        %v756 = vpack.c.bf16 %v681, %v680
        %v757 = vpack.c.bf16 %v683, %v682
        %v758 = vpack.c.bf16 %v685, %v684
        %v759 = vpack.c.bf16 %v687, %v686
        %v760 = vpack.c.bf16 %v689, %v688
        %v761 = vpack.c.bf16 %v691, %v690
        %v762 = vpack.c.bf16 %v693, %v692
        %v763 = vpack.c.bf16 %v695, %v694
        %v764 = vpack.c.bf16 %v697, %v696
        %v765 = vpack.c.bf16 %v699, %v698
        %v766 = vpack.c.bf16 %v701, %v700
        %v767 = vpack.c.bf16 %v703, %v702
        %v768 = vpack.c.bf16 %v705, %v704
        %v769 = vpack.c.bf16 %v707, %v706
        %v770 = vpack.c.bf16 %v709, %v708
        %v771 = vpack.c.bf16 %v711, %v710
        %v772 = vpack.c.bf16 %v713, %v712
        %v773 = vpack.c.bf16 %v715, %v714
        %v774 = vpack.c.bf16 %v717, %v716
        %v775 = vpack.c.bf16 %v719, %v718
        %v776 = vpack.c.bf16 %v721, %v720
        %v777 = vpack.c.bf16 %v723, %v722
        %v778 = vpack.c.bf16 %v725, %v724
        %v779 = vpack.c.bf16 %v727, %v726
        %v780 = vpack.c.bf16 %v729, %v728
        %v781 = vpack.c.bf16 %v731, %v730
        %v782 = vpack.c.bf16 %v733, %v732
        %v783 = vpack.c.bf16 %v735, %v734
        %v816 = vunpack.c.l.b16 %v543
        %v817 = vunpack.c.h.b16 %v543
        %v818 = vunpack.c.l.b16 %v544
        %v819 = vunpack.c.l.b16 %v545
        %v820 = vunpack.c.h.b16 %v545
        %v821 = vunpack.c.l.b16 %v546
        %v822 = vunpack.c.l.b16 %v547
        %v823 = vunpack.c.h.b16 %v547
        %v824 = vunpack.c.l.b16 %v548
        %v825 = vunpack.c.l.b16 %v549
        %v826 = vunpack.c.h.b16 %v549
        %v827 = vunpack.c.l.b16 %v550
        %v828 = vunpack.c.l.b16 %v551
        %v829 = vunpack.c.h.b16 %v551
        %v830 = vunpack.c.l.b16 %v552
        %v831 = vunpack.c.l.b16 %v553
        %v832 = vunpack.c.h.b16 %v553
        %v833 = vunpack.c.l.b16 %v554
        %v834 = vunpack.c.l.b16 %v555
        %v835 = vunpack.c.h.b16 %v555
        %v836 = vunpack.c.l.b16 %v556
        %v837 = vunpack.c.l.b16 %v557
        %v838 = vunpack.c.h.b16 %v557
        %v839 = vunpack.c.l.b16 %v558
        %v840 = vunpack.c.l.b16 %v559
        %v841 = vunpack.c.h.b16 %v559
        %v842 = vunpack.c.l.b16 %v560
        %v843 = vunpack.c.l.b16 %v561
        %v844 = vunpack.c.h.b16 %v561
        %v845 = vunpack.c.l.b16 %v562
        %v846 = vunpack.c.l.b16 %v563
        %v847 = vunpack.c.h.b16 %v563
        %v848 = vunpack.c.l.b16 %v564
        %v849 = vunpack.c.l.b16 %v565
        %v850 = vunpack.c.h.b16 %v565
        %v851 = vunpack.c.l.b16 %v566
        %v852 = vunpack.c.l.b16 %v567
        %v853 = vunpack.c.h.b16 %v567
        %v854 = vunpack.c.l.b16 %v568
        %v855 = vunpack.c.l.b16 %v569
        %v856 = vunpack.c.h.b16 %v569
        %v857 = vunpack.c.l.b16 %v570
        %v858 = vunpack.c.l.b16 %v571
        %v859 = vunpack.c.h.b16 %v571
        %v860 = vunpack.c.l.b16 %v572
        %v861 = vunpack.c.l.b16 %v573
        %v862 = vunpack.c.h.b16 %v573
        %v863 = vunpack.c.l.b16 %v574
        %v864 = vpack.c.b16 %v819, %v816
        %v865 = vpack.c.b16 %v820, %v817
        %v866 = vpack.c.b16 %v821, %v818
        %v867 = vpack.c.b16 %v825, %v822
        %v868 = vpack.c.b16 %v826, %v823
        %v869 = vpack.c.b16 %v827, %v824
        %v870 = vpack.c.b16 %v831, %v828
        %v871 = vpack.c.b16 %v832, %v829
        %v872 = vpack.c.b16 %v833, %v830
        %v873 = vpack.c.b16 %v837, %v834
        %v874 = vpack.c.b16 %v838, %v835
        %v875 = vpack.c.b16 %v839, %v836
        %v876 = vpack.c.b16 %v843, %v840
        %v877 = vpack.c.b16 %v844, %v841
        %v878 = vpack.c.b16 %v845, %v842
        %v879 = vpack.c.b16 %v849, %v846
        %v880 = vpack.c.b16 %v850, %v847
        %v881 = vpack.c.b16 %v851, %v848
        %v882 = vpack.c.b16 %v855, %v852
        %v883 = vpack.c.b16 %v856, %v853
        %v884 = vpack.c.b16 %v857, %v854
        %v885 = vpack.c.b16 %v861, %v858
        %v886 = vpack.c.b16 %v862, %v859
        %v887 = vpack.c.b16 %v863, %v860
        %912 = vmatprep.subr.bf16.mxu0 0
        %913 = vmatpush1.bf16.msra.mxu0 %v736
        %914 = vmatprep.subr.bf16.mxu0 0
        %915 = vmatpush1.bf16.msra.mxu0 %v737
        %916 = vmatprep.subr.bf16.mxu0 0
        %917 = vmatpush1.bf16.msra.mxu0 %v738
        %918 = vmatprep.subr.bf16.mxu0 0
        %919 = vmatpush1.bf16.msra.mxu0 %v739
        %920 = vmatprep.subr.bf16.mxu0 0
        %921 = vmatpush1.bf16.msra.mxu0 %v740
        %922 = vmatprep.subr.bf16.mxu0 0
        %923 = vmatpush1.bf16.msra.mxu0 %v741
        %924 = vmatprep.subr.bf16.mxu0 0
        %925 = vmatpush1.bf16.msra.mxu0 %v742
        %926 = vmatprep.subr.bf16.mxu0 0
        %927 = vmatpush1.bf16.msra.mxu0 %v743
        %928 = vmatprep.subr.bf16.mxu0 0
        %929 = vmatpush1.bf16.msra.mxu0 %v744
        %930 = vmatprep.subr.bf16.mxu0 0
        %931 = vmatpush1.bf16.msra.mxu0 %v745
        %932 = vmatprep.subr.bf16.mxu0 0
        %933 = vmatpush1.bf16.msra.mxu0 %v746
        %934 = vmatprep.subr.bf16.mxu0 0
        %935 = vmatpush1.bf16.msra.mxu0 %v747
        %936 = vmatprep.subr.bf16.mxu0 0
        %937 = vmatpush1.bf16.msra.mxu0 %v748
        %938 = vmatprep.subr.bf16.mxu0 0
        %939 = vmatpush1.bf16.msra.mxu0 %v749
        %940 = vmatprep.subr.bf16.mxu0 0
        %941 = vmatpush1.bf16.msra.mxu0 %v750
        %942 = vmatprep.subr.bf16.mxu0 0
        %943 = vmatpush1.bf16.msra.mxu0 %v751
        %944 = vmatprep.mubr.bf16.mxu0 %v865
        %945 = vmatmul.mubr.bf16.gmra.mrb[0].mxu0 %v864
        %v946 = vpop.f32.mrb[0].mxu0
        %v947 = vadd.f32 0.0, %v946
        %v948 = vpop.f32.mrb[0].mxu0
        %v949 = vpop.f32.mrb[0].mxu0
        %v950 = vadd.f32 0.0, %v949
        %v951 = vpop.f32.mrb[0].mxu0
        %952 = vmatprep.mubr.bf16.mxu0 %v868
        %953 = vmatmul.mubr.bf16.gmra.mrb[0].mxu0 %v867
        %v954 = vpop.f32.mrb[0].mxu0
        %v955 = vadd.f32 0.0, %v954
        %v956 = vpop.f32.mrb[0].mxu0
        %v957 = vpop.f32.mrb[0].mxu0
        %v958 = vadd.f32 0.0, %v957
        %v959 = vpop.f32.mrb[0].mxu0
        %960 = vmatprep.mubr.bf16.mxu0 %v871
        %961 = vmatmul.mubr.bf16.gmra.mrb[0].mxu0 %v870
        %v962 = vpop.f32.mrb[0].mxu0
        %v963 = vadd.f32 0.0, %v962
        %v964 = vpop.f32.mrb[0].mxu0
        %v965 = vpop.f32.mrb[0].mxu0
        %v966 = vadd.f32 0.0, %v965
        %v967 = vpop.f32.mrb[0].mxu0
        %968 = vmatprep.mubr.bf16.mxu0 %v874
        %969 = vmatmul.mubr.bf16.gmra.mrb[0].mxu0 %v873
        %v970 = vpop.f32.mrb[0].mxu0
        %v971 = vadd.f32 0.0, %v970
        %v972 = vpop.f32.mrb[0].mxu0
        %v973 = vpop.f32.mrb[0].mxu0
        %v974 = vadd.f32 0.0, %v973
        %v975 = vpop.f32.mrb[0].mxu0
        %976 = vmatprep.mubr.bf16.mxu0 %v877
        %977 = vmatmul.mubr.bf16.gmra.mrb[0].mxu0 %v876
        %v978 = vpop.f32.mrb[0].mxu0
        %v979 = vadd.f32 0.0, %v978
        %v980 = vpop.f32.mrb[0].mxu0
        %v981 = vpop.f32.mrb[0].mxu0
        %v982 = vadd.f32 0.0, %v981
        %v983 = vpop.f32.mrb[0].mxu0
        %984 = vmatprep.mubr.bf16.mxu0 %v880
        %985 = vmatmul.mubr.bf16.gmra.mrb[0].mxu0 %v879
        %v986 = vpop.f32.mrb[0].mxu0
        %v987 = vadd.f32 0.0, %v986
        %v988 = vpop.f32.mrb[0].mxu0
        %v989 = vpop.f32.mrb[0].mxu0
        %v990 = vadd.f32 0.0, %v989
        %v991 = vpop.f32.mrb[0].mxu0
        %992 = vmatprep.mubr.bf16.mxu0 %v883
        %993 = vmatmul.mubr.bf16.gmra.mrb[0].mxu0 %v882
        %v994 = vpop.f32.mrb[0].mxu0
        %v995 = vadd.f32 0.0, %v994
        %v996 = vpop.f32.mrb[0].mxu0
        %v997 = vpop.f32.mrb[0].mxu0
        %v998 = vadd.f32 0.0, %v997
        %v999 = vpop.f32.mrb[0].mxu0
        %1000 = vmatprep.mubr.bf16.mxu0 %v886
        %1001 = vmatmul.mubr.bf16.gmra.mrb[0].mxu0 %v885
        %v1002 = vpop.f32.mrb[0].mxu0
        %v1003 = vadd.f32 0.0, %v1002
        %v1004 = vpop.f32.mrb[0].mxu0
        %v1005 = vpop.f32.mrb[0].mxu0
        %v1006 = vadd.f32 0.0, %v1005
        %v1007 = vpop.f32.mrb[0].mxu0
        %1008 = vdwg.mxu0
        %1009 = vmatprep.subr.bf16.mxu0 0
        %1010 = vmatpush1.bf16.msra.mxu0 %v752
        %1011 = vmatprep.subr.bf16.mxu0 0
        %1012 = vmatpush1.bf16.msra.mxu0 %v753
        %1013 = vmatprep.subr.bf16.mxu0 0
        %1014 = vmatpush1.bf16.msra.mxu0 %v754
        %1015 = vmatprep.subr.bf16.mxu0 0
        %1016 = vmatpush1.bf16.msra.mxu0 %v755
        %1017 = vmatprep.subr.bf16.mxu0 0
        %1018 = vmatpush1.bf16.msra.mxu0 %v756
        %1019 = vmatprep.subr.bf16.mxu0 0
        %1020 = vmatpush1.bf16.msra.mxu0 %v757
        %1021 = vmatprep.subr.bf16.mxu0 0
        %1022 = vmatpush1.bf16.msra.mxu0 %v758
        %1023 = vmatprep.subr.bf16.mxu0 0
        %1024 = vmatpush1.bf16.msra.mxu0 %v759
        %1025 = vmatprep.subr.bf16.mxu0 0
        %1026 = vmatpush1.bf16.msra.mxu0 0
        %1027 = vmatprep.subr.bf16.mxu0 0
        %1028 = vmatpush1.bf16.msra.mxu0 0
        %1029 = vmatprep.subr.bf16.mxu0 0
        %1030 = vmatpush1.bf16.msra.mxu0 0
        %1031 = vmatprep.subr.bf16.mxu0 0
        %1032 = vmatpush1.bf16.msra.mxu0 0
        %1033 = vmatprep.subr.bf16.mxu0 0
        %1034 = vmatpush1.bf16.msra.mxu0 0
        %1035 = vmatprep.subr.bf16.mxu0 0
        %1036 = vmatpush1.bf16.msra.mxu0 0
        %1037 = vmatprep.subr.bf16.mxu0 0
        %1038 = vmatpush1.bf16.msra.mxu0 0
        %1039 = vmatprep.subr.bf16.mxu0 0
        %1040 = vmatpush1.bf16.msra.mxu0 0
        %1041 = vmatprep.mubr.bf16.mxu0 0
        %1042 = vmatmul.mubr.bf16.gmra.mrb[0].mxu0 %v866
        %v1043 = vpop.f32.mrb[0].mxu0
        %v1044 = vadd.f32 %v947, %v1043
        %v1045 = vpop.f32.mrb[0].mxu0
        %v1046 = vpop.f32.mrb[0].mxu0
        %v1047 = vadd.f32 %v950, %v1046
        %v1048 = vpop.f32.mrb[0].mxu0
        %1049 = vmatprep.mubr.bf16.mxu0 0
        %1050 = vmatmul.mubr.bf16.gmra.mrb[0].mxu0 %v869
        %v1051 = vpop.f32.mrb[0].mxu0
        %v1052 = vadd.f32 %v955, %v1051
        %v1053 = vpop.f32.mrb[0].mxu0
        %v1054 = vpop.f32.mrb[0].mxu0
        %v1055 = vadd.f32 %v958, %v1054
        %v1056 = vpop.f32.mrb[0].mxu0
        %1057 = vmatprep.mubr.bf16.mxu0 0
        %1058 = vmatmul.mubr.bf16.gmra.mrb[0].mxu0 %v872
        %v1059 = vpop.f32.mrb[0].mxu0
        %v1060 = vadd.f32 %v963, %v1059
        %v1061 = vpop.f32.mrb[0].mxu0
        %v1062 = vpop.f32.mrb[0].mxu0
        %v1063 = vadd.f32 %v966, %v1062
        %v1064 = vpop.f32.mrb[0].mxu0
        %1065 = vmatprep.mubr.bf16.mxu0 0
        %1066 = vmatmul.mubr.bf16.gmra.mrb[0].mxu0 %v875
        %v1067 = vpop.f32.mrb[0].mxu0
        %v1068 = vadd.f32 %v971, %v1067
        %v1069 = vpop.f32.mrb[0].mxu0
        %v1070 = vpop.f32.mrb[0].mxu0
        %v1071 = vadd.f32 %v974, %v1070
        %v1072 = vpop.f32.mrb[0].mxu0
        %1073 = vmatprep.mubr.bf16.mxu0 0
        %1074 = vmatmul.mubr.bf16.gmra.mrb[0].mxu0 %v878
        %v1075 = vpop.f32.mrb[0].mxu0
        %v1076 = vadd.f32 %v979, %v1075
        %v1077 = vpop.f32.mrb[0].mxu0
        %v1078 = vpop.f32.mrb[0].mxu0
        %v1079 = vadd.f32 %v982, %v1078
        %v1080 = vpop.f32.mrb[0].mxu0
        %1081 = vmatprep.mubr.bf16.mxu0 0
        %1082 = vmatmul.mubr.bf16.gmra.mrb[0].mxu0 %v881
        %v1083 = vpop.f32.mrb[0].mxu0
        %v1084 = vadd.f32 %v987, %v1083
        %v1085 = vpop.f32.mrb[0].mxu0
        %v1086 = vpop.f32.mrb[0].mxu0
        %v1087 = vadd.f32 %v990, %v1086
        %v1088 = vpop.f32.mrb[0].mxu0
        %1089 = vmatprep.mubr.bf16.mxu0 0
        %1090 = vmatmul.mubr.bf16.gmra.mrb[0].mxu0 %v884
        %v1091 = vpop.f32.mrb[0].mxu0
        %v1092 = vadd.f32 %v995, %v1091
        %v1093 = vpop.f32.mrb[0].mxu0
        %v1094 = vpop.f32.mrb[0].mxu0
        %v1095 = vadd.f32 %v998, %v1094
        %v1096 = vpop.f32.mrb[0].mxu0
        %1097 = vmatprep.mubr.bf16.mxu0 0
        %1098 = vmatmul.mubr.bf16.gmra.mrb[0].mxu0 %v887
        %v1099 = vpop.f32.mrb[0].mxu0
        %v1100 = vadd.f32 %v1003, %v1099
        %v1101 = vpop.f32.mrb[0].mxu0
        %v1102 = vpop.f32.mrb[0].mxu0
        %v1103 = vadd.f32 %v1006, %v1102
        %v1104 = vpop.f32.mrb[0].mxu0
        %1105 = vdwg.mxu0
        %v1170 = vunpack.c.l.b16 %v575
        %v1171 = vunpack.c.h.b16 %v575
        %v1172 = vunpack.c.l.b16 %v576
        %v1173 = vunpack.c.l.b16 %v577
        %v1174 = vunpack.c.h.b16 %v577
        %v1175 = vunpack.c.l.b16 %v578
        %v1176 = vunpack.c.l.b16 %v579
        %v1177 = vunpack.c.h.b16 %v579
        %v1178 = vunpack.c.l.b16 %v580
        %v1179 = vunpack.c.l.b16 %v581
        %v1180 = vunpack.c.h.b16 %v581
        %v1181 = vunpack.c.l.b16 %v582
        %v1182 = vunpack.c.l.b16 %v583
        %v1183 = vunpack.c.h.b16 %v583
        %v1184 = vunpack.c.l.b16 %v584
        %v1185 = vunpack.c.l.b16 %v585
        %v1186 = vunpack.c.h.b16 %v585
        %v1187 = vunpack.c.l.b16 %v586
        %v1188 = vunpack.c.l.b16 %v587
        %v1189 = vunpack.c.h.b16 %v587
        %v1190 = vunpack.c.l.b16 %v588
        %v1191 = vunpack.c.l.b16 %v589
        %v1192 = vunpack.c.h.b16 %v589
        %v1193 = vunpack.c.l.b16 %v590
        %v1194 = vunpack.c.l.b16 %v591
        %v1195 = vunpack.c.h.b16 %v591
        %v1196 = vunpack.c.l.b16 %v592
        %v1197 = vunpack.c.l.b16 %v593
        %v1198 = vunpack.c.h.b16 %v593
        %v1199 = vunpack.c.l.b16 %v594
        %v1200 = vunpack.c.l.b16 %v595
        %v1201 = vunpack.c.h.b16 %v595
        %v1202 = vunpack.c.l.b16 %v596
        %v1203 = vunpack.c.l.b16 %v597
        %v1204 = vunpack.c.h.b16 %v597
        %v1205 = vunpack.c.l.b16 %v598
        %v1206 = vunpack.c.l.b16 %v599
        %v1207 = vunpack.c.h.b16 %v599
        %v1208 = vunpack.c.l.b16 %v600
        %v1209 = vunpack.c.l.b16 %v601
        %v1210 = vunpack.c.h.b16 %v601
        %v1211 = vunpack.c.l.b16 %v602
        %v1212 = vunpack.c.l.b16 %v603
        %v1213 = vunpack.c.h.b16 %v603
        %v1214 = vunpack.c.l.b16 %v604
        %v1215 = vunpack.c.l.b16 %v605
        %v1216 = vunpack.c.h.b16 %v605
        %v1217 = vunpack.c.l.b16 %v606
        %v1218 = vunpack.c.l.b16 %v607
        %v1219 = vunpack.c.h.b16 %v607
        %v1220 = vunpack.c.l.b16 %v608
        %v1221 = vunpack.c.l.b16 %v609
        %v1222 = vunpack.c.h.b16 %v609
        %v1223 = vunpack.c.l.b16 %v610
        %v1224 = vunpack.c.l.b16 %v611
        %v1225 = vunpack.c.h.b16 %v611
        %v1226 = vunpack.c.l.b16 %v612
        %v1227 = vunpack.c.l.b16 %v613
        %v1228 = vunpack.c.h.b16 %v613
        %v1229 = vunpack.c.l.b16 %v614
        %v1230 = vunpack.c.l.b16 %v615
        %v1231 = vunpack.c.h.b16 %v615
        %v1232 = vunpack.c.l.b16 %v616
        %v1233 = vunpack.c.l.b16 %v617
        %v1234 = vunpack.c.h.b16 %v617
        %v1235 = vunpack.c.l.b16 %v618
        %v1236 = vunpack.c.l.b16 %v619
        %v1237 = vunpack.c.h.b16 %v619
        %v1238 = vunpack.c.l.b16 %v620
        %v1239 = vunpack.c.l.b16 %v621
        %v1240 = vunpack.c.h.b16 %v621
        %v1241 = vunpack.c.l.b16 %v622
        %v1242 = vunpack.c.l.b16 %v623
        %v1243 = vunpack.c.h.b16 %v623
        %v1244 = vunpack.c.l.b16 %v624
        %v1245 = vunpack.c.l.b16 %v625
        %v1246 = vunpack.c.h.b16 %v625
        %v1247 = vunpack.c.l.b16 %v626
        %v1248 = vunpack.c.l.b16 %v627
        %v1249 = vunpack.c.h.b16 %v627
        %v1250 = vunpack.c.l.b16 %v628
        %v1251 = vunpack.c.l.b16 %v629
        %v1252 = vunpack.c.h.b16 %v629
        %v1253 = vunpack.c.l.b16 %v630
        %v1254 = vunpack.c.l.b16 %v631
        %v1255 = vunpack.c.h.b16 %v631
        %v1256 = vunpack.c.l.b16 %v632
        %v1257 = vunpack.c.l.b16 %v633
        %v1258 = vunpack.c.h.b16 %v633
        %v1259 = vunpack.c.l.b16 %v634
        %v1260 = vunpack.c.l.b16 %v635
        %v1261 = vunpack.c.h.b16 %v635
        %v1262 = vunpack.c.l.b16 %v636
        %v1263 = vunpack.c.l.b16 %v637
        %v1264 = vunpack.c.h.b16 %v637
        %v1265 = vunpack.c.l.b16 %v638
        %v1266 = vpack.c.b16 %v1173, %v1170
        %v1267 = vpack.c.b16 %v1174, %v1171
        %v1268 = vpack.c.b16 %v1175, %v1172
        %v1269 = vpack.c.b16 %v1179, %v1176
        %v1270 = vpack.c.b16 %v1180, %v1177
        %v1271 = vpack.c.b16 %v1181, %v1178
        %v1272 = vpack.c.b16 %v1185, %v1182
        %v1273 = vpack.c.b16 %v1186, %v1183
        %v1274 = vpack.c.b16 %v1187, %v1184
        %v1275 = vpack.c.b16 %v1191, %v1188
        %v1276 = vpack.c.b16 %v1192, %v1189
        %v1277 = vpack.c.b16 %v1193, %v1190
        %v1278 = vpack.c.b16 %v1197, %v1194
        %v1279 = vpack.c.b16 %v1198, %v1195
        %v1280 = vpack.c.b16 %v1199, %v1196
        %v1281 = vpack.c.b16 %v1203, %v1200
        %v1282 = vpack.c.b16 %v1204, %v1201
        %v1283 = vpack.c.b16 %v1205, %v1202
        %v1284 = vpack.c.b16 %v1209, %v1206
        %v1285 = vpack.c.b16 %v1210, %v1207
        %v1286 = vpack.c.b16 %v1211, %v1208
        %v1287 = vpack.c.b16 %v1215, %v1212
        %v1288 = vpack.c.b16 %v1216, %v1213
        %v1289 = vpack.c.b16 %v1217, %v1214
        %v1290 = vpack.c.b16 %v1221, %v1218
        %v1291 = vpack.c.b16 %v1222, %v1219
        %v1292 = vpack.c.b16 %v1223, %v1220
        %v1293 = vpack.c.b16 %v1227, %v1224
        %v1294 = vpack.c.b16 %v1228, %v1225
        %v1295 = vpack.c.b16 %v1229, %v1226
        %v1296 = vpack.c.b16 %v1233, %v1230
        %v1297 = vpack.c.b16 %v1234, %v1231
        %v1298 = vpack.c.b16 %v1235, %v1232
        %v1299 = vpack.c.b16 %v1239, %v1236
        %v1300 = vpack.c.b16 %v1240, %v1237
        %v1301 = vpack.c.b16 %v1241, %v1238
        %v1302 = vpack.c.b16 %v1245, %v1242
        %v1303 = vpack.c.b16 %v1246, %v1243
        %v1304 = vpack.c.b16 %v1247, %v1244
        %v1305 = vpack.c.b16 %v1251, %v1248
        %v1306 = vpack.c.b16 %v1252, %v1249
        %v1307 = vpack.c.b16 %v1253, %v1250
        %v1308 = vpack.c.b16 %v1257, %v1254
        %v1309 = vpack.c.b16 %v1258, %v1255
        %v1310 = vpack.c.b16 %v1259, %v1256
        %v1311 = vpack.c.b16 %v1263, %v1260
        %v1312 = vpack.c.b16 %v1264, %v1261
        %v1313 = vpack.c.b16 %v1265, %v1262
        %1362 = vmatprep.subr.bf16.mxu0 0
        %1363 = vmatpush1.bf16.msra.mxu0 %v736
        %1364 = vmatprep.subr.bf16.mxu0 0
        %1365 = vmatpush1.bf16.msra.mxu0 %v737
        %1366 = vmatprep.subr.bf16.mxu0 0
        %1367 = vmatpush1.bf16.msra.mxu0 %v738
        %1368 = vmatprep.subr.bf16.mxu0 0
        %1369 = vmatpush1.bf16.msra.mxu0 %v739
        %1370 = vmatprep.subr.bf16.mxu0 0
        %1371 = vmatpush1.bf16.msra.mxu0 %v740
        %1372 = vmatprep.subr.bf16.mxu0 0
        %1373 = vmatpush1.bf16.msra.mxu0 %v741
        %1374 = vmatprep.subr.bf16.mxu0 0
        %1375 = vmatpush1.bf16.msra.mxu0 %v742
        %1376 = vmatprep.subr.bf16.mxu0 0
        %1377 = vmatpush1.bf16.msra.mxu0 %v743
        %1378 = vmatprep.subr.bf16.mxu0 0
        %1379 = vmatpush1.bf16.msra.mxu0 %v744
        %1380 = vmatprep.subr.bf16.mxu0 0
        %1381 = vmatpush1.bf16.msra.mxu0 %v745
        %1382 = vmatprep.subr.bf16.mxu0 0
        %1383 = vmatpush1.bf16.msra.mxu0 %v746
        %1384 = vmatprep.subr.bf16.mxu0 0
        %1385 = vmatpush1.bf16.msra.mxu0 %v747
        %1386 = vmatprep.subr.bf16.mxu0 0
        %1387 = vmatpush1.bf16.msra.mxu0 %v748
        %1388 = vmatprep.subr.bf16.mxu0 0
        %1389 = vmatpush1.bf16.msra.mxu0 %v749
        %1390 = vmatprep.subr.bf16.mxu0 0
        %1391 = vmatpush1.bf16.msra.mxu0 %v750
        %1392 = vmatprep.subr.bf16.mxu0 0
        %1393 = vmatpush1.bf16.msra.mxu0 %v751
        %1394 = vmatprep.mubr.bf16.mxu0 %v1267
        %1395 = vmatmul.mubr.bf16.gmra.mrb[0].mxu0 %v1266
        %v1396 = vpop.f32.mrb[0].mxu0
        %v1397 = vadd.f32 0.0, %v1396
        %v1398 = vpop.f32.mrb[0].mxu0
        %v1399 = vpop.f32.mrb[0].mxu0
        %v1400 = vadd.f32 0.0, %v1399
        %v1401 = vpop.f32.mrb[0].mxu0
        %1402 = vmatprep.mubr.bf16.mxu0 %v1270
        %1403 = vmatmul.mubr.bf16.gmra.mrb[0].mxu0 %v1269
        %v1404 = vpop.f32.mrb[0].mxu0
        %v1405 = vadd.f32 0.0, %v1404
        %v1406 = vpop.f32.mrb[0].mxu0
        %v1407 = vpop.f32.mrb[0].mxu0
        %v1408 = vadd.f32 0.0, %v1407
        %v1409 = vpop.f32.mrb[0].mxu0
        %1410 = vmatprep.mubr.bf16.mxu0 %v1273
        %1411 = vmatmul.mubr.bf16.gmra.mrb[0].mxu0 %v1272
        %v1412 = vpop.f32.mrb[0].mxu0
        %v1413 = vadd.f32 0.0, %v1412
        %v1414 = vpop.f32.mrb[0].mxu0
        %v1415 = vpop.f32.mrb[0].mxu0
        %v1416 = vadd.f32 0.0, %v1415
        %v1417 = vpop.f32.mrb[0].mxu0
        %1418 = vmatprep.mubr.bf16.mxu0 %v1276
        %1419 = vmatmul.mubr.bf16.gmra.mrb[0].mxu0 %v1275
        %v1420 = vpop.f32.mrb[0].mxu0
        %v1421 = vadd.f32 0.0, %v1420
        %v1422 = vpop.f32.mrb[0].mxu0
        %v1423 = vpop.f32.mrb[0].mxu0
        %v1424 = vadd.f32 0.0, %v1423
        %v1425 = vpop.f32.mrb[0].mxu0
        %1426 = vmatprep.mubr.bf16.mxu0 %v1279
        %1427 = vmatmul.mubr.bf16.gmra.mrb[0].mxu0 %v1278
        %v1428 = vpop.f32.mrb[0].mxu0
        %v1429 = vadd.f32 0.0, %v1428
        %v1430 = vpop.f32.mrb[0].mxu0
        %v1431 = vpop.f32.mrb[0].mxu0
        %v1432 = vadd.f32 0.0, %v1431
        %v1433 = vpop.f32.mrb[0].mxu0
        %1434 = vmatprep.mubr.bf16.mxu0 %v1282
        %1435 = vmatmul.mubr.bf16.gmra.mrb[0].mxu0 %v1281
        %v1436 = vpop.f32.mrb[0].mxu0
        %v1437 = vadd.f32 0.0, %v1436
        %v1438 = vpop.f32.mrb[0].mxu0
        %v1439 = vpop.f32.mrb[0].mxu0
        %v1440 = vadd.f32 0.0, %v1439
        %v1441 = vpop.f32.mrb[0].mxu0
        %1442 = vmatprep.mubr.bf16.mxu0 %v1285
        %1443 = vmatmul.mubr.bf16.gmra.mrb[0].mxu0 %v1284
        %v1444 = vpop.f32.mrb[0].mxu0
        %v1445 = vadd.f32 0.0, %v1444
        %v1446 = vpop.f32.mrb[0].mxu0
        %v1447 = vpop.f32.mrb[0].mxu0
        %v1448 = vadd.f32 0.0, %v1447
        %v1449 = vpop.f32.mrb[0].mxu0
        %1450 = vmatprep.mubr.bf16.mxu0 %v1288
        %1451 = vmatmul.mubr.bf16.gmra.mrb[0].mxu0 %v1287
        %v1452 = vpop.f32.mrb[0].mxu0
        %v1453 = vadd.f32 0.0, %v1452
        %v1454 = vpop.f32.mrb[0].mxu0
        %v1455 = vpop.f32.mrb[0].mxu0
        %v1456 = vadd.f32 0.0, %v1455
        %v1457 = vpop.f32.mrb[0].mxu0
        %1458 = vmatprep.mubr.bf16.mxu0 %v1291
        %1459 = vmatmul.mubr.bf16.gmra.mrb[0].mxu0 %v1290
        %v1460 = vpop.f32.mrb[0].mxu0
        %v1461 = vadd.f32 0.0, %v1460
        %v1462 = vpop.f32.mrb[0].mxu0
        %v1463 = vpop.f32.mrb[0].mxu0
        %v1464 = vadd.f32 0.0, %v1463
        %v1465 = vpop.f32.mrb[0].mxu0
        %1466 = vmatprep.mubr.bf16.mxu0 %v1294
        %1467 = vmatmul.mubr.bf16.gmra.mrb[0].mxu0 %v1293
        %v1468 = vpop.f32.mrb[0].mxu0
        %v1469 = vadd.f32 0.0, %v1468
        %v1470 = vpop.f32.mrb[0].mxu0
        %v1471 = vpop.f32.mrb[0].mxu0
        %v1472 = vadd.f32 0.0, %v1471
        %v1473 = vpop.f32.mrb[0].mxu0
        %1474 = vmatprep.mubr.bf16.mxu0 %v1297
        %1475 = vmatmul.mubr.bf16.gmra.mrb[0].mxu0 %v1296
        %v1476 = vpop.f32.mrb[0].mxu0
        %v1477 = vadd.f32 0.0, %v1476
        %v1478 = vpop.f32.mrb[0].mxu0
        %v1479 = vpop.f32.mrb[0].mxu0
        %v1480 = vadd.f32 0.0, %v1479
        %v1481 = vpop.f32.mrb[0].mxu0
        %1482 = vmatprep.mubr.bf16.mxu0 %v1300
        %1483 = vmatmul.mubr.bf16.gmra.mrb[0].mxu0 %v1299
        %v1484 = vpop.f32.mrb[0].mxu0
        %v1485 = vadd.f32 0.0, %v1484
        %v1486 = vpop.f32.mrb[0].mxu0
        %v1487 = vpop.f32.mrb[0].mxu0
        %v1488 = vadd.f32 0.0, %v1487
        %v1489 = vpop.f32.mrb[0].mxu0
        %1490 = vmatprep.mubr.bf16.mxu0 %v1303
        %1491 = vmatmul.mubr.bf16.gmra.mrb[0].mxu0 %v1302
        %v1492 = vpop.f32.mrb[0].mxu0
        %v1493 = vadd.f32 0.0, %v1492
        %v1494 = vpop.f32.mrb[0].mxu0
        %v1495 = vpop.f32.mrb[0].mxu0
        %v1496 = vadd.f32 0.0, %v1495
        %v1497 = vpop.f32.mrb[0].mxu0
        %1498 = vmatprep.mubr.bf16.mxu0 %v1306
        %1499 = vmatmul.mubr.bf16.gmra.mrb[0].mxu0 %v1305
        %v1500 = vpop.f32.mrb[0].mxu0
        %v1501 = vadd.f32 0.0, %v1500
        %v1502 = vpop.f32.mrb[0].mxu0
        %v1503 = vpop.f32.mrb[0].mxu0
        %v1504 = vadd.f32 0.0, %v1503
        %v1505 = vpop.f32.mrb[0].mxu0
        %1506 = vmatprep.mubr.bf16.mxu0 %v1309
        %1507 = vmatmul.mubr.bf16.gmra.mrb[0].mxu0 %v1308
        %v1508 = vpop.f32.mrb[0].mxu0
        %v1509 = vadd.f32 0.0, %v1508
        %v1510 = vpop.f32.mrb[0].mxu0
        %v1511 = vpop.f32.mrb[0].mxu0
        %v1512 = vadd.f32 0.0, %v1511
        %v1513 = vpop.f32.mrb[0].mxu0
        %1514 = vmatprep.mubr.bf16.mxu0 %v1312
        %1515 = vmatmul.mubr.bf16.gmra.mrb[0].mxu0 %v1311
        %v1516 = vpop.f32.mrb[0].mxu0
        %v1517 = vadd.f32 0.0, %v1516
        %v1518 = vpop.f32.mrb[0].mxu0
        %v1519 = vpop.f32.mrb[0].mxu0
        %v1520 = vadd.f32 0.0, %v1519
        %v1521 = vpop.f32.mrb[0].mxu0
        %1522 = vdwg.mxu0
        %1523 = vmatprep.subr.bf16.mxu0 0
        %1524 = vmatpush1.bf16.msra.mxu0 %v752
        %1525 = vmatprep.subr.bf16.mxu0 0
        %1526 = vmatpush1.bf16.msra.mxu0 %v753
        %1527 = vmatprep.subr.bf16.mxu0 0
        %1528 = vmatpush1.bf16.msra.mxu0 %v754
        %1529 = vmatprep.subr.bf16.mxu0 0
        %1530 = vmatpush1.bf16.msra.mxu0 %v755
        %1531 = vmatprep.subr.bf16.mxu0 0
        %1532 = vmatpush1.bf16.msra.mxu0 %v756
        %1533 = vmatprep.subr.bf16.mxu0 0
        %1534 = vmatpush1.bf16.msra.mxu0 %v757
        %1535 = vmatprep.subr.bf16.mxu0 0
        %1536 = vmatpush1.bf16.msra.mxu0 %v758
        %1537 = vmatprep.subr.bf16.mxu0 0
        %1538 = vmatpush1.bf16.msra.mxu0 %v759
        %1539 = vmatprep.subr.bf16.mxu0 0
        %1540 = vmatpush1.bf16.msra.mxu0 0
        %1541 = vmatprep.subr.bf16.mxu0 0
        %1542 = vmatpush1.bf16.msra.mxu0 0
        %1543 = vmatprep.subr.bf16.mxu0 0
        %1544 = vmatpush1.bf16.msra.mxu0 0
        %1545 = vmatprep.subr.bf16.mxu0 0
        %1546 = vmatpush1.bf16.msra.mxu0 0
        %1547 = vmatprep.subr.bf16.mxu0 0
        %1548 = vmatpush1.bf16.msra.mxu0 0
        %1549 = vmatprep.subr.bf16.mxu0 0
        %1550 = vmatpush1.bf16.msra.mxu0 0
        %1551 = vmatprep.subr.bf16.mxu0 0
        %1552 = vmatpush1.bf16.msra.mxu0 0
        %1553 = vmatprep.subr.bf16.mxu0 0
        %1554 = vmatpush1.bf16.msra.mxu0 0
        %1555 = vmatprep.mubr.bf16.mxu0 0
        %1556 = vmatmul.mubr.bf16.gmra.mrb[0].mxu0 %v1268
        %v1557 = vpop.f32.mrb[0].mxu0
        %v1558 = vadd.f32 %v1397, %v1557
        %v1559 = vpop.f32.mrb[0].mxu0
        %v1560 = vpop.f32.mrb[0].mxu0
        %v1561 = vadd.f32 %v1400, %v1560
        %v1562 = vpop.f32.mrb[0].mxu0
        %1563 = vmatprep.mubr.bf16.mxu0 0
        %1564 = vmatmul.mubr.bf16.gmra.mrb[0].mxu0 %v1271
        %v1565 = vpop.f32.mrb[0].mxu0
        %v1566 = vadd.f32 %v1405, %v1565
        %v1567 = vpop.f32.mrb[0].mxu0
        %v1568 = vpop.f32.mrb[0].mxu0
        %v1569 = vadd.f32 %v1408, %v1568
        %v1570 = vpop.f32.mrb[0].mxu0
        %1571 = vmatprep.mubr.bf16.mxu0 0
        %1572 = vmatmul.mubr.bf16.gmra.mrb[0].mxu0 %v1274
        %v1573 = vpop.f32.mrb[0].mxu0
        %v1574 = vadd.f32 %v1413, %v1573
        %v1575 = vpop.f32.mrb[0].mxu0
        %v1576 = vpop.f32.mrb[0].mxu0
        %v1577 = vadd.f32 %v1416, %v1576
        %v1578 = vpop.f32.mrb[0].mxu0
        %1579 = vmatprep.mubr.bf16.mxu0 0
        %1580 = vmatmul.mubr.bf16.gmra.mrb[0].mxu0 %v1277
        %v1581 = vpop.f32.mrb[0].mxu0
        %v1582 = vadd.f32 %v1421, %v1581
        %v1583 = vpop.f32.mrb[0].mxu0
        %v1584 = vpop.f32.mrb[0].mxu0
        %v1585 = vadd.f32 %v1424, %v1584
        %v1586 = vpop.f32.mrb[0].mxu0
        %1587 = vmatprep.mubr.bf16.mxu0 0
        %1588 = vmatmul.mubr.bf16.gmra.mrb[0].mxu0 %v1280
        %v1589 = vpop.f32.mrb[0].mxu0
        %v1590 = vadd.f32 %v1429, %v1589
        %v1591 = vpop.f32.mrb[0].mxu0
        %v1592 = vpop.f32.mrb[0].mxu0
        %v1593 = vadd.f32 %v1432, %v1592
        %v1594 = vpop.f32.mrb[0].mxu0
        %1595 = vmatprep.mubr.bf16.mxu0 0
        %1596 = vmatmul.mubr.bf16.gmra.mrb[0].mxu0 %v1283
        %v1597 = vpop.f32.mrb[0].mxu0
        %v1598 = vadd.f32 %v1437, %v1597
        %v1599 = vpop.f32.mrb[0].mxu0
        %v1600 = vpop.f32.mrb[0].mxu0
        %v1601 = vadd.f32 %v1440, %v1600
        %v1602 = vpop.f32.mrb[0].mxu0
        %1603 = vmatprep.mubr.bf16.mxu0 0
        %1604 = vmatmul.mubr.bf16.gmra.mrb[0].mxu0 %v1286
        %v1605 = vpop.f32.mrb[0].mxu0
        %v1606 = vadd.f32 %v1445, %v1605
        %v1607 = vpop.f32.mrb[0].mxu0
        %v1608 = vpop.f32.mrb[0].mxu0
        %v1609 = vadd.f32 %v1448, %v1608
        %v1610 = vpop.f32.mrb[0].mxu0
        %1611 = vmatprep.mubr.bf16.mxu0 0
        %1612 = vmatmul.mubr.bf16.gmra.mrb[0].mxu0 %v1289
        %v1613 = vpop.f32.mrb[0].mxu0
        %v1614 = vadd.f32 %v1453, %v1613
        %v1615 = vpop.f32.mrb[0].mxu0
        %v1616 = vpop.f32.mrb[0].mxu0
        %v1617 = vadd.f32 %v1456, %v1616
        %v1618 = vpop.f32.mrb[0].mxu0
        %1619 = vmatprep.mubr.bf16.mxu0 0
        %1620 = vmatmul.mubr.bf16.gmra.mrb[0].mxu0 %v1292
        %v1621 = vpop.f32.mrb[0].mxu0
        %v1622 = vadd.f32 %v1461, %v1621
        %v1623 = vpop.f32.mrb[0].mxu0
        %v1624 = vpop.f32.mrb[0].mxu0
        %v1625 = vadd.f32 %v1464, %v1624
        %v1626 = vpop.f32.mrb[0].mxu0
        %1627 = vmatprep.mubr.bf16.mxu0 0
        %1628 = vmatmul.mubr.bf16.gmra.mrb[0].mxu0 %v1295
        %v1629 = vpop.f32.mrb[0].mxu0
        %v1630 = vadd.f32 %v1469, %v1629
        %v1631 = vpop.f32.mrb[0].mxu0
        %v1632 = vpop.f32.mrb[0].mxu0
        %v1633 = vadd.f32 %v1472, %v1632
        %v1634 = vpop.f32.mrb[0].mxu0
        %1635 = vmatprep.mubr.bf16.mxu0 0
        %1636 = vmatmul.mubr.bf16.gmra.mrb[0].mxu0 %v1298
        %v1637 = vpop.f32.mrb[0].mxu0
        %v1638 = vadd.f32 %v1477, %v1637
        %v1639 = vpop.f32.mrb[0].mxu0
        %v1640 = vpop.f32.mrb[0].mxu0
        %v1641 = vadd.f32 %v1480, %v1640
        %v1642 = vpop.f32.mrb[0].mxu0
        %1643 = vmatprep.mubr.bf16.mxu0 0
        %1644 = vmatmul.mubr.bf16.gmra.mrb[0].mxu0 %v1301
        %v1645 = vpop.f32.mrb[0].mxu0
        %v1646 = vadd.f32 %v1485, %v1645
        %v1647 = vpop.f32.mrb[0].mxu0
        %v1648 = vpop.f32.mrb[0].mxu0
        %v1649 = vadd.f32 %v1488, %v1648
        %v1650 = vpop.f32.mrb[0].mxu0
        %1651 = vmatprep.mubr.bf16.mxu0 0
        %1652 = vmatmul.mubr.bf16.gmra.mrb[0].mxu0 %v1304
        %v1653 = vpop.f32.mrb[0].mxu0
        %v1654 = vadd.f32 %v1493, %v1653
        %v1655 = vpop.f32.mrb[0].mxu0
        %v1656 = vpop.f32.mrb[0].mxu0
        %v1657 = vadd.f32 %v1496, %v1656
        %v1658 = vpop.f32.mrb[0].mxu0
        %1659 = vmatprep.mubr.bf16.mxu0 0
        %1660 = vmatmul.mubr.bf16.gmra.mrb[0].mxu0 %v1307
        %v1661 = vpop.f32.mrb[0].mxu0
        %v1662 = vadd.f32 %v1501, %v1661
        %v1663 = vpop.f32.mrb[0].mxu0
        %v1664 = vpop.f32.mrb[0].mxu0
        %v1665 = vadd.f32 %v1504, %v1664
        %v1666 = vpop.f32.mrb[0].mxu0
        %1667 = vmatprep.mubr.bf16.mxu0 0
        %1668 = vmatmul.mubr.bf16.gmra.mrb[0].mxu0 %v1310
        %v1669 = vpop.f32.mrb[0].mxu0
        %v1670 = vadd.f32 %v1509, %v1669
        %v1671 = vpop.f32.mrb[0].mxu0
        %v1672 = vpop.f32.mrb[0].mxu0
        %v1673 = vadd.f32 %v1512, %v1672
        %v1674 = vpop.f32.mrb[0].mxu0
        %1675 = vmatprep.mubr.bf16.mxu0 0
        %1676 = vmatmul.mubr.bf16.gmra.mrb[0].mxu0 %v1313
        %v1677 = vpop.f32.mrb[0].mxu0
        %v1678 = vadd.f32 %v1517, %v1677
        %v1679 = vpop.f32.mrb[0].mxu0
        %v1680 = vpop.f32.mrb[0].mxu0
        %v1681 = vadd.f32 %v1520, %v1680
        %v1682 = vpop.f32.mrb[0].mxu0
        %1683 = vdwg.mxu0
        %1684 = vmatprep.subr.bf16.mxu0 0
        %1685 = vmatpush1.bf16.msra.mxu0 %v760
        %1686 = vmatprep.subr.bf16.mxu0 0
        %1687 = vmatpush1.bf16.msra.mxu0 %v761
        %1688 = vmatprep.subr.bf16.mxu0 0
        %1689 = vmatpush1.bf16.msra.mxu0 %v762
        %1690 = vmatprep.subr.bf16.mxu0 0
        %1691 = vmatpush1.bf16.msra.mxu0 %v763
        %1692 = vmatprep.subr.bf16.mxu0 0
        %1693 = vmatpush1.bf16.msra.mxu0 %v764
        %1694 = vmatprep.subr.bf16.mxu0 0
        %1695 = vmatpush1.bf16.msra.mxu0 %v765
        %1696 = vmatprep.subr.bf16.mxu0 0
        %1697 = vmatpush1.bf16.msra.mxu0 %v766
        %1698 = vmatprep.subr.bf16.mxu0 0
        %1699 = vmatpush1.bf16.msra.mxu0 %v767
        %1700 = vmatprep.subr.bf16.mxu0 0
        %1701 = vmatpush1.bf16.msra.mxu0 %v768
        %1702 = vmatprep.subr.bf16.mxu0 0
        %1703 = vmatpush1.bf16.msra.mxu0 %v769
        %1704 = vmatprep.subr.bf16.mxu0 0
        %1705 = vmatpush1.bf16.msra.mxu0 %v770
        %1706 = vmatprep.subr.bf16.mxu0 0
        %1707 = vmatpush1.bf16.msra.mxu0 %v771
        %1708 = vmatprep.subr.bf16.mxu0 0
        %1709 = vmatpush1.bf16.msra.mxu0 %v772
        %1710 = vmatprep.subr.bf16.mxu0 0
        %1711 = vmatpush1.bf16.msra.mxu0 %v773
        %1712 = vmatprep.subr.bf16.mxu0 0
        %1713 = vmatpush1.bf16.msra.mxu0 %v774
        %1714 = vmatprep.subr.bf16.mxu0 0
        %1715 = vmatpush1.bf16.msra.mxu0 %v775
        %1716 = vmatprep.mubr.bf16.mxu0 %v1267
        %1717 = vmatmul.mubr.bf16.gmra.mrb[0].mxu0 %v1266
        %v1718 = vpop.f32.mrb[0].mxu0
        %v1719 = vadd.f32 0.0, %v1718
        %v1720 = vpop.f32.mrb[0].mxu0
        %v1721 = vpop.f32.mrb[0].mxu0
        %v1722 = vadd.f32 0.0, %v1721
        %v1723 = vpop.f32.mrb[0].mxu0
        %1724 = vmatprep.mubr.bf16.mxu0 %v1270
        %1725 = vmatmul.mubr.bf16.gmra.mrb[0].mxu0 %v1269
        %v1726 = vpop.f32.mrb[0].mxu0
        %v1727 = vadd.f32 0.0, %v1726
        %v1728 = vpop.f32.mrb[0].mxu0
        %v1729 = vpop.f32.mrb[0].mxu0
        %v1730 = vadd.f32 0.0, %v1729
        %v1731 = vpop.f32.mrb[0].mxu0
        %1732 = vmatprep.mubr.bf16.mxu0 %v1273
        %1733 = vmatmul.mubr.bf16.gmra.mrb[0].mxu0 %v1272
        %v1734 = vpop.f32.mrb[0].mxu0
        %v1735 = vadd.f32 0.0, %v1734
        %v1736 = vpop.f32.mrb[0].mxu0
        %v1737 = vpop.f32.mrb[0].mxu0
        %v1738 = vadd.f32 0.0, %v1737
        %v1739 = vpop.f32.mrb[0].mxu0
        %1740 = vmatprep.mubr.bf16.mxu0 %v1276
        %1741 = vmatmul.mubr.bf16.gmra.mrb[0].mxu0 %v1275
        %v1742 = vpop.f32.mrb[0].mxu0
        %v1743 = vadd.f32 0.0, %v1742
        %v1744 = vpop.f32.mrb[0].mxu0
        %v1745 = vpop.f32.mrb[0].mxu0
        %v1746 = vadd.f32 0.0, %v1745
        %v1747 = vpop.f32.mrb[0].mxu0
        %1748 = vmatprep.mubr.bf16.mxu0 %v1279
        %1749 = vmatmul.mubr.bf16.gmra.mrb[0].mxu0 %v1278
        %v1750 = vpop.f32.mrb[0].mxu0
        %v1751 = vadd.f32 0.0, %v1750
        %v1752 = vpop.f32.mrb[0].mxu0
        %v1753 = vpop.f32.mrb[0].mxu0
        %v1754 = vadd.f32 0.0, %v1753
        %v1755 = vpop.f32.mrb[0].mxu0
        %1756 = vmatprep.mubr.bf16.mxu0 %v1282
        %1757 = vmatmul.mubr.bf16.gmra.mrb[0].mxu0 %v1281
        %v1758 = vpop.f32.mrb[0].mxu0
        %v1759 = vadd.f32 0.0, %v1758
        %v1760 = vpop.f32.mrb[0].mxu0
        %v1761 = vpop.f32.mrb[0].mxu0
        %v1762 = vadd.f32 0.0, %v1761
        %v1763 = vpop.f32.mrb[0].mxu0
        %1764 = vmatprep.mubr.bf16.mxu0 %v1285
        %1765 = vmatmul.mubr.bf16.gmra.mrb[0].mxu0 %v1284
        %v1766 = vpop.f32.mrb[0].mxu0
        %v1767 = vadd.f32 0.0, %v1766
        %v1768 = vpop.f32.mrb[0].mxu0
        %v1769 = vpop.f32.mrb[0].mxu0
        %v1770 = vadd.f32 0.0, %v1769
        %v1771 = vpop.f32.mrb[0].mxu0
        %1772 = vmatprep.mubr.bf16.mxu0 %v1288
        %1773 = vmatmul.mubr.bf16.gmra.mrb[0].mxu0 %v1287
        %v1774 = vpop.f32.mrb[0].mxu0
        %v1775 = vadd.f32 0.0, %v1774
        %v1776 = vpop.f32.mrb[0].mxu0
        %v1777 = vpop.f32.mrb[0].mxu0
        %v1778 = vadd.f32 0.0, %v1777
        %v1779 = vpop.f32.mrb[0].mxu0
        %1780 = vmatprep.mubr.bf16.mxu0 %v1291
        %1781 = vmatmul.mubr.bf16.gmra.mrb[0].mxu0 %v1290
        %v1782 = vpop.f32.mrb[0].mxu0
        %v1783 = vadd.f32 0.0, %v1782
        %v1784 = vpop.f32.mrb[0].mxu0
        %v1785 = vpop.f32.mrb[0].mxu0
        %v1786 = vadd.f32 0.0, %v1785
        %v1787 = vpop.f32.mrb[0].mxu0
        %1788 = vmatprep.mubr.bf16.mxu0 %v1294
        %1789 = vmatmul.mubr.bf16.gmra.mrb[0].mxu0 %v1293
        %v1790 = vpop.f32.mrb[0].mxu0
        %v1791 = vadd.f32 0.0, %v1790
        %v1792 = vpop.f32.mrb[0].mxu0
        %v1793 = vpop.f32.mrb[0].mxu0
        %v1794 = vadd.f32 0.0, %v1793
        %v1795 = vpop.f32.mrb[0].mxu0
        %1796 = vmatprep.mubr.bf16.mxu0 %v1297
        %1797 = vmatmul.mubr.bf16.gmra.mrb[0].mxu0 %v1296
        %v1798 = vpop.f32.mrb[0].mxu0
        %v1799 = vadd.f32 0.0, %v1798
        %v1800 = vpop.f32.mrb[0].mxu0
        %v1801 = vpop.f32.mrb[0].mxu0
        %v1802 = vadd.f32 0.0, %v1801
        %v1803 = vpop.f32.mrb[0].mxu0
        %1804 = vmatprep.mubr.bf16.mxu0 %v1300
        %1805 = vmatmul.mubr.bf16.gmra.mrb[0].mxu0 %v1299
        %v1806 = vpop.f32.mrb[0].mxu0
        %v1807 = vadd.f32 0.0, %v1806
        %v1808 = vpop.f32.mrb[0].mxu0
        %v1809 = vpop.f32.mrb[0].mxu0
        %v1810 = vadd.f32 0.0, %v1809
        %v1811 = vpop.f32.mrb[0].mxu0
        %1812 = vmatprep.mubr.bf16.mxu0 %v1303
        %1813 = vmatmul.mubr.bf16.gmra.mrb[0].mxu0 %v1302
        %v1814 = vpop.f32.mrb[0].mxu0
        %v1815 = vadd.f32 0.0, %v1814
        %v1816 = vpop.f32.mrb[0].mxu0
        %v1817 = vpop.f32.mrb[0].mxu0
        %v1818 = vadd.f32 0.0, %v1817
        %v1819 = vpop.f32.mrb[0].mxu0
        %1820 = vmatprep.mubr.bf16.mxu0 %v1306
        %1821 = vmatmul.mubr.bf16.gmra.mrb[0].mxu0 %v1305
        %v1822 = vpop.f32.mrb[0].mxu0
        %v1823 = vadd.f32 0.0, %v1822
        %v1824 = vpop.f32.mrb[0].mxu0
        %v1825 = vpop.f32.mrb[0].mxu0
        %v1826 = vadd.f32 0.0, %v1825
        %v1827 = vpop.f32.mrb[0].mxu0
        %1828 = vmatprep.mubr.bf16.mxu0 %v1309
        %1829 = vmatmul.mubr.bf16.gmra.mrb[0].mxu0 %v1308
        %v1830 = vpop.f32.mrb[0].mxu0
        %v1831 = vadd.f32 0.0, %v1830
        %v1832 = vpop.f32.mrb[0].mxu0
        %v1833 = vpop.f32.mrb[0].mxu0
        %v1834 = vadd.f32 0.0, %v1833
        %v1835 = vpop.f32.mrb[0].mxu0
        %1836 = vmatprep.mubr.bf16.mxu0 %v1312
        %1837 = vmatmul.mubr.bf16.gmra.mrb[0].mxu0 %v1311
        %v1838 = vpop.f32.mrb[0].mxu0
        %v1839 = vadd.f32 0.0, %v1838
        %v1840 = vpop.f32.mrb[0].mxu0
        %v1841 = vpop.f32.mrb[0].mxu0
        %v1842 = vadd.f32 0.0, %v1841
        %v1843 = vpop.f32.mrb[0].mxu0
        %1844 = vdwg.mxu0
        %1845 = vmatprep.subr.bf16.mxu0 0
        %1846 = vmatpush1.bf16.msra.mxu0 %v776
        %1847 = vmatprep.subr.bf16.mxu0 0
        %1848 = vmatpush1.bf16.msra.mxu0 %v777
        %1849 = vmatprep.subr.bf16.mxu0 0
        %1850 = vmatpush1.bf16.msra.mxu0 %v778
        %1851 = vmatprep.subr.bf16.mxu0 0
        %1852 = vmatpush1.bf16.msra.mxu0 %v779
        %1853 = vmatprep.subr.bf16.mxu0 0
        %1854 = vmatpush1.bf16.msra.mxu0 %v780
        %1855 = vmatprep.subr.bf16.mxu0 0
        %1856 = vmatpush1.bf16.msra.mxu0 %v781
        %1857 = vmatprep.subr.bf16.mxu0 0
        %1858 = vmatpush1.bf16.msra.mxu0 %v782
        %1859 = vmatprep.subr.bf16.mxu0 0
        %1860 = vmatpush1.bf16.msra.mxu0 %v783
        %1861 = vmatprep.subr.bf16.mxu0 0
        %1862 = vmatpush1.bf16.msra.mxu0 0
        %1863 = vmatprep.subr.bf16.mxu0 0
        %1864 = vmatpush1.bf16.msra.mxu0 0
        %1865 = vmatprep.subr.bf16.mxu0 0
        %1866 = vmatpush1.bf16.msra.mxu0 0
        %1867 = vmatprep.subr.bf16.mxu0 0
        %1868 = vmatpush1.bf16.msra.mxu0 0
        %1869 = vmatprep.subr.bf16.mxu0 0
        %1870 = vmatpush1.bf16.msra.mxu0 0
        %1871 = vmatprep.subr.bf16.mxu0 0
        %1872 = vmatpush1.bf16.msra.mxu0 0
        %1873 = vmatprep.subr.bf16.mxu0 0
        %1874 = vmatpush1.bf16.msra.mxu0 0
        %1875 = vmatprep.subr.bf16.mxu0 0
        %1876 = vmatpush1.bf16.msra.mxu0 0
        %1877 = vmatprep.mubr.bf16.mxu0 0
        %1878 = vmatmul.mubr.bf16.gmra.mrb[0].mxu0 %v1268
        %v1879 = vpop.f32.mrb[0].mxu0
        %v1880 = vadd.f32 %v1719, %v1879
        %v1881 = vpop.f32.mrb[0].mxu0
        %v1882 = vpop.f32.mrb[0].mxu0
        %v1883 = vadd.f32 %v1722, %v1882
        %v1884 = vpop.f32.mrb[0].mxu0
        %1885 = vmatprep.mubr.bf16.mxu0 0
        %1886 = vmatmul.mubr.bf16.gmra.mrb[0].mxu0 %v1271
        %v1887 = vpop.f32.mrb[0].mxu0
        %v1888 = vadd.f32 %v1727, %v1887
        %v1889 = vpop.f32.mrb[0].mxu0
        %v1890 = vpop.f32.mrb[0].mxu0
        %v1891 = vadd.f32 %v1730, %v1890
        %v1892 = vpop.f32.mrb[0].mxu0
        %1893 = vmatprep.mubr.bf16.mxu0 0
        %1894 = vmatmul.mubr.bf16.gmra.mrb[0].mxu0 %v1274
        %v1895 = vpop.f32.mrb[0].mxu0
        %v1896 = vadd.f32 %v1735, %v1895
        %v1897 = vpop.f32.mrb[0].mxu0
        %v1898 = vpop.f32.mrb[0].mxu0
        %v1899 = vadd.f32 %v1738, %v1898
        %v1900 = vpop.f32.mrb[0].mxu0
        %1901 = vmatprep.mubr.bf16.mxu0 0
        %1902 = vmatmul.mubr.bf16.gmra.mrb[0].mxu0 %v1277
        %v1903 = vpop.f32.mrb[0].mxu0
        %v1904 = vadd.f32 %v1743, %v1903
        %v1905 = vpop.f32.mrb[0].mxu0
        %v1906 = vpop.f32.mrb[0].mxu0
        %v1907 = vadd.f32 %v1746, %v1906
        %v1908 = vpop.f32.mrb[0].mxu0
        %1909 = vmatprep.mubr.bf16.mxu0 0
        %1910 = vmatmul.mubr.bf16.gmra.mrb[0].mxu0 %v1280
        %v1911 = vpop.f32.mrb[0].mxu0
        %v1912 = vadd.f32 %v1751, %v1911
        %v1913 = vpop.f32.mrb[0].mxu0
        %v1914 = vpop.f32.mrb[0].mxu0
        %v1915 = vadd.f32 %v1754, %v1914
        %v1916 = vpop.f32.mrb[0].mxu0
        %1917 = vmatprep.mubr.bf16.mxu0 0
        %1918 = vmatmul.mubr.bf16.gmra.mrb[0].mxu0 %v1283
        %v1919 = vpop.f32.mrb[0].mxu0
        %v1920 = vadd.f32 %v1759, %v1919
        %v1921 = vpop.f32.mrb[0].mxu0
        %v1922 = vpop.f32.mrb[0].mxu0
        %v1923 = vadd.f32 %v1762, %v1922
        %v1924 = vpop.f32.mrb[0].mxu0
        %1925 = vmatprep.mubr.bf16.mxu0 0
        %1926 = vmatmul.mubr.bf16.gmra.mrb[0].mxu0 %v1286
        %v1927 = vpop.f32.mrb[0].mxu0
        %v1928 = vadd.f32 %v1767, %v1927
        %v1929 = vpop.f32.mrb[0].mxu0
        %v1930 = vpop.f32.mrb[0].mxu0
        %v1931 = vadd.f32 %v1770, %v1930
        %v1932 = vpop.f32.mrb[0].mxu0
        %1933 = vmatprep.mubr.bf16.mxu0 0
        %1934 = vmatmul.mubr.bf16.gmra.mrb[0].mxu0 %v1289
        %v1935 = vpop.f32.mrb[0].mxu0
        %v1936 = vadd.f32 %v1775, %v1935
        %v1937 = vpop.f32.mrb[0].mxu0
        %v1938 = vpop.f32.mrb[0].mxu0
        %v1939 = vadd.f32 %v1778, %v1938
        %v1940 = vpop.f32.mrb[0].mxu0
        %1941 = vmatprep.mubr.bf16.mxu0 0
        %1942 = vmatmul.mubr.bf16.gmra.mrb[0].mxu0 %v1292
        %v1943 = vpop.f32.mrb[0].mxu0
        %v1944 = vadd.f32 %v1783, %v1943
        %v1945 = vpop.f32.mrb[0].mxu0
        %v1946 = vpop.f32.mrb[0].mxu0
        %v1947 = vadd.f32 %v1786, %v1946
        %v1948 = vpop.f32.mrb[0].mxu0
        %1949 = vmatprep.mubr.bf16.mxu0 0
        %1950 = vmatmul.mubr.bf16.gmra.mrb[0].mxu0 %v1295
        %v1951 = vpop.f32.mrb[0].mxu0
        %v1952 = vadd.f32 %v1791, %v1951
        %v1953 = vpop.f32.mrb[0].mxu0
        %v1954 = vpop.f32.mrb[0].mxu0
        %v1955 = vadd.f32 %v1794, %v1954
        %v1956 = vpop.f32.mrb[0].mxu0
        %1957 = vmatprep.mubr.bf16.mxu0 0
        %1958 = vmatmul.mubr.bf16.gmra.mrb[0].mxu0 %v1298
        %v1959 = vpop.f32.mrb[0].mxu0
        %v1960 = vadd.f32 %v1799, %v1959
        %v1961 = vpop.f32.mrb[0].mxu0
        %v1962 = vpop.f32.mrb[0].mxu0
        %v1963 = vadd.f32 %v1802, %v1962
        %v1964 = vpop.f32.mrb[0].mxu0
        %1965 = vmatprep.mubr.bf16.mxu0 0
        %1966 = vmatmul.mubr.bf16.gmra.mrb[0].mxu0 %v1301
        %v1967 = vpop.f32.mrb[0].mxu0
        %v1968 = vadd.f32 %v1807, %v1967
        %v1969 = vpop.f32.mrb[0].mxu0
        %v1970 = vpop.f32.mrb[0].mxu0
        %v1971 = vadd.f32 %v1810, %v1970
        %v1972 = vpop.f32.mrb[0].mxu0
        %1973 = vmatprep.mubr.bf16.mxu0 0
        %1974 = vmatmul.mubr.bf16.gmra.mrb[0].mxu0 %v1304
        %v1975 = vpop.f32.mrb[0].mxu0
        %v1976 = vadd.f32 %v1815, %v1975
        %v1977 = vpop.f32.mrb[0].mxu0
        %v1978 = vpop.f32.mrb[0].mxu0
        %v1979 = vadd.f32 %v1818, %v1978
        %v1980 = vpop.f32.mrb[0].mxu0
        %1981 = vmatprep.mubr.bf16.mxu0 0
        %1982 = vmatmul.mubr.bf16.gmra.mrb[0].mxu0 %v1307
        %v1983 = vpop.f32.mrb[0].mxu0
        %v1984 = vadd.f32 %v1823, %v1983
        %v1985 = vpop.f32.mrb[0].mxu0
        %v1986 = vpop.f32.mrb[0].mxu0
        %v1987 = vadd.f32 %v1826, %v1986
        %v1988 = vpop.f32.mrb[0].mxu0
        %1989 = vmatprep.mubr.bf16.mxu0 0
        %1990 = vmatmul.mubr.bf16.gmra.mrb[0].mxu0 %v1310
        %v1991 = vpop.f32.mrb[0].mxu0
        %v1992 = vadd.f32 %v1831, %v1991
        %v1993 = vpop.f32.mrb[0].mxu0
        %v1994 = vpop.f32.mrb[0].mxu0
        %v1995 = vadd.f32 %v1834, %v1994
        %v1996 = vpop.f32.mrb[0].mxu0
        %1997 = vmatprep.mubr.bf16.mxu0 0
        %1998 = vmatmul.mubr.bf16.gmra.mrb[0].mxu0 %v1313
        %v1999 = vpop.f32.mrb[0].mxu0
        %v2000 = vadd.f32 %v1839, %v1999
        %v2001 = vpop.f32.mrb[0].mxu0
        %v2002 = vpop.f32.mrb[0].mxu0
        %v2003 = vadd.f32 %v1842, %v2002
        %v2004 = vpop.f32.mrb[0].mxu0
        %2005 = vdwg.mxu0
        %v2006 = vld [vmem:[%s3] sm:$0xf]
        %v2007 = vld [vmem:[%s3 + $0x4] sm:$0xf]
        %v2009 = vlaneseq
        %v2010 = vshrl.u32 %v2009, 7
        %v2011 = vsub.s32 0, %v2010
        %v2012 = vrot.slane %v639, %v2011
        %v2030 = vunpack.c.l.b16 %v527
        %v2031 = vunpack.c.l.b16 %v528
        %v2032 = vunpack.c.l.b16 %v529
        %v2033 = vunpack.c.l.b16 %v530
        %v2034 = vunpack.c.l.b16 %v531
        %v2035 = vunpack.c.l.b16 %v532
        %v2036 = vunpack.c.l.b16 %v533
        %v2037 = vunpack.c.l.b16 %v534
        %v2038 = vunpack.c.l.b16 %v535
        %v2039 = vunpack.c.l.b16 %v536
        %v2040 = vunpack.c.l.b16 %v537
        %v2041 = vunpack.c.l.b16 %v538
        %v2042 = vunpack.c.l.b16 %v539
        %v2043 = vunpack.c.l.b16 %v540
        %v2044 = vunpack.c.l.b16 %v541
        %v2045 = vunpack.c.l.b16 %v542
        %v2046 = vpack.c.b16 %v2031, %v2030
        %v2047 = vpack.c.b16 %v2033, %v2032
        %v2048 = vpack.c.b16 %v2035, %v2034
        %v2049 = vpack.c.b16 %v2037, %v2036
        %v2050 = vpack.c.b16 %v2039, %v2038
        %v2051 = vpack.c.b16 %v2041, %v2040
        %v2052 = vpack.c.b16 %v2043, %v2042
        %v2053 = vpack.c.b16 %v2045, %v2044
        %v2056 = vunpack.c.l.b16 %v2006
        %v2057 = vunpack.c.l.b16 %v2007
        %v2058 = vpack.c.b16 %v2057, %v2056
        %vm2060 = vcmask 130048
        %v2062 = vsel %vm2060, %v2046, 0
        %v2065 = vsel %vm2060, %v2047, 0
        %v2068 = vsel %vm2060, %v2048, 0
        %v2071 = vsel %vm2060, %v2049, 0
        %v2074 = vsel %vm2060, %v2050, 0
        %v2077 = vsel %vm2060, %v2051, 0
        %v2080 = vsel %vm2060, %v2052, 0
        %v2083 = vsel %vm2060, %v2053, 0
        %2085 = vmatprep.subr.bf16.mxu0 0
        %2086 = vmatpush1.bf16.msra.mxu0 %v2058
        %2087 = vmatprep.subr.bf16.mxu0 0
        %2088 = vmatpush1.bf16.msra.mxu0 0
        %2089 = vmatprep.subr.bf16.mxu0 0
        %2090 = vmatpush1.bf16.msra.mxu0 0
        %2091 = vmatprep.subr.bf16.mxu0 0
        %2092 = vmatpush1.bf16.msra.mxu0 0
        %2093 = vmatprep.subr.bf16.mxu0 0
        %2094 = vmatpush1.bf16.msra.mxu0 0
        %2095 = vmatprep.subr.bf16.mxu0 0
        %2096 = vmatpush1.bf16.msra.mxu0 0
        %2097 = vmatprep.subr.bf16.mxu0 0
        %2098 = vmatpush1.bf16.msra.mxu0 0
        %2099 = vmatprep.subr.bf16.mxu0 0
        %2100 = vmatpush1.bf16.msra.mxu0 0
        %2101 = vmatprep.subr.bf16.mxu0 0
        %2102 = vmatpush1.bf16.msra.mxu0 0
        %2103 = vmatprep.subr.bf16.mxu0 0
        %2104 = vmatpush1.bf16.msra.mxu0 0
        %2105 = vmatprep.subr.bf16.mxu0 0
        %2106 = vmatpush1.bf16.msra.mxu0 0
        %2107 = vmatprep.subr.bf16.mxu0 0
        %2108 = vmatpush1.bf16.msra.mxu0 0
        %2109 = vmatprep.subr.bf16.mxu0 0
        %2110 = vmatpush1.bf16.msra.mxu0 0
        %2111 = vmatprep.subr.bf16.mxu0 0
        %2112 = vmatpush1.bf16.msra.mxu0 0
        %2113 = vmatprep.subr.bf16.mxu0 0
        %2114 = vmatpush1.bf16.msra.mxu0 0
        %2115 = vmatprep.subr.bf16.mxu0 0
        %2116 = vmatpush1.bf16.msra.mxu0 0
        %2117 = vmatprep.mubr.bf16.mxu0 0
        %2118 = vmatmul.mubr.bf16.gmra.mrb[0].mxu0 %v2062
        %v2119 = vpop.f32.mrb[0].mxu0
        %v2120 = vadd.f32 %v2012, %v2119
        %v2121 = vpop.f32.mrb[0].mxu0
        %v2122 = vpop.f32.mrb[0].mxu0
        %v2123 = vadd.f32 %v2012, %v2122
        %v2124 = vpop.f32.mrb[0].mxu0
        %2125 = vmatprep.mubr.bf16.mxu0 0
        %2126 = vmatmul.mubr.bf16.gmra.mrb[0].mxu0 %v2065
        %v2127 = vpop.f32.mrb[0].mxu0
        %v2128 = vadd.f32 %v2012, %v2127
        %v2129 = vpop.f32.mrb[0].mxu0
        %v2130 = vpop.f32.mrb[0].mxu0
        %v2131 = vadd.f32 %v2012, %v2130
        %v2132 = vpop.f32.mrb[0].mxu0
        %2133 = vmatprep.mubr.bf16.mxu0 0
        %2134 = vmatmul.mubr.bf16.gmra.mrb[0].mxu0 %v2068
        %v2135 = vpop.f32.mrb[0].mxu0
        %v2136 = vadd.f32 %v2012, %v2135
        %v2137 = vpop.f32.mrb[0].mxu0
        %v2138 = vpop.f32.mrb[0].mxu0
        %v2139 = vadd.f32 %v2012, %v2138
        %v2140 = vpop.f32.mrb[0].mxu0
        %2141 = vmatprep.mubr.bf16.mxu0 0
        %2142 = vmatmul.mubr.bf16.gmra.mrb[0].mxu0 %v2071
        %v2143 = vpop.f32.mrb[0].mxu0
        %v2144 = vadd.f32 %v2012, %v2143
        %v2145 = vpop.f32.mrb[0].mxu0
        %v2146 = vpop.f32.mrb[0].mxu0
        %v2147 = vadd.f32 %v2012, %v2146
        %v2148 = vpop.f32.mrb[0].mxu0
        %2149 = vmatprep.mubr.bf16.mxu0 0
        %2150 = vmatmul.mubr.bf16.gmra.mrb[0].mxu0 %v2074
        %v2151 = vpop.f32.mrb[0].mxu0
        %v2152 = vadd.f32 %v2012, %v2151
        %v2153 = vpop.f32.mrb[0].mxu0
        %v2154 = vpop.f32.mrb[0].mxu0
        %v2155 = vadd.f32 %v2012, %v2154
        %v2156 = vpop.f32.mrb[0].mxu0
        %2157 = vmatprep.mubr.bf16.mxu0 0
        %2158 = vmatmul.mubr.bf16.gmra.mrb[0].mxu0 %v2077
        %v2159 = vpop.f32.mrb[0].mxu0
        %v2160 = vadd.f32 %v2012, %v2159
        %v2161 = vpop.f32.mrb[0].mxu0
        %v2162 = vpop.f32.mrb[0].mxu0
        %v2163 = vadd.f32 %v2012, %v2162
        %v2164 = vpop.f32.mrb[0].mxu0
        %2165 = vmatprep.mubr.bf16.mxu0 0
        %2166 = vmatmul.mubr.bf16.gmra.mrb[0].mxu0 %v2080
        %v2167 = vpop.f32.mrb[0].mxu0
        %v2168 = vadd.f32 %v2012, %v2167
        %v2169 = vpop.f32.mrb[0].mxu0
        %v2170 = vpop.f32.mrb[0].mxu0
        %v2171 = vadd.f32 %v2012, %v2170
        %v2172 = vpop.f32.mrb[0].mxu0
        %2173 = vmatprep.mubr.bf16.mxu0 0
        %2174 = vmatmul.mubr.bf16.gmra.mrb[0].mxu0 %v2083
        %v2175 = vpop.f32.mrb[0].mxu0
        %v2176 = vadd.f32 %v2012, %v2175
        %v2177 = vpop.f32.mrb[0].mxu0
        %v2178 = vpop.f32.mrb[0].mxu0
        %v2179 = vadd.f32 %v2012, %v2178
        %v2180 = vpop.f32.mrb[0].mxu0
        %2181 = vdwg.mxu0
        %v2182 = vpack.c.bf16 %v1047, %v1044
        %v2183 = vpack.c.bf16 %v1055, %v1052
        %v2184 = vpack.c.bf16 %v1063, %v1060
        %v2185 = vpack.c.bf16 %v1071, %v1068
        %v2186 = vpack.c.bf16 %v1079, %v1076
        %v2187 = vpack.c.bf16 %v1087, %v1084
        %v2188 = vpack.c.bf16 %v1095, %v1092
        %v2189 = vpack.c.bf16 %v1103, %v1100
        %v2190 = vld [vmem:[%s4] sm:$0xf]
        %v2191 = vld [vmem:[%s4 + $0x4] sm:$0xf]
        %v2192 = vld [vmem:[%s4 + $0x8] sm:$0xf]
        %v2193 = vld [vmem:[%s4 + $0xc] sm:$0xf]
        %v2198 = vunpack.c.l.b16 %v2190
        %v2199 = vunpack.c.l.b16 %v2191
        %v2200 = vunpack.c.l.b16 %v2192
        %v2201 = vunpack.c.l.b16 %v2193
        %v2202 = vpack.c.b16 %v2199, %v2198
        %v2203 = vpack.c.b16 %v2201, %v2200
        %vm2206 = vcmask 261120
        %v2208 = vsel %vm2206, %v2182, 0
        %v2211 = vsel %vm2206, %v2183, 0
        %v2214 = vsel %vm2206, %v2184, 0
        %v2217 = vsel %vm2206, %v2185, 0
        %v2220 = vsel %vm2206, %v2186, 0
        %v2223 = vsel %vm2206, %v2187, 0
        %v2226 = vsel %vm2206, %v2188, 0
        %v2229 = vsel %vm2206, %v2189, 0
        %2231 = vmatprep.subr.bf16.mxu0 0
        %2232 = vmatpush1.bf16.msra.mxu0 %v2202
        %2233 = vmatprep.subr.bf16.mxu0 0
        %2234 = vmatpush1.bf16.msra.mxu0 %v2203
        %2235 = vmatprep.subr.bf16.mxu0 0
        %2236 = vmatpush1.bf16.msra.mxu0 0
        %2237 = vmatprep.subr.bf16.mxu0 0
        %2238 = vmatpush1.bf16.msra.mxu0 0
        %2239 = vmatprep.subr.bf16.mxu0 0
        %2240 = vmatpush1.bf16.msra.mxu0 0
        %2241 = vmatprep.subr.bf16.mxu0 0
        %2242 = vmatpush1.bf16.msra.mxu0 0
        %2243 = vmatprep.subr.bf16.mxu0 0
        %2244 = vmatpush1.bf16.msra.mxu0 0
        %2245 = vmatprep.subr.bf16.mxu0 0
        %2246 = vmatpush1.bf16.msra.mxu0 0
        %2247 = vmatprep.subr.bf16.mxu0 0
        %2248 = vmatpush1.bf16.msra.mxu0 0
        %2249 = vmatprep.subr.bf16.mxu0 0
        %2250 = vmatpush1.bf16.msra.mxu0 0
        %2251 = vmatprep.subr.bf16.mxu0 0
        %2252 = vmatpush1.bf16.msra.mxu0 0
        %2253 = vmatprep.subr.bf16.mxu0 0
        %2254 = vmatpush1.bf16.msra.mxu0 0
        %2255 = vmatprep.subr.bf16.mxu0 0
        %2256 = vmatpush1.bf16.msra.mxu0 0
        %2257 = vmatprep.subr.bf16.mxu0 0
        %2258 = vmatpush1.bf16.msra.mxu0 0
        %2259 = vmatprep.subr.bf16.mxu0 0
        %2260 = vmatpush1.bf16.msra.mxu0 0
        %2261 = vmatprep.subr.bf16.mxu0 0
        %2262 = vmatpush1.bf16.msra.mxu0 0
        %2263 = vmatprep.mubr.bf16.mxu0 0
        %2264 = vmatmul.mubr.bf16.gmra.mrb[0].mxu0 %v2208
        %v2265 = vpop.f32.mrb[0].mxu0
        %v2266 = vadd.f32 0.0, %v2265
        %v2267 = vpop.f32.mrb[0].mxu0
        %v2268 = vpop.f32.mrb[0].mxu0
        %v2269 = vadd.f32 0.0, %v2268
        %v2270 = vpop.f32.mrb[0].mxu0
        %2271 = vmatprep.mubr.bf16.mxu0 0
        %2272 = vmatmul.mubr.bf16.gmra.mrb[0].mxu0 %v2211
        %v2273 = vpop.f32.mrb[0].mxu0
        %v2274 = vadd.f32 0.0, %v2273
        %v2275 = vpop.f32.mrb[0].mxu0
        %v2276 = vpop.f32.mrb[0].mxu0
        %v2277 = vadd.f32 0.0, %v2276
        %v2278 = vpop.f32.mrb[0].mxu0
        %2279 = vmatprep.mubr.bf16.mxu0 0
        %2280 = vmatmul.mubr.bf16.gmra.mrb[0].mxu0 %v2214
        %v2281 = vpop.f32.mrb[0].mxu0
        %v2282 = vadd.f32 0.0, %v2281
        %v2283 = vpop.f32.mrb[0].mxu0
        %v2284 = vpop.f32.mrb[0].mxu0
        %v2285 = vadd.f32 0.0, %v2284
        %v2286 = vpop.f32.mrb[0].mxu0
        %2287 = vmatprep.mubr.bf16.mxu0 0
        %2288 = vmatmul.mubr.bf16.gmra.mrb[0].mxu0 %v2217
        %v2289 = vpop.f32.mrb[0].mxu0
        %v2290 = vadd.f32 0.0, %v2289
        %v2291 = vpop.f32.mrb[0].mxu0
        %v2292 = vpop.f32.mrb[0].mxu0
        %v2293 = vadd.f32 0.0, %v2292
        %v2294 = vpop.f32.mrb[0].mxu0
        %2295 = vmatprep.mubr.bf16.mxu0 0
        %2296 = vmatmul.mubr.bf16.gmra.mrb[0].mxu0 %v2220
        %v2297 = vpop.f32.mrb[0].mxu0
        %v2298 = vadd.f32 0.0, %v2297
        %v2299 = vpop.f32.mrb[0].mxu0
        %v2300 = vpop.f32.mrb[0].mxu0
        %v2301 = vadd.f32 0.0, %v2300
        %v2302 = vpop.f32.mrb[0].mxu0
        %2303 = vmatprep.mubr.bf16.mxu0 0
        %2304 = vmatmul.mubr.bf16.gmra.mrb[0].mxu0 %v2223
        %v2305 = vpop.f32.mrb[0].mxu0
        %v2306 = vadd.f32 0.0, %v2305
        %v2307 = vpop.f32.mrb[0].mxu0
        %v2308 = vpop.f32.mrb[0].mxu0
        %v2309 = vadd.f32 0.0, %v2308
        %v2310 = vpop.f32.mrb[0].mxu0
        %2311 = vmatprep.mubr.bf16.mxu0 0
        %2312 = vmatmul.mubr.bf16.gmra.mrb[0].mxu0 %v2226
        %v2313 = vpop.f32.mrb[0].mxu0
        %v2314 = vadd.f32 0.0, %v2313
        %v2315 = vpop.f32.mrb[0].mxu0
        %v2316 = vpop.f32.mrb[0].mxu0
        %v2317 = vadd.f32 0.0, %v2316
        %v2318 = vpop.f32.mrb[0].mxu0
        %2319 = vmatprep.mubr.bf16.mxu0 0
        %2320 = vmatmul.mubr.bf16.gmra.mrb[0].mxu0 %v2229
        %v2321 = vpop.f32.mrb[0].mxu0
        %v2322 = vadd.f32 0.0, %v2321
        %v2323 = vpop.f32.mrb[0].mxu0
        %v2324 = vpop.f32.mrb[0].mxu0
        %v2325 = vadd.f32 0.0, %v2324
        %v2326 = vpop.f32.mrb[0].mxu0
        %2327 = vdwg.mxu0
        %v2328 = vadd.f32 %v2120, %v2266
        %v2329 = vadd.f32 %v2123, %v2269
        %v2330 = vadd.f32 %v2128, %v2274
        %v2331 = vadd.f32 %v2131, %v2277
        %v2332 = vadd.f32 %v2136, %v2282
        %v2333 = vadd.f32 %v2139, %v2285
        %v2334 = vadd.f32 %v2144, %v2290
        %v2335 = vadd.f32 %v2147, %v2293
        %v2336 = vadd.f32 %v2152, %v2298
        %v2337 = vadd.f32 %v2155, %v2301
        %v2338 = vadd.f32 %v2160, %v2306
        %v2339 = vadd.f32 %v2163, %v2309
        %v2340 = vadd.f32 %v2168, %v2314
        %v2341 = vadd.f32 %v2171, %v2317
        %v2342 = vadd.f32 %v2176, %v2322
        %v2343 = vadd.f32 %v2179, %v2325
        %v2344 = vxor.u32 %v2328, 2147483648
        %v2345 = vxor.u32 %v2329, 2147483648
        %v2346 = vxor.u32 %v2330, 2147483648
        %v2347 = vxor.u32 %v2331, 2147483648
        %v2348 = vxor.u32 %v2332, 2147483648
        %v2349 = vxor.u32 %v2333, 2147483648
        %v2350 = vxor.u32 %v2334, 2147483648
        %v2351 = vxor.u32 %v2335, 2147483648
        %v2352 = vxor.u32 %v2336, 2147483648
        %v2353 = vxor.u32 %v2337, 2147483648
        %v2354 = vxor.u32 %v2338, 2147483648
        %v2355 = vxor.u32 %v2339, 2147483648
        %v2356 = vxor.u32 %v2340, 2147483648
        %v2357 = vxor.u32 %v2341, 2147483648
        %v2358 = vxor.u32 %v2342, 2147483648
        %v2359 = vxor.u32 %v2343, 2147483648
        %v2360 = vmul.f32 %v2344, 1.442695
        %v2361 = vpow.pop %v2360
        %v2362 = vmul.f32 %v2345, 1.442695
        %v2363 = vpow.pop %v2362
        %v2364 = vmul.f32 %v2346, 1.442695
        %v2365 = vpow.pop %v2364
        %v2366 = vmul.f32 %v2347, 1.442695
        %v2367 = vpow.pop %v2366
        %v2368 = vmul.f32 %v2348, 1.442695
        %v2369 = vpow.pop %v2368
        %v2370 = vmul.f32 %v2349, 1.442695
        %v2371 = vpow.pop %v2370
        %v2372 = vmul.f32 %v2350, 1.442695
        %v2373 = vpow.pop %v2372
        %v2374 = vmul.f32 %v2351, 1.442695
        %v2375 = vpow.pop %v2374
        %v2376 = vmul.f32 %v2352, 1.442695
        %v2377 = vpow.pop %v2376
        %v2378 = vmul.f32 %v2353, 1.442695
        %v2379 = vpow.pop %v2378
        %v2380 = vmul.f32 %v2354, 1.442695
        %v2381 = vpow.pop %v2380
        %v2382 = vmul.f32 %v2355, 1.442695
        %v2383 = vpow.pop %v2382
        %v2384 = vmul.f32 %v2356, 1.442695
        %v2385 = vpow.pop %v2384
        %v2386 = vmul.f32 %v2357, 1.442695
        %v2387 = vpow.pop %v2386
        %v2388 = vmul.f32 %v2358, 1.442695
        %v2389 = vpow.pop %v2388
        %v2390 = vmul.f32 %v2359, 1.442695
        %v2391 = vpow.pop %v2390
        %v2392 = vadd.f32 %v2361, 1.0
        %v2393 = vadd.f32 %v2363, 1.0
        %v2394 = vadd.f32 %v2365, 1.0
        %v2395 = vadd.f32 %v2367, 1.0
        %v2396 = vadd.f32 %v2369, 1.0
        %v2397 = vadd.f32 %v2371, 1.0
        %v2398 = vadd.f32 %v2373, 1.0
        %v2399 = vadd.f32 %v2375, 1.0
        %v2400 = vadd.f32 %v2377, 1.0
        %v2401 = vadd.f32 %v2379, 1.0
        %v2402 = vadd.f32 %v2381, 1.0
        %v2403 = vadd.f32 %v2383, 1.0
        %v2404 = vadd.f32 %v2385, 1.0
        %v2405 = vadd.f32 %v2387, 1.0
        %v2406 = vadd.f32 %v2389, 1.0
        %v2407 = vadd.f32 %v2391, 1.0
        %v2408 = vrcp.pop %v2392
        %v2409 = vmul.f32 1.0, %v2408
        %v2410 = vrcp.pop %v2393
        %v2411 = vmul.f32 1.0, %v2410
        %v2412 = vrcp.pop %v2394
        %v2413 = vmul.f32 1.0, %v2412
        %v2414 = vrcp.pop %v2395
        %v2415 = vmul.f32 1.0, %v2414
        %v2416 = vrcp.pop %v2396
        %v2417 = vmul.f32 1.0, %v2416
        %v2418 = vrcp.pop %v2397
        %v2419 = vmul.f32 1.0, %v2418
        %v2420 = vrcp.pop %v2398
        %v2421 = vmul.f32 1.0, %v2420
        %v2422 = vrcp.pop %v2399
        %v2423 = vmul.f32 1.0, %v2422
        %v2424 = vrcp.pop %v2400
        %v2425 = vmul.f32 1.0, %v2424
        %v2426 = vrcp.pop %v2401
        %v2427 = vmul.f32 1.0, %v2426
        %v2428 = vrcp.pop %v2402
        %v2429 = vmul.f32 1.0, %v2428
        %v2430 = vrcp.pop %v2403
        %v2431 = vmul.f32 1.0, %v2430
        %v2432 = vrcp.pop %v2404
        %v2433 = vmul.f32 1.0, %v2432
        %v2434 = vrcp.pop %v2405
        %v2435 = vmul.f32 1.0, %v2434
        %v2436 = vrcp.pop %v2406
        %v2437 = vmul.f32 1.0, %v2436
        %v2438 = vrcp.pop %v2407
        %v2439 = vmul.f32 1.0, %v2438
        %v2440 = vtanh.pop %v2328
        %v2441 = vtanh.pop %v2329
        %v2442 = vtanh.pop %v2330
        %v2443 = vtanh.pop %v2331
        %v2444 = vtanh.pop %v2332
        %v2445 = vtanh.pop %v2333
        %v2446 = vtanh.pop %v2334
        %v2447 = vtanh.pop %v2335
        %v2448 = vtanh.pop %v2336
        %v2449 = vtanh.pop %v2337
        %v2450 = vtanh.pop %v2338
        %v2451 = vtanh.pop %v2339
        %v2452 = vtanh.pop %v2340
        %v2453 = vtanh.pop %v2341
        %v2454 = vtanh.pop %v2342
        %v2455 = vtanh.pop %v2343
        %v2456 = vpack.c.bf16 %v1561, %v1558
        %v2457 = vpack.c.bf16 %v1569, %v1566
        %v2458 = vpack.c.bf16 %v1577, %v1574
        %v2459 = vpack.c.bf16 %v1585, %v1582
        %v2460 = vpack.c.bf16 %v1593, %v1590
        %v2461 = vpack.c.bf16 %v1601, %v1598
        %v2462 = vpack.c.bf16 %v1609, %v1606
        %v2463 = vpack.c.bf16 %v1617, %v1614
        %v2464 = vpack.c.bf16 %v1625, %v1622
        %v2465 = vpack.c.bf16 %v1633, %v1630
        %v2466 = vpack.c.bf16 %v1641, %v1638
        %v2467 = vpack.c.bf16 %v1649, %v1646
        %v2468 = vpack.c.bf16 %v1657, %v1654
        %v2469 = vpack.c.bf16 %v1665, %v1662
        %v2470 = vpack.c.bf16 %v1673, %v1670
        %v2471 = vpack.c.bf16 %v1681, %v1678
        %v2472 = vld [vmem:[%s5] sm:$0xf]
        %v2473 = vld [vmem:[%s5 + $0x4] sm:$0xf]
        %v2474 = vld [vmem:[%s5 + $0x8] sm:$0xf]
        %v2475 = vld [vmem:[%s5 + $0xc] sm:$0xf]
        %v2480 = vunpack.c.l.b16 %v2472
        %v2481 = vunpack.c.l.b16 %v2473
        %v2482 = vunpack.c.l.b16 %v2474
        %v2483 = vunpack.c.l.b16 %v2475
        %v2484 = vpack.c.b16 %v2481, %v2480
        %v2485 = vpack.c.b16 %v2483, %v2482
        %v2489 = vsel %vm2206, %v2456, 0
        %v2492 = vsel %vm2206, %v2457, 0
        %v2495 = vsel %vm2206, %v2458, 0
        %v2498 = vsel %vm2206, %v2459, 0
        %v2501 = vsel %vm2206, %v2460, 0
        %v2504 = vsel %vm2206, %v2461, 0
        %v2507 = vsel %vm2206, %v2462, 0
        %v2510 = vsel %vm2206, %v2463, 0
        %v2513 = vsel %vm2206, %v2464, 0
        %v2516 = vsel %vm2206, %v2465, 0
        %v2519 = vsel %vm2206, %v2466, 0
        %v2522 = vsel %vm2206, %v2467, 0
        %v2525 = vsel %vm2206, %v2468, 0
        %v2528 = vsel %vm2206, %v2469, 0
        %v2531 = vsel %vm2206, %v2470, 0
        %v2534 = vsel %vm2206, %v2471, 0
        %2536 = vmatprep.subr.bf16.mxu0 0
        %2537 = vmatpush1.bf16.msra.mxu0 %v2484
        %2538 = vmatprep.subr.bf16.mxu0 0
        %2539 = vmatpush1.bf16.msra.mxu0 %v2485
        %2540 = vmatprep.subr.bf16.mxu0 0
        %2541 = vmatpush1.bf16.msra.mxu0 0
        %2542 = vmatprep.subr.bf16.mxu0 0
        %2543 = vmatpush1.bf16.msra.mxu0 0
        %2544 = vmatprep.subr.bf16.mxu0 0
        %2545 = vmatpush1.bf16.msra.mxu0 0
        %2546 = vmatprep.subr.bf16.mxu0 0
        %2547 = vmatpush1.bf16.msra.mxu0 0
        %2548 = vmatprep.subr.bf16.mxu0 0
        %2549 = vmatpush1.bf16.msra.mxu0 0
        %2550 = vmatprep.subr.bf16.mxu0 0
        %2551 = vmatpush1.bf16.msra.mxu0 0
        %2552 = vmatprep.subr.bf16.mxu0 0
        %2553 = vmatpush1.bf16.msra.mxu0 0
        %2554 = vmatprep.subr.bf16.mxu0 0
        %2555 = vmatpush1.bf16.msra.mxu0 0
        %2556 = vmatprep.subr.bf16.mxu0 0
        %2557 = vmatpush1.bf16.msra.mxu0 0
        %2558 = vmatprep.subr.bf16.mxu0 0
        %2559 = vmatpush1.bf16.msra.mxu0 0
        %2560 = vmatprep.subr.bf16.mxu0 0
        %2561 = vmatpush1.bf16.msra.mxu0 0
        %2562 = vmatprep.subr.bf16.mxu0 0
        %2563 = vmatpush1.bf16.msra.mxu0 0
        %2564 = vmatprep.subr.bf16.mxu0 0
        %2565 = vmatpush1.bf16.msra.mxu0 0
        %2566 = vmatprep.subr.bf16.mxu0 0
        %2567 = vmatpush1.bf16.msra.mxu0 0
        %2568 = vmatprep.mubr.bf16.mxu0 0
        %2569 = vmatmul.mubr.bf16.gmra.mrb[0].mxu0 %v2489
        %v2570 = vpop.f32.mrb[0].mxu0
        %v2571 = vadd.f32 0.0, %v2570
        %v2572 = vpop.f32.mrb[0].mxu0
        %v2573 = vpop.f32.mrb[0].mxu0
        %v2574 = vadd.f32 0.0, %v2573
        %v2575 = vpop.f32.mrb[0].mxu0
        %2576 = vmatprep.mubr.bf16.mxu0 0
        %2577 = vmatmul.mubr.bf16.gmra.mrb[0].mxu0 %v2492
        %v2578 = vpop.f32.mrb[0].mxu0
        %v2579 = vadd.f32 0.0, %v2578
        %v2580 = vpop.f32.mrb[0].mxu0
        %v2581 = vpop.f32.mrb[0].mxu0
        %v2582 = vadd.f32 0.0, %v2581
        %v2583 = vpop.f32.mrb[0].mxu0
        %2584 = vmatprep.mubr.bf16.mxu0 0
        %2585 = vmatmul.mubr.bf16.gmra.mrb[0].mxu0 %v2495
        %v2586 = vpop.f32.mrb[0].mxu0
        %v2587 = vadd.f32 0.0, %v2586
        %v2588 = vpop.f32.mrb[0].mxu0
        %v2589 = vpop.f32.mrb[0].mxu0
        %v2590 = vadd.f32 0.0, %v2589
        %v2591 = vpop.f32.mrb[0].mxu0
        %2592 = vmatprep.mubr.bf16.mxu0 0
        %2593 = vmatmul.mubr.bf16.gmra.mrb[0].mxu0 %v2498
        %v2594 = vpop.f32.mrb[0].mxu0
        %v2595 = vadd.f32 0.0, %v2594
        %v2596 = vpop.f32.mrb[0].mxu0
        %v2597 = vpop.f32.mrb[0].mxu0
        %v2598 = vadd.f32 0.0, %v2597
        %v2599 = vpop.f32.mrb[0].mxu0
        %2600 = vmatprep.mubr.bf16.mxu0 0
        %2601 = vmatmul.mubr.bf16.gmra.mrb[0].mxu0 %v2501
        %v2602 = vpop.f32.mrb[0].mxu0
        %v2603 = vadd.f32 0.0, %v2602
        %v2604 = vpop.f32.mrb[0].mxu0
        %v2605 = vpop.f32.mrb[0].mxu0
        %v2606 = vadd.f32 0.0, %v2605
        %v2607 = vpop.f32.mrb[0].mxu0
        %2608 = vmatprep.mubr.bf16.mxu0 0
        %2609 = vmatmul.mubr.bf16.gmra.mrb[0].mxu0 %v2504
        %v2610 = vpop.f32.mrb[0].mxu0
        %v2611 = vadd.f32 0.0, %v2610
        %v2612 = vpop.f32.mrb[0].mxu0
        %v2613 = vpop.f32.mrb[0].mxu0
        %v2614 = vadd.f32 0.0, %v2613
        %v2615 = vpop.f32.mrb[0].mxu0
        %2616 = vmatprep.mubr.bf16.mxu0 0
        %2617 = vmatmul.mubr.bf16.gmra.mrb[0].mxu0 %v2507
        %v2618 = vpop.f32.mrb[0].mxu0
        %v2619 = vadd.f32 0.0, %v2618
        %v2620 = vpop.f32.mrb[0].mxu0
        %v2621 = vpop.f32.mrb[0].mxu0
        %v2622 = vadd.f32 0.0, %v2621
        %v2623 = vpop.f32.mrb[0].mxu0
        %2624 = vmatprep.mubr.bf16.mxu0 0
        %2625 = vmatmul.mubr.bf16.gmra.mrb[0].mxu0 %v2510
        %v2626 = vpop.f32.mrb[0].mxu0
        %v2627 = vadd.f32 0.0, %v2626
        %v2628 = vpop.f32.mrb[0].mxu0
        %v2629 = vpop.f32.mrb[0].mxu0
        %v2630 = vadd.f32 0.0, %v2629
        %v2631 = vpop.f32.mrb[0].mxu0
        %2632 = vmatprep.mubr.bf16.mxu0 0
        %2633 = vmatmul.mubr.bf16.gmra.mrb[0].mxu0 %v2513
        %v2634 = vpop.f32.mrb[0].mxu0
        %v2635 = vadd.f32 0.0, %v2634
        %v2636 = vpop.f32.mrb[0].mxu0
        %v2637 = vpop.f32.mrb[0].mxu0
        %v2638 = vadd.f32 0.0, %v2637
        %v2639 = vpop.f32.mrb[0].mxu0
        %2640 = vmatprep.mubr.bf16.mxu0 0
        %2641 = vmatmul.mubr.bf16.gmra.mrb[0].mxu0 %v2516
        %v2642 = vpop.f32.mrb[0].mxu0
        %v2643 = vadd.f32 0.0, %v2642
        %v2644 = vpop.f32.mrb[0].mxu0
        %v2645 = vpop.f32.mrb[0].mxu0
        %v2646 = vadd.f32 0.0, %v2645
        %v2647 = vpop.f32.mrb[0].mxu0
        %2648 = vmatprep.mubr.bf16.mxu0 0
        %2649 = vmatmul.mubr.bf16.gmra.mrb[0].mxu0 %v2519
        %v2650 = vpop.f32.mrb[0].mxu0
        %v2651 = vadd.f32 0.0, %v2650
        %v2652 = vpop.f32.mrb[0].mxu0
        %v2653 = vpop.f32.mrb[0].mxu0
        %v2654 = vadd.f32 0.0, %v2653
        %v2655 = vpop.f32.mrb[0].mxu0
        %2656 = vmatprep.mubr.bf16.mxu0 0
        %2657 = vmatmul.mubr.bf16.gmra.mrb[0].mxu0 %v2522
        %v2658 = vpop.f32.mrb[0].mxu0
        %v2659 = vadd.f32 0.0, %v2658
        %v2660 = vpop.f32.mrb[0].mxu0
        %v2661 = vpop.f32.mrb[0].mxu0
        %v2662 = vadd.f32 0.0, %v2661
        %v2663 = vpop.f32.mrb[0].mxu0
        %2664 = vmatprep.mubr.bf16.mxu0 0
        %2665 = vmatmul.mubr.bf16.gmra.mrb[0].mxu0 %v2525
        %v2666 = vpop.f32.mrb[0].mxu0
        %v2667 = vadd.f32 0.0, %v2666
        %v2668 = vpop.f32.mrb[0].mxu0
        %v2669 = vpop.f32.mrb[0].mxu0
        %v2670 = vadd.f32 0.0, %v2669
        %v2671 = vpop.f32.mrb[0].mxu0
        %2672 = vmatprep.mubr.bf16.mxu0 0
        %2673 = vmatmul.mubr.bf16.gmra.mrb[0].mxu0 %v2528
        %v2674 = vpop.f32.mrb[0].mxu0
        %v2675 = vadd.f32 0.0, %v2674
        %v2676 = vpop.f32.mrb[0].mxu0
        %v2677 = vpop.f32.mrb[0].mxu0
        %v2678 = vadd.f32 0.0, %v2677
        %v2679 = vpop.f32.mrb[0].mxu0
        %2680 = vmatprep.mubr.bf16.mxu0 0
        %2681 = vmatmul.mubr.bf16.gmra.mrb[0].mxu0 %v2531
        %v2682 = vpop.f32.mrb[0].mxu0
        %v2683 = vadd.f32 0.0, %v2682
        %v2684 = vpop.f32.mrb[0].mxu0
        %v2685 = vpop.f32.mrb[0].mxu0
        %v2686 = vadd.f32 0.0, %v2685
        %v2687 = vpop.f32.mrb[0].mxu0
        %2688 = vmatprep.mubr.bf16.mxu0 0
        %2689 = vmatmul.mubr.bf16.gmra.mrb[0].mxu0 %v2534
        %v2690 = vpop.f32.mrb[0].mxu0
        %v2691 = vadd.f32 0.0, %v2690
        %v2692 = vpop.f32.mrb[0].mxu0
        %v2693 = vpop.f32.mrb[0].mxu0
        %v2694 = vadd.f32 0.0, %v2693
        %v2695 = vpop.f32.mrb[0].mxu0
        %2696 = vdwg.mxu0
        %2713 = vrot.lane.b32.xlu0 %v2571, 32
        %v2714 = vpop.permute.xlu0 %2713
        %2715 = vrot.lane.b32.xlu0 %v2574, 32
        %v2716 = vpop.permute.xlu0 %2715
        %2717 = vrot.lane.b32.xlu0 %v2579, 32
        %v2718 = vpop.permute.xlu0 %2717
        %2719 = vrot.lane.b32.xlu0 %v2582, 32
        %v2720 = vpop.permute.xlu0 %2719
        %2721 = vrot.lane.b32.xlu0 %v2587, 32
        %v2722 = vpop.permute.xlu0 %2721
        %2723 = vrot.lane.b32.xlu0 %v2590, 32
        %v2724 = vpop.permute.xlu0 %2723
        %2725 = vrot.lane.b32.xlu0 %v2595, 32
        %v2726 = vpop.permute.xlu0 %2725
        %2727 = vrot.lane.b32.xlu0 %v2598, 32
        %v2728 = vpop.permute.xlu0 %2727
        %2729 = vrot.lane.b32.xlu0 %v2603, 32
        %v2730 = vpop.permute.xlu0 %2729
        %2731 = vrot.lane.b32.xlu0 %v2606, 32
        %v2732 = vpop.permute.xlu0 %2731
        %2733 = vrot.lane.b32.xlu0 %v2611, 32
        %v2734 = vpop.permute.xlu0 %2733
        %2735 = vrot.lane.b32.xlu0 %v2614, 32
        %v2736 = vpop.permute.xlu0 %2735
        %2737 = vrot.lane.b32.xlu0 %v2619, 32
        %v2738 = vpop.permute.xlu0 %2737
        %2739 = vrot.lane.b32.xlu0 %v2622, 32
        %v2740 = vpop.permute.xlu0 %2739
        %2741 = vrot.lane.b32.xlu0 %v2627, 32
        %v2742 = vpop.permute.xlu0 %2741
        %2743 = vrot.lane.b32.xlu0 %v2630, 32
        %v2744 = vpop.permute.xlu0 %2743
        %v2761 = vadd.f32 %v2120, %v2714
        %v2762 = vadd.f32 %v2123, %v2716
        %v2763 = vadd.f32 %v2128, %v2718
        %v2764 = vadd.f32 %v2131, %v2720
        %v2765 = vadd.f32 %v2136, %v2722
        %v2766 = vadd.f32 %v2139, %v2724
        %v2767 = vadd.f32 %v2144, %v2726
        %v2768 = vadd.f32 %v2147, %v2728
        %v2769 = vadd.f32 %v2152, %v2730
        %v2770 = vadd.f32 %v2155, %v2732
        %v2771 = vadd.f32 %v2160, %v2734
        %v2772 = vadd.f32 %v2163, %v2736
        %v2773 = vadd.f32 %v2168, %v2738
        %v2774 = vadd.f32 %v2171, %v2740
        %v2775 = vadd.f32 %v2176, %v2742
        %v2776 = vadd.f32 %v2179, %v2744
        %v2777 = vxor.u32 %v2761, 2147483648
        %v2778 = vxor.u32 %v2762, 2147483648
        %v2779 = vxor.u32 %v2763, 2147483648
        %v2780 = vxor.u32 %v2764, 2147483648
        %v2781 = vxor.u32 %v2765, 2147483648
        %v2782 = vxor.u32 %v2766, 2147483648
        %v2783 = vxor.u32 %v2767, 2147483648
        %v2784 = vxor.u32 %v2768, 2147483648
        %v2785 = vxor.u32 %v2769, 2147483648
        %v2786 = vxor.u32 %v2770, 2147483648
        %v2787 = vxor.u32 %v2771, 2147483648
        %v2788 = vxor.u32 %v2772, 2147483648
        %v2789 = vxor.u32 %v2773, 2147483648
        %v2790 = vxor.u32 %v2774, 2147483648
        %v2791 = vxor.u32 %v2775, 2147483648
        %v2792 = vxor.u32 %v2776, 2147483648
        %v2793 = vmul.f32 %v2777, 1.442695
        %v2794 = vpow.pop %v2793
        %v2795 = vmul.f32 %v2778, 1.442695
        %v2796 = vpow.pop %v2795
        %v2797 = vmul.f32 %v2779, 1.442695
        %v2798 = vpow.pop %v2797
        %v2799 = vmul.f32 %v2780, 1.442695
        %v2800 = vpow.pop %v2799
        %v2801 = vmul.f32 %v2781, 1.442695
        %v2802 = vpow.pop %v2801
        %v2803 = vmul.f32 %v2782, 1.442695
        %v2804 = vpow.pop %v2803
        %v2805 = vmul.f32 %v2783, 1.442695
        %v2806 = vpow.pop %v2805
        %v2807 = vmul.f32 %v2784, 1.442695
        %v2808 = vpow.pop %v2807
        %v2809 = vmul.f32 %v2785, 1.442695
        %v2810 = vpow.pop %v2809
        %v2811 = vmul.f32 %v2786, 1.442695
        %v2812 = vpow.pop %v2811
        %v2813 = vmul.f32 %v2787, 1.442695
        %v2814 = vpow.pop %v2813
        %v2815 = vmul.f32 %v2788, 1.442695
        %v2816 = vpow.pop %v2815
        %v2817 = vmul.f32 %v2789, 1.442695
        %v2818 = vpow.pop %v2817
        %v2819 = vmul.f32 %v2790, 1.442695
        %v2820 = vpow.pop %v2819
        %v2821 = vmul.f32 %v2791, 1.442695
        %v2822 = vpow.pop %v2821
        %v2823 = vmul.f32 %v2792, 1.442695
        %v2824 = vpow.pop %v2823
        %v2825 = vadd.f32 %v2794, 1.0
        %v2826 = vadd.f32 %v2796, 1.0
        %v2827 = vadd.f32 %v2798, 1.0
        %v2828 = vadd.f32 %v2800, 1.0
        %v2829 = vadd.f32 %v2802, 1.0
        %v2830 = vadd.f32 %v2804, 1.0
        %v2831 = vadd.f32 %v2806, 1.0
        %v2832 = vadd.f32 %v2808, 1.0
        %v2833 = vadd.f32 %v2810, 1.0
        %v2834 = vadd.f32 %v2812, 1.0
        %v2835 = vadd.f32 %v2814, 1.0
        %v2836 = vadd.f32 %v2816, 1.0
        %v2837 = vadd.f32 %v2818, 1.0
        %v2838 = vadd.f32 %v2820, 1.0
        %v2839 = vadd.f32 %v2822, 1.0
        %v2840 = vadd.f32 %v2824, 1.0
        %v2841 = vrcp.pop %v2825
        %v2842 = vmul.f32 1.0, %v2841
        %v2843 = vrcp.pop %v2826
        %v2844 = vmul.f32 1.0, %v2843
        %v2845 = vrcp.pop %v2827
        %v2846 = vmul.f32 1.0, %v2845
        %v2847 = vrcp.pop %v2828
        %v2848 = vmul.f32 1.0, %v2847
        %v2849 = vrcp.pop %v2829
        %v2850 = vmul.f32 1.0, %v2849
        %v2851 = vrcp.pop %v2830
        %v2852 = vmul.f32 1.0, %v2851
        %v2853 = vrcp.pop %v2831
        %v2854 = vmul.f32 1.0, %v2853
        %v2855 = vrcp.pop %v2832
        %v2856 = vmul.f32 1.0, %v2855
        %v2857 = vrcp.pop %v2833
        %v2858 = vmul.f32 1.0, %v2857
        %v2859 = vrcp.pop %v2834
        %v2860 = vmul.f32 1.0, %v2859
        %v2861 = vrcp.pop %v2835
        %v2862 = vmul.f32 1.0, %v2861
        %v2863 = vrcp.pop %v2836
        %v2864 = vmul.f32 1.0, %v2863
        %v2865 = vrcp.pop %v2837
        %v2866 = vmul.f32 1.0, %v2865
        %v2867 = vrcp.pop %v2838
        %v2868 = vmul.f32 1.0, %v2867
        %v2869 = vrcp.pop %v2839
        %v2870 = vmul.f32 1.0, %v2869
        %v2871 = vrcp.pop %v2840
        %v2872 = vmul.f32 1.0, %v2871
        %2889 = vrot.lane.b32.xlu0 %v1880, 32
        %v2890 = vpop.permute.xlu0 %2889
        %2891 = vrot.lane.b32.xlu0 %v1883, 32
        %v2892 = vpop.permute.xlu0 %2891
        %2893 = vrot.lane.b32.xlu0 %v1888, 32
        %v2894 = vpop.permute.xlu0 %2893
        %2895 = vrot.lane.b32.xlu0 %v1891, 32
        %v2896 = vpop.permute.xlu0 %2895
        %2897 = vrot.lane.b32.xlu0 %v1896, 32
        %v2898 = vpop.permute.xlu0 %2897
        %2899 = vrot.lane.b32.xlu0 %v1899, 32
        %v2900 = vpop.permute.xlu0 %2899
        %2901 = vrot.lane.b32.xlu0 %v1904, 32
        %v2902 = vpop.permute.xlu0 %2901
        %2903 = vrot.lane.b32.xlu0 %v1907, 32
        %v2904 = vpop.permute.xlu0 %2903
        %2905 = vrot.lane.b32.xlu0 %v1912, 32
        %v2906 = vpop.permute.xlu0 %2905
        %2907 = vrot.lane.b32.xlu0 %v1915, 32
        %v2908 = vpop.permute.xlu0 %2907
        %2909 = vrot.lane.b32.xlu0 %v1920, 32
        %v2910 = vpop.permute.xlu0 %2909
        %2911 = vrot.lane.b32.xlu0 %v1923, 32
        %v2912 = vpop.permute.xlu0 %2911
        %2913 = vrot.lane.b32.xlu0 %v1928, 32
        %v2914 = vpop.permute.xlu0 %2913
        %2915 = vrot.lane.b32.xlu0 %v1931, 32
        %v2916 = vpop.permute.xlu0 %2915
        %2917 = vrot.lane.b32.xlu0 %v1936, 32
        %v2918 = vpop.permute.xlu0 %2917
        %2919 = vrot.lane.b32.xlu0 %v1939, 32
        %v2920 = vpop.permute.xlu0 %2919
        %v2937 = vmul.f32 %v2842, %v2890
        %v2938 = vmul.f32 %v2844, %v2892
        %v2939 = vmul.f32 %v2846, %v2894
        %v2940 = vmul.f32 %v2848, %v2896
        %v2941 = vmul.f32 %v2850, %v2898
        %v2942 = vmul.f32 %v2852, %v2900
        %v2943 = vmul.f32 %v2854, %v2902
        %v2944 = vmul.f32 %v2856, %v2904
        %v2945 = vmul.f32 %v2858, %v2906
        %v2946 = vmul.f32 %v2860, %v2908
        %v2947 = vmul.f32 %v2862, %v2910
        %v2948 = vmul.f32 %v2864, %v2912
        %v2949 = vmul.f32 %v2866, %v2914
        %v2950 = vmul.f32 %v2868, %v2916
        %v2951 = vmul.f32 %v2870, %v2918
        %v2952 = vmul.f32 %v2872, %v2920
        %2969 = vrot.lane.b32.xlu0 %v2635, 32
        %v2970 = vpop.permute.xlu0 %2969
        %2971 = vrot.lane.b32.xlu0 %v2638, 32
        %v2972 = vpop.permute.xlu0 %2971
        %2973 = vrot.lane.b32.xlu0 %v2643, 32
        %v2974 = vpop.permute.xlu0 %2973
        %2975 = vrot.lane.b32.xlu0 %v2646, 32
        %v2976 = vpop.permute.xlu0 %2975
        %2977 = vrot.lane.b32.xlu0 %v2651, 32
        %v2978 = vpop.permute.xlu0 %2977
        %2979 = vrot.lane.b32.xlu0 %v2654, 32
        %v2980 = vpop.permute.xlu0 %2979
        %2981 = vrot.lane.b32.xlu0 %v2659, 32
        %v2982 = vpop.permute.xlu0 %2981
        %2983 = vrot.lane.b32.xlu0 %v2662, 32
        %v2984 = vpop.permute.xlu0 %2983
        %2985 = vrot.lane.b32.xlu0 %v2667, 32
        %v2986 = vpop.permute.xlu0 %2985
        %2987 = vrot.lane.b32.xlu0 %v2670, 32
        %v2988 = vpop.permute.xlu0 %2987
        %2989 = vrot.lane.b32.xlu0 %v2675, 32
        %v2990 = vpop.permute.xlu0 %2989
        %2991 = vrot.lane.b32.xlu0 %v2678, 32
        %v2992 = vpop.permute.xlu0 %2991
        %2993 = vrot.lane.b32.xlu0 %v2683, 32
        %v2994 = vpop.permute.xlu0 %2993
        %2995 = vrot.lane.b32.xlu0 %v2686, 32
        %v2996 = vpop.permute.xlu0 %2995
        %2997 = vrot.lane.b32.xlu0 %v2691, 32
        %v2998 = vpop.permute.xlu0 %2997
        %2999 = vrot.lane.b32.xlu0 %v2694, 32
        %v3000 = vpop.permute.xlu0 %2999
        %v3017 = vadd.f32 %v2120, %v2970
        %v3018 = vadd.f32 %v2123, %v2972
        %v3019 = vadd.f32 %v2128, %v2974
        %v3020 = vadd.f32 %v2131, %v2976
        %v3021 = vadd.f32 %v2136, %v2978
        %v3022 = vadd.f32 %v2139, %v2980
        %v3023 = vadd.f32 %v2144, %v2982
        %v3024 = vadd.f32 %v2147, %v2984
        %v3025 = vadd.f32 %v2152, %v2986
        %v3026 = vadd.f32 %v2155, %v2988
        %v3027 = vadd.f32 %v2160, %v2990
        %v3028 = vadd.f32 %v2163, %v2992
        %v3029 = vadd.f32 %v2168, %v2994
        %v3030 = vadd.f32 %v2171, %v2996
        %v3031 = vadd.f32 %v2176, %v2998
        %v3032 = vadd.f32 %v2179, %v3000
        %v3033 = vxor.u32 %v3017, 2147483648
        %v3034 = vxor.u32 %v3018, 2147483648
        %v3035 = vxor.u32 %v3019, 2147483648
        %v3036 = vxor.u32 %v3020, 2147483648
        %v3037 = vxor.u32 %v3021, 2147483648
        %v3038 = vxor.u32 %v3022, 2147483648
        %v3039 = vxor.u32 %v3023, 2147483648
        %v3040 = vxor.u32 %v3024, 2147483648
        %v3041 = vxor.u32 %v3025, 2147483648
        %v3042 = vxor.u32 %v3026, 2147483648
        %v3043 = vxor.u32 %v3027, 2147483648
        %v3044 = vxor.u32 %v3028, 2147483648
        %v3045 = vxor.u32 %v3029, 2147483648
        %v3046 = vxor.u32 %v3030, 2147483648
        %v3047 = vxor.u32 %v3031, 2147483648
        %v3048 = vxor.u32 %v3032, 2147483648
        %v3049 = vmul.f32 %v3033, 1.442695
        %v3050 = vpow.pop %v3049
        %v3051 = vmul.f32 %v3034, 1.442695
        %v3052 = vpow.pop %v3051
        %v3053 = vmul.f32 %v3035, 1.442695
        %v3054 = vpow.pop %v3053
        %v3055 = vmul.f32 %v3036, 1.442695
        %v3056 = vpow.pop %v3055
        %v3057 = vmul.f32 %v3037, 1.442695
        %v3058 = vpow.pop %v3057
        %v3059 = vmul.f32 %v3038, 1.442695
        %v3060 = vpow.pop %v3059
        %v3061 = vmul.f32 %v3039, 1.442695
        %v3062 = vpow.pop %v3061
        %v3063 = vmul.f32 %v3040, 1.442695
        %v3064 = vpow.pop %v3063
        %v3065 = vmul.f32 %v3041, 1.442695
        %v3066 = vpow.pop %v3065
        %v3067 = vmul.f32 %v3042, 1.442695
        %v3068 = vpow.pop %v3067
        %v3069 = vmul.f32 %v3043, 1.442695
        %v3070 = vpow.pop %v3069
        %v3071 = vmul.f32 %v3044, 1.442695
        %v3072 = vpow.pop %v3071
        %v3073 = vmul.f32 %v3045, 1.442695
        %v3074 = vpow.pop %v3073
        %v3075 = vmul.f32 %v3046, 1.442695
        %v3076 = vpow.pop %v3075
        %v3077 = vmul.f32 %v3047, 1.442695
        %v3078 = vpow.pop %v3077
        %v3079 = vmul.f32 %v3048, 1.442695
        %v3080 = vpow.pop %v3079
        %v3081 = vadd.f32 %v3050, 1.0
        %v3082 = vadd.f32 %v3052, 1.0
        %v3083 = vadd.f32 %v3054, 1.0
        %v3084 = vadd.f32 %v3056, 1.0
        %v3085 = vadd.f32 %v3058, 1.0
        %v3086 = vadd.f32 %v3060, 1.0
        %v3087 = vadd.f32 %v3062, 1.0
        %v3088 = vadd.f32 %v3064, 1.0
        %v3089 = vadd.f32 %v3066, 1.0
        %v3090 = vadd.f32 %v3068, 1.0
        %v3091 = vadd.f32 %v3070, 1.0
        %v3092 = vadd.f32 %v3072, 1.0
        %v3093 = vadd.f32 %v3074, 1.0
        %v3094 = vadd.f32 %v3076, 1.0
        %v3095 = vadd.f32 %v3078, 1.0
        %v3096 = vadd.f32 %v3080, 1.0
        %v3097 = vrcp.pop %v3081
        %v3098 = vmul.f32 1.0, %v3097
        %v3099 = vrcp.pop %v3082
        %v3100 = vmul.f32 1.0, %v3099
        %v3101 = vrcp.pop %v3083
        %v3102 = vmul.f32 1.0, %v3101
        %v3103 = vrcp.pop %v3084
        %v3104 = vmul.f32 1.0, %v3103
        %v3105 = vrcp.pop %v3085
        %v3106 = vmul.f32 1.0, %v3105
        %v3107 = vrcp.pop %v3086
        %v3108 = vmul.f32 1.0, %v3107
        %v3109 = vrcp.pop %v3087
        %v3110 = vmul.f32 1.0, %v3109
        %v3111 = vrcp.pop %v3088
        %v3112 = vmul.f32 1.0, %v3111
        %v3113 = vrcp.pop %v3089
        %v3114 = vmul.f32 1.0, %v3113
        %v3115 = vrcp.pop %v3090
        %v3116 = vmul.f32 1.0, %v3115
        %v3117 = vrcp.pop %v3091
        %v3118 = vmul.f32 1.0, %v3117
        %v3119 = vrcp.pop %v3092
        %v3120 = vmul.f32 1.0, %v3119
        %v3121 = vrcp.pop %v3093
        %v3122 = vmul.f32 1.0, %v3121
        %v3123 = vrcp.pop %v3094
        %v3124 = vmul.f32 1.0, %v3123
        %v3125 = vrcp.pop %v3095
        %v3126 = vmul.f32 1.0, %v3125
        %v3127 = vrcp.pop %v3096
        %v3128 = vmul.f32 1.0, %v3127
        %3145 = vrot.lane.b32.xlu0 %v1944, 32
        %v3146 = vpop.permute.xlu0 %3145
        %3147 = vrot.lane.b32.xlu0 %v1947, 32
        %v3148 = vpop.permute.xlu0 %3147
        %3149 = vrot.lane.b32.xlu0 %v1952, 32
        %v3150 = vpop.permute.xlu0 %3149
        %3151 = vrot.lane.b32.xlu0 %v1955, 32
        %v3152 = vpop.permute.xlu0 %3151
        %3153 = vrot.lane.b32.xlu0 %v1960, 32
        %v3154 = vpop.permute.xlu0 %3153
        %3155 = vrot.lane.b32.xlu0 %v1963, 32
        %v3156 = vpop.permute.xlu0 %3155
        %3157 = vrot.lane.b32.xlu0 %v1968, 32
        %v3158 = vpop.permute.xlu0 %3157
        %3159 = vrot.lane.b32.xlu0 %v1971, 32
        %v3160 = vpop.permute.xlu0 %3159
        %3161 = vrot.lane.b32.xlu0 %v1976, 32
        %v3162 = vpop.permute.xlu0 %3161
        %3163 = vrot.lane.b32.xlu0 %v1979, 32
        %v3164 = vpop.permute.xlu0 %3163
        %3165 = vrot.lane.b32.xlu0 %v1984, 32
        %v3166 = vpop.permute.xlu0 %3165
        %3167 = vrot.lane.b32.xlu0 %v1987, 32
        %v3168 = vpop.permute.xlu0 %3167
        %3169 = vrot.lane.b32.xlu0 %v1992, 32
        %v3170 = vpop.permute.xlu0 %3169
        %3171 = vrot.lane.b32.xlu0 %v1995, 32
        %v3172 = vpop.permute.xlu0 %3171
        %3173 = vrot.lane.b32.xlu0 %v2000, 32
        %v3174 = vpop.permute.xlu0 %3173
        %3175 = vrot.lane.b32.xlu0 %v2003, 32
        %v3176 = vpop.permute.xlu0 %3175
        %v3193 = vmul.f32 %v3098, %v3146
        %v3194 = vmul.f32 %v3100, %v3148
        %v3195 = vmul.f32 %v3102, %v3150
        %v3196 = vmul.f32 %v3104, %v3152
        %v3197 = vmul.f32 %v3106, %v3154
        %v3198 = vmul.f32 %v3108, %v3156
        %v3199 = vmul.f32 %v3110, %v3158
        %v3200 = vmul.f32 %v3112, %v3160
        %v3201 = vmul.f32 %v3114, %v3162
        %v3202 = vmul.f32 %v3116, %v3164
        %v3203 = vmul.f32 %v3118, %v3166
        %v3204 = vmul.f32 %v3120, %v3168
        %v3205 = vmul.f32 %v3122, %v3170
        %v3206 = vmul.f32 %v3124, %v3172
        %v3207 = vmul.f32 %v3126, %v3174
        %v3208 = vmul.f32 %v3128, %v3176
        %v3209 = vadd.f32 %v2937, %v3193
        %v3210 = vadd.f32 %v2938, %v3194
        %v3211 = vadd.f32 %v2939, %v3195
        %v3212 = vadd.f32 %v2940, %v3196
        %v3213 = vadd.f32 %v2941, %v3197
        %v3214 = vadd.f32 %v2942, %v3198
        %v3215 = vadd.f32 %v2943, %v3199
        %v3216 = vadd.f32 %v2944, %v3200
        %v3217 = vadd.f32 %v2945, %v3201
        %v3218 = vadd.f32 %v2946, %v3202
        %v3219 = vadd.f32 %v2947, %v3203
        %v3220 = vadd.f32 %v2948, %v3204
        %v3221 = vadd.f32 %v2949, %v3205
        %v3222 = vadd.f32 %v2950, %v3206
        %v3223 = vadd.f32 %v2951, %v3207
        %v3224 = vadd.f32 %v2952, %v3208
        %3241 = vrot.lane.b32.xlu0 %v2440, 32
        %v3242 = vpop.permute.xlu0 %3241
        %3243 = vrot.lane.b32.xlu0 %v2441, 32
        %v3244 = vpop.permute.xlu0 %3243
        %3245 = vrot.lane.b32.xlu0 %v2442, 32
        %v3246 = vpop.permute.xlu0 %3245
        %3247 = vrot.lane.b32.xlu0 %v2443, 32
        %v3248 = vpop.permute.xlu0 %3247
        %3249 = vrot.lane.b32.xlu0 %v2444, 32
        %v3250 = vpop.permute.xlu0 %3249
        %3251 = vrot.lane.b32.xlu0 %v2445, 32
        %v3252 = vpop.permute.xlu0 %3251
        %3253 = vrot.lane.b32.xlu0 %v2446, 32
        %v3254 = vpop.permute.xlu0 %3253
        %3255 = vrot.lane.b32.xlu0 %v2447, 32
        %v3256 = vpop.permute.xlu0 %3255
        %3257 = vrot.lane.b32.xlu0 %v2448, 32
        %v3258 = vpop.permute.xlu0 %3257
        %3259 = vrot.lane.b32.xlu0 %v2449, 32
        %v3260 = vpop.permute.xlu0 %3259
        %3261 = vrot.lane.b32.xlu0 %v2450, 32
        %v3262 = vpop.permute.xlu0 %3261
        %3263 = vrot.lane.b32.xlu0 %v2451, 32
        %v3264 = vpop.permute.xlu0 %3263
        %3265 = vrot.lane.b32.xlu0 %v2452, 32
        %v3266 = vpop.permute.xlu0 %3265
        %3267 = vrot.lane.b32.xlu0 %v2453, 32
        %v3268 = vpop.permute.xlu0 %3267
        %3269 = vrot.lane.b32.xlu0 %v2454, 32
        %v3270 = vpop.permute.xlu0 %3269
        %3271 = vrot.lane.b32.xlu0 %v2455, 32
        %v3272 = vpop.permute.xlu0 %3271
        %v3289 = vmul.f32 %v2409, %v3242
        %v3290 = vmul.f32 %v2411, %v3244
        %v3291 = vmul.f32 %v2413, %v3246
        %v3292 = vmul.f32 %v2415, %v3248
        %v3293 = vmul.f32 %v2417, %v3250
        %v3294 = vmul.f32 %v2419, %v3252
        %v3295 = vmul.f32 %v2421, %v3254
        %v3296 = vmul.f32 %v2423, %v3256
        %v3297 = vmul.f32 %v2425, %v3258
        %v3298 = vmul.f32 %v2427, %v3260
        %v3299 = vmul.f32 %v2429, %v3262
        %v3300 = vmul.f32 %v2431, %v3264
        %v3301 = vmul.f32 %v2433, %v3266
        %v3302 = vmul.f32 %v2435, %v3268
        %v3303 = vmul.f32 %v2437, %v3270
        %v3304 = vmul.f32 %v2439, %v3272
        %3321 = vrot.lane.b32.xlu0 %v3209, 96
        %v3322 = vpop.permute.xlu0 %3321
        %3323 = vrot.lane.b32.xlu0 %v3210, 96
        %v3324 = vpop.permute.xlu0 %3323
        %3325 = vrot.lane.b32.xlu0 %v3211, 96
        %v3326 = vpop.permute.xlu0 %3325
        %3327 = vrot.lane.b32.xlu0 %v3212, 96
        %v3328 = vpop.permute.xlu0 %3327
        %3329 = vrot.lane.b32.xlu0 %v3213, 96
        %v3330 = vpop.permute.xlu0 %3329
        %3331 = vrot.lane.b32.xlu0 %v3214, 96
        %v3332 = vpop.permute.xlu0 %3331
        %3333 = vrot.lane.b32.xlu0 %v3215, 96
        %v3334 = vpop.permute.xlu0 %3333
        %3335 = vrot.lane.b32.xlu0 %v3216, 96
        %v3336 = vpop.permute.xlu0 %3335
        %3337 = vrot.lane.b32.xlu0 %v3217, 96
        %v3338 = vpop.permute.xlu0 %3337
        %3339 = vrot.lane.b32.xlu0 %v3218, 96
        %v3340 = vpop.permute.xlu0 %3339
        %3341 = vrot.lane.b32.xlu0 %v3219, 96
        %v3342 = vpop.permute.xlu0 %3341
        %3343 = vrot.lane.b32.xlu0 %v3220, 96
        %v3344 = vpop.permute.xlu0 %3343
        %3345 = vrot.lane.b32.xlu0 %v3221, 96
        %v3346 = vpop.permute.xlu0 %3345
        %3347 = vrot.lane.b32.xlu0 %v3222, 96
        %v3348 = vpop.permute.xlu0 %3347
        %3349 = vrot.lane.b32.xlu0 %v3223, 96
        %v3350 = vpop.permute.xlu0 %3349
        %3351 = vrot.lane.b32.xlu0 %v3224, 96
        %v3352 = vpop.permute.xlu0 %3351
        %v3369 = vadd.f32 %v3289, %v3322
        %v3370 = vadd.f32 %v3290, %v3324
        %v3371 = vadd.f32 %v3291, %v3326
        %v3372 = vadd.f32 %v3292, %v3328
        %v3373 = vadd.f32 %v3293, %v3330
        %v3374 = vadd.f32 %v3294, %v3332
        %v3375 = vadd.f32 %v3295, %v3334
        %v3376 = vadd.f32 %v3296, %v3336
        %v3377 = vadd.f32 %v3297, %v3338
        %v3378 = vadd.f32 %v3298, %v3340
        %v3379 = vadd.f32 %v3299, %v3342
        %v3380 = vadd.f32 %v3300, %v3344
        %v3381 = vadd.f32 %v3301, %v3346
        %v3382 = vadd.f32 %v3302, %v3348
        %v3383 = vadd.f32 %v3303, %v3350
        %v3384 = vadd.f32 %v3304, %v3352
        %v3385 = vtanh.pop %v3369
        %v3386 = vtanh.pop %v3370
        %v3387 = vtanh.pop %v3371
        %v3388 = vtanh.pop %v3372
        %v3389 = vtanh.pop %v3373
        %v3390 = vtanh.pop %v3374
        %v3391 = vtanh.pop %v3375
        %v3392 = vtanh.pop %v3376
        %v3393 = vtanh.pop %v3377
        %v3394 = vtanh.pop %v3378
        %v3395 = vtanh.pop %v3379
        %v3396 = vtanh.pop %v3380
        %v3397 = vtanh.pop %v3381
        %v3398 = vtanh.pop %v3382
        %v3399 = vtanh.pop %v3383
        %v3400 = vtanh.pop %v3384
        %3417 = vrot.lane.b32.xlu0 %v3385, 64
        %v3418 = vpop.permute.xlu0 %3417
        %3419 = vrot.lane.b32.xlu0 %v3386, 64
        %v3420 = vpop.permute.xlu0 %3419
        %3421 = vrot.lane.b32.xlu0 %v3387, 64
        %v3422 = vpop.permute.xlu0 %3421
        %3423 = vrot.lane.b32.xlu0 %v3388, 64
        %v3424 = vpop.permute.xlu0 %3423
        %3425 = vrot.lane.b32.xlu0 %v3389, 64
        %v3426 = vpop.permute.xlu0 %3425
        %3427 = vrot.lane.b32.xlu0 %v3390, 64
        %v3428 = vpop.permute.xlu0 %3427
        %3429 = vrot.lane.b32.xlu0 %v3391, 64
        %v3430 = vpop.permute.xlu0 %3429
        %3431 = vrot.lane.b32.xlu0 %v3392, 64
        %v3432 = vpop.permute.xlu0 %3431
        %3433 = vrot.lane.b32.xlu0 %v3393, 64
        %v3434 = vpop.permute.xlu0 %3433
        %3435 = vrot.lane.b32.xlu0 %v3394, 64
        %v3436 = vpop.permute.xlu0 %3435
        %3437 = vrot.lane.b32.xlu0 %v3395, 64
        %v3438 = vpop.permute.xlu0 %3437
        %3439 = vrot.lane.b32.xlu0 %v3396, 64
        %v3440 = vpop.permute.xlu0 %3439
        %3441 = vrot.lane.b32.xlu0 %v3397, 64
        %v3442 = vpop.permute.xlu0 %3441
        %3443 = vrot.lane.b32.xlu0 %v3398, 64
        %v3444 = vpop.permute.xlu0 %3443
        %3445 = vrot.lane.b32.xlu0 %v3399, 64
        %v3446 = vpop.permute.xlu0 %3445
        %3447 = vrot.lane.b32.xlu0 %v3400, 64
        %v3448 = vpop.permute.xlu0 %3447
        %v3465 = vmul.f32 %v2409, %v3418
        %v3466 = vmul.f32 %v2411, %v3420
        %v3467 = vmul.f32 %v2413, %v3422
        %v3468 = vmul.f32 %v2415, %v3424
        %v3469 = vmul.f32 %v2417, %v3426
        %v3470 = vmul.f32 %v2419, %v3428
        %v3471 = vmul.f32 %v2421, %v3430
        %v3472 = vmul.f32 %v2423, %v3432
        %v3473 = vmul.f32 %v2425, %v3434
        %v3474 = vmul.f32 %v2427, %v3436
        %v3475 = vmul.f32 %v2429, %v3438
        %v3476 = vmul.f32 %v2431, %v3440
        %v3477 = vmul.f32 %v2433, %v3442
        %v3478 = vmul.f32 %v2435, %v3444
        %v3479 = vmul.f32 %v2437, %v3446
        %v3480 = vmul.f32 %v2439, %v3448
        %3497 = vrot.lane.b32.xlu0 %v3465, 64
        %v3498 = vpop.permute.xlu0 %3497
        %3499 = vrot.lane.b32.xlu0 %v3466, 64
        %v3500 = vpop.permute.xlu0 %3499
        %3501 = vrot.lane.b32.xlu0 %v3467, 64
        %v3502 = vpop.permute.xlu0 %3501
        %3503 = vrot.lane.b32.xlu0 %v3468, 64
        %v3504 = vpop.permute.xlu0 %3503
        %3505 = vrot.lane.b32.xlu0 %v3469, 64
        %v3506 = vpop.permute.xlu0 %3505
        %3507 = vrot.lane.b32.xlu0 %v3470, 64
        %v3508 = vpop.permute.xlu0 %3507
        %3509 = vrot.lane.b32.xlu0 %v3471, 64
        %v3510 = vpop.permute.xlu0 %3509
        %3511 = vrot.lane.b32.xlu0 %v3472, 64
        %v3512 = vpop.permute.xlu0 %3511
        %3513 = vrot.lane.b32.xlu0 %v3473, 64
        %v3514 = vpop.permute.xlu0 %3513
        %3515 = vrot.lane.b32.xlu0 %v3474, 64
        %v3516 = vpop.permute.xlu0 %3515
        %3517 = vrot.lane.b32.xlu0 %v3475, 64
        %v3518 = vpop.permute.xlu0 %3517
        %3519 = vrot.lane.b32.xlu0 %v3476, 64
        %v3520 = vpop.permute.xlu0 %3519
        %3521 = vrot.lane.b32.xlu0 %v3477, 64
        %v3522 = vpop.permute.xlu0 %3521
        %3523 = vrot.lane.b32.xlu0 %v3478, 64
        %v3524 = vpop.permute.xlu0 %3523
        %3525 = vrot.lane.b32.xlu0 %v3479, 64
        %v3526 = vpop.permute.xlu0 %3525
        %3527 = vrot.lane.b32.xlu0 %v3480, 64
        %v3528 = vpop.permute.xlu0 %3527
        %s3545 = smul.u32 %s31, 128
        %s3546 = scalar_lea.vmem %s419, %s3545
        %3547 = vst.msk [vmem:[%s3546] sm:$0xff] %vm2206, %v3498
        %3548 = vst.msk [vmem:[%s3546 + $0x8] sm:$0xff] %vm2206, %v3500
        %3549 = vst.msk [vmem:[%s3546 + $0x10] sm:$0xff] %vm2206, %v3502
        %3550 = vst.msk [vmem:[%s3546 + $0x18] sm:$0xff] %vm2206, %v3504
        %3551 = vst.msk [vmem:[%s3546 + $0x20] sm:$0xff] %vm2206, %v3506
        %3552 = vst.msk [vmem:[%s3546 + $0x28] sm:$0xff] %vm2206, %v3508
        %3553 = vst.msk [vmem:[%s3546 + $0x30] sm:$0xff] %vm2206, %v3510
        %3554 = vst.msk [vmem:[%s3546 + $0x38] sm:$0xff] %vm2206, %v3512
        %3555 = vst.msk [vmem:[%s3546 + $0x40] sm:$0xff] %vm2206, %v3514
        %3556 = vst.msk [vmem:[%s3546 + $0x48] sm:$0xff] %vm2206, %v3516
        %3557 = vst.msk [vmem:[%s3546 + $0x50] sm:$0xff] %vm2206, %v3518
        %3558 = vst.msk [vmem:[%s3546 + $0x58] sm:$0xff] %vm2206, %v3520
        %3559 = vst.msk [vmem:[%s3546 + $0x60] sm:$0xff] %vm2206, %v3522
        %3560 = vst.msk [vmem:[%s3546 + $0x68] sm:$0xff] %vm2206, %v3524
        %3561 = vst.msk [vmem:[%s3546 + $0x70] sm:$0xff] %vm2206, %v3526
        %3562 = vst.msk [vmem:[%s3546 + $0x78] sm:$0xff] %vm2206, %v3528
        %s3563 = scalar_lea.vmem %s424, %s3545
        %3564 = vst.msk [vmem:[%s3563] sm:$0xff] %vm2206, %v3369
        %3565 = vst.msk [vmem:[%s3563 + $0x8] sm:$0xff] %vm2206, %v3370
        %3566 = vst.msk [vmem:[%s3563 + $0x10] sm:$0xff] %vm2206, %v3371
        %3567 = vst.msk [vmem:[%s3563 + $0x18] sm:$0xff] %vm2206, %v3372
        %3568 = vst.msk [vmem:[%s3563 + $0x20] sm:$0xff] %vm2206, %v3373
        %3569 = vst.msk [vmem:[%s3563 + $0x28] sm:$0xff] %vm2206, %v3374
        %3570 = vst.msk [vmem:[%s3563 + $0x30] sm:$0xff] %vm2206, %v3375
        %3571 = vst.msk [vmem:[%s3563 + $0x38] sm:$0xff] %vm2206, %v3376
        %3572 = vst.msk [vmem:[%s3563 + $0x40] sm:$0xff] %vm2206, %v3377
        %3573 = vst.msk [vmem:[%s3563 + $0x48] sm:$0xff] %vm2206, %v3378
        %3574 = vst.msk [vmem:[%s3563 + $0x50] sm:$0xff] %vm2206, %v3379
        %3575 = vst.msk [vmem:[%s3563 + $0x58] sm:$0xff] %vm2206, %v3380
        %3576 = vst.msk [vmem:[%s3563 + $0x60] sm:$0xff] %vm2206, %v3381
        %3577 = vst.msk [vmem:[%s3563 + $0x68] sm:$0xff] %vm2206, %v3382
        %3578 = vst.msk [vmem:[%s3563 + $0x70] sm:$0xff] %vm2206, %v3383
        %3579 = vst.msk [vmem:[%s3563 + $0x78] sm:$0xff] %vm2206, %v3384
        %p3580 = scmp.lt.s32.totalorder %s30, 1
        %s3581 = scalar_select %p3580, %s30, 1
        %s3582 = smul.addr %s3581, 48
        %s3583 = smul.addr %s3582, 8
        %s3584 = scalar_lea.vmem %s7, %s3583
        %p3585 = scmp.lt.s32.totalorder %s30, 1
        %s3586 = scalar_select %p3585, %s30, 1
        %s3587 = smul.addr %s3586, 48
        %s3588 = smul.addr %s3587, 8
        %s3589 = scalar_lea.vmem %s8, %s3588
        // Predicated region
        $region61: #{tpu_custom_call.1} parent=47 // pred_check
          %p3590 = pneg %p220
        $region62: #{tpu_custom_call.1} parent=47 // pred_check_branch
          %3592 = sbr.rel (%p3590) target = $region64
        $region63: #{tpu_custom_call.1} parent=47 // pred_region
          _
        $region64: #{tpu_custom_call.1} parent=47 // pred_fallthru
          _
        // Predicated region
        $region65: #{tpu_custom_call.1} parent=47 // pred_check
          %p3593 = pneg %p246
        $region66: #{tpu_custom_call.1} parent=47 // pred_check_branch
          %3595 = sbr.rel (%p3593) target = $region68
        $region67: #{tpu_custom_call.1} parent=47 // pred_region
          _
        $region68: #{tpu_custom_call.1} parent=47 // pred_fallthru
          _
      $region48: #{tpu_custom_call.1} parent=5 // pred_fallthru
        _
      %p3596 = scmp.le.s32.totalorder 2, %s21
      // Predicated region
      $region69: #{tpu_custom_call.1} parent=5 // pred_check
        %p3597 = pneg %p3596
      $region70: #{tpu_custom_call.1} parent=5 // pred_check_branch
        %3599 = sbr.rel (%p3597) target = $region72
      $region71: #{tpu_custom_call.1} parent=5 // pred_region
        %s3600 = ssub.s32 %s21, 2
        // Predicated region
        $region73: #{tpu_custom_call.1} parent=71 // pred_check
          %p3601 = pneg %p226
        $region74: #{tpu_custom_call.1} parent=71 // pred_check_branch
          %3603 = sbr.rel (%p3601) target = $region76
        $region75: #{tpu_custom_call.1} parent=71 // pred_region
          %p3604 = scmp.lt.s32.totalorder %s32, 1
          %s3605 = scalar_select %p3604, %s32, 1
          %s3606 = smul.addr %s3605, 48
          %s3607 = smul.addr %s3606, 8
          %s3608 = scalar_lea.vmem %s7, %s3607
        $region76: #{tpu_custom_call.1} parent=71 // pred_fallthru
          _
        // Predicated region
        $region77: #{tpu_custom_call.1} parent=71 // pred_check
          %p3609 = pneg %p252
        $region78: #{tpu_custom_call.1} parent=71 // pred_check_branch
          %3611 = sbr.rel (%p3609) target = $region80
        $region79: #{tpu_custom_call.1} parent=71 // pred_region
          %p3612 = scmp.lt.s32.totalorder %s32, 1
          %s3613 = scalar_select %p3612, %s32, 1
          %s3614 = smul.addr %s3613, 48
          %s3615 = smul.addr %s3614, 8
          %s3616 = scalar_lea.vmem %s8, %s3615
        $region80: #{tpu_custom_call.1} parent=71 // pred_fallthru
          _
      $region72: #{tpu_custom_call.1} parent=5 // pred_fallthru
        _
    $region6: #{tpu_custom_call.1} parent=1 // loop_footer
      %s25 = sadd.s32 1, %s21
    $region7: #{tpu_custom_call.1} parent=1 // loop_footer_branch
      %20 = sbr.rel target = $region3
    $region8: #{tpu_custom_call.1} parent=1 // loop_exit
      _
    %3617 = vsyncpa [#allocation3], 1
    %s3618 = scalar_lea.sflag [#allocation3], 1
    %3619 = vsyncpa %s3618, 1
    %3620 = vsyncpa [#allocation5], 1
    %s3621 = scalar_lea.sflag [#allocation5], 1
    %3622 = vsyncpa %s3621, 1

</llo_original>
